<compile_context>
chip_gen: v7x
topology: tpu7x:2x2x1
jax: 0.10.0
libtpu: 0.0.40
codegen_flags: <defaults>
</compile_context>

<pallas_src>
import numpy as np
import jax
import jax.numpy as jnp
from jax.experimental import pallas as pl
from jax.experimental.pallas import tpu as pltpu

GRID_SIZE = 5      # efficient-KAN default
SPLINE_ORDER = 3   # efficient-KAN default
GRID_LO, GRID_HI = -1.0, 1.0
N_COEF = GRID_SIZE + SPLINE_ORDER            # bases per input feature (=8)
N_KNOTS = GRID_SIZE + 2 * SPLINE_ORDER + 1   # extended grid points (=12)
OUT_PAD = 128                                # lane-dense output width

# Uniform extended knot vector, computed in f32 exactly as make_grid() does so
# kernel constants are bit-identical to the reference grid values.
_H_F32 = np.float32((GRID_HI - GRID_LO) / GRID_SIZE)
_KNOTS_F32 = (np.arange(-SPLINE_ORDER, GRID_SIZE + SPLINE_ORDER + 1,
                        dtype=np.float32) * _H_F32 + np.float32(GRID_LO))
_KNOTS = tuple(float(v) for v in _KNOTS_F32)


# ----------------------------- kernel helpers ------------------------------

def _b_spline_bases(x):
    """x: [B, F] f32.  Returns list of N_COEF arrays [B, F].

    Grid is uniform and identical across features, so knot values and the
    Cox-de-Boor span reciprocals are Python constants: no grid tensor loads,
    no divides — only VPU multiply/add on full [B, F] tiles.
    """
    ge = [(x >= _KNOTS[t]).astype(jnp.float32) for t in range(N_KNOTS)]
    # order-0 bases: indicator of [knot_t, knot_{t+1}); knots are increasing,
    # so ge[t] >= ge[t+1] element-wise and the difference is exactly 0/1.
    bases = [ge[t] - ge[t + 1] for t in range(N_KNOTS - 1)]
    # Cox-de-Boor recurrence with precomputed constant reciprocals.
    for k in range(1, SPLINE_ORDER + 1):
        nxt = []
        for t in range(len(bases) - 1):
            inv_a = 1.0 / float(_KNOTS_F32[t + k] - _KNOTS_F32[t])
            inv_b = 1.0 / float(_KNOTS_F32[t + k + 1] - _KNOTS_F32[t + 1])
            nxt.append((x - _KNOTS[t]) * inv_a * bases[t]
                       + (_KNOTS[t + k + 1] - x) * inv_b * bases[t + 1])
        bases = nxt
    return bases  # N_COEF arrays of [B, F]


def _kan_layer(x, wb_ref, ws_ref):
    """x: [B,F]; wb_ref: [F,O]; ws_ref: [F*N_COEF, O] (t-major flattening)."""
    acc = jnp.dot(jax.nn.silu(x), wb_ref[...],
                  preferred_element_type=jnp.float32)
    # Fuse the 8 spline matmuls into a single MXU contraction of K = F*N_COEF.
    bcat = jnp.concatenate(_b_spline_bases(x), axis=-1)     # [B, N_COEF*F]
    acc = acc + jnp.dot(bcat, ws_ref[...],
                        preferred_element_type=jnp.float32)
    return acc


def _layer_norm(h, gamma_ref, beta_ref, eps=1e-5):
    mean = jnp.mean(h, axis=-1, keepdims=True)
    var = jnp.mean(jnp.square(h - mean), axis=-1, keepdims=True)
    return (h - mean) * jax.lax.rsqrt(var + eps) * gamma_ref[...] + beta_ref[...]


def kan_actor_kernel(obs_ref,
                     wb1_ref, ws1_ref, ln1_g_ref, ln1_b_ref,
                     wb2_ref, ws2_ref, ln2_g_ref, ln2_b_ref,
                     wb3_ref, ws3_ref,
                     out_ref):
    x = obs_ref[...].astype(jnp.float32)
    h = _kan_layer(x, wb1_ref, ws1_ref)
    h = _layer_norm(h, ln1_g_ref, ln1_b_ref)
    h = _kan_layer(h, wb2_ref, ws2_ref)
    h = _layer_norm(h, ln2_g_ref, ln2_b_ref)
    h = _kan_layer(h, wb3_ref, ws3_ref)          # output padded to OUT_PAD lanes
    out_ref[...] = h.astype(out_ref.dtype)


# ------------------------------- wrapper ------------------------------------

def _round_up(n, m):
    return ((n + m - 1) // m) * m


def kan_actor_forward(obs, params, max_block_b=512):
    (g1, wb1, ws1), (g2, wb2, ws2), (g3, wb3, ws3) = params["kan"]
    del g1, g2, g3  # uniform grid is baked into the kernel as constants
    ln1_g, ln1_b, ln2_g, ln2_b = params["ln"]

    B, obs_f = obs.shape
    act = wb3.shape[1]

    # Flatten spline weights [N_COEF, F, O] -> [N_COEF*F, O] (matches the
    # t-major lane concatenation order used in the kernel).
    def flat_ws(ws_t):
        ncoef, f, o = ws_t.shape
        return ws_t.reshape(ncoef * f, o)

    ws1f, ws2f, ws3f = flat_ws(ws1), flat_ws(ws2), flat_ws(ws3)

    # Lane-dense output: zero-pad the last layer's output dim to 128.
    wb3p = jnp.zeros((wb3.shape[0], OUT_PAD), jnp.float32).at[:, :act].set(wb3)
    ws3fp = jnp.zeros((ws3f.shape[0], OUT_PAD), jnp.float32).at[:, :act].set(ws3f)

    # Batch tiling (largest tile <= max_block_b that respects (8,*) sublane rule).
    block_b = min(max_block_b, _round_up(B, 8))
    b_pad = _round_up(B, block_b)
    obs_p = obs if b_pad == B else jnp.pad(obs, ((0, b_pad - B), (0, 0)))

    weights = [wb1, ws1f, ln1_g, ln1_b,
               wb2, ws2f, ln2_g, ln2_b,
               wb3p, ws3fp]

    def w_spec(a):
        nd = a.ndim
        return pl.BlockSpec(a.shape, lambda i, _nd=nd: (0,) * _nd)

    out = pl.pallas_call(
        kan_actor_kernel,
        out_shape=jax.ShapeDtypeStruct((b_pad, OUT_PAD), jnp.float32),
        grid_spec=pltpu.PrefetchScalarGridSpec(
            num_scalar_prefetch=0,
            grid=(b_pad // block_b,),
            in_specs=[pl.BlockSpec((block_b, obs_f), lambda i: (i, 0))]
                     + [w_spec(a) for a in weights],
            out_specs=pl.BlockSpec((block_b, OUT_PAD), lambda i: (i, 0)),
        ),
        compiler_params=pltpu.CompilerParams(
            dimension_semantics=("parallel",)),
    )(obs_p, *weights)

    return out[:B, :act]


# --------------------------- parameter creation ------------------------------

def make_grid(in_f):
    g = jnp.asarray(_KNOTS_F32)                                # [N_KNOTS]
    return jnp.tile(g[:, None], (1, in_f))                     # [N_KNOTS, in_f]


def init_kan_params(key, in_f, out_f):
    k1, k2, k3 = jax.random.split(key, 3)
    wb = jax.random.normal(k1, (in_f, out_f), jnp.float32) / np.sqrt(in_f)
    spline_w = jax.random.normal(k2, (out_f, in_f, N_COEF), jnp.float32) * 0.1
    scaler = 1.0 + 0.1 * jax.random.normal(k3, (out_f, in_f), jnp.float32)
    ws = spline_w * scaler[:, :, None]                # scaled_spline_weight
    ws_t = jnp.transpose(ws, (2, 1, 0))               # [N_COEF, in_f, out_f]
    return make_grid(in_f), wb, ws_t


# ------------------------- pure-JAX reference --------------------------------

def ref_b_splines(x, grid_t):
    grid = grid_t.T                                   # [F, N_KNOTS]
    xg = x[:, :, None]
    bases = ((xg >= grid[None, :, :-1]) & (xg < grid[None, :, 1:])).astype(x.dtype)
    for k in range(1, SPLINE_ORDER + 1):
        bases = (
            (xg - grid[None, :, : -(k + 1)])
            / (grid[None, :, k:-1] - grid[None, :, : -(k + 1)]) * bases[:, :, :-1]
            + (grid[None, :, k + 1:] - xg)
            / (grid[None, :, k + 1:] - grid[None, :, 1:-k]) * bases[:, :, 1:]
        )
    return bases                                      # [B, F, N_COEF]


def ref_kan(x, grid_t, wb, ws_t):
    base = jax.nn.silu(x) @ wb
    spline = jnp.einsum("bft,tfo->bo", ref_b_splines(x, grid_t), ws_t)
    return base + spline


def ref_layer_norm(h, g, b, eps=1e-5):
    mean = jnp.mean(h, axis=-1, keepdims=True)
    var = jnp.mean(jnp.square(h - mean), axis=-1, keepdims=True)
    return (h - mean) / jnp.sqrt(var + eps) * g + b


def ref_forward(obs, params):
    (g1, wb1, ws1), (g2, wb2, ws2), (g3, wb3, ws3) = params["kan"]
    ln1_g, ln1_b, ln2_g, ln2_b = params["ln"]
    h = ref_kan(obs, g1, wb1, ws1)
    h = ref_layer_norm(h, ln1_g, ln1_b)
    h = ref_kan(h, g2, wb2, ws2)
    h = ref_layer_norm(h, ln2_g, ln2_b)
    return ref_kan(h, g3, wb3, ws3)


# ----------------------------------- main ------------------------------------

if __name__ == "__main__":
    OBS_SIZE = 16
    ACT_SIZE = 4
    BATCH = 8

    key = jax.random.PRNGKey(0)
    k_obs, k1, k2, k3 = jax.random.split(key, 4)

    obs = jax.random.normal(k_obs, (BATCH, OBS_SIZE), jnp.float32) * 0.5

    params = {
        "kan": (
            init_kan_params(k1, OBS_SIZE, 64),
            init_kan_params(k2, 64, 32),
            init_kan_params(k3, 32, ACT_SIZE),
        ),
        "ln": (
            jnp.ones((1, 64), jnp.float32), jnp.zeros((1, 64), jnp.float32),
            jnp.ones((1, 32), jnp.float32), jnp.zeros((1, 32), jnp.float32),
        ),
    }

    out = kan_actor_forward(obs, params)
    out = jax.block_until_ready(out)

    expected = ref_forward(obs, params)
    np.testing.assert_allclose(np.asarray(out), np.asarray(expected),
                               rtol=1e-4, atol=1e-4)

    print("KERNEL_OK")
</pallas_src>

<mosaic_0001>
module attributes {stable_mosaic.version = 11 : i64} {
  func.func @kan_actor_kernel(%arg0: i32, %arg1: memref<8x16xf32, #tpu.memory_space<vmem>>, %arg2: memref<16x64xf32, #tpu.memory_space<vmem>>, %arg3: memref<128x64xf32, #tpu.memory_space<vmem>>, %arg4: memref<1x64xf32, #tpu.memory_space<vmem>>, %arg5: memref<1x64xf32, #tpu.memory_space<vmem>>, %arg6: memref<64x32xf32, #tpu.memory_space<vmem>>, %arg7: memref<512x32xf32, #tpu.memory_space<vmem>>, %arg8: memref<1x32xf32, #tpu.memory_space<vmem>>, %arg9: memref<1x32xf32, #tpu.memory_space<vmem>>, %arg10: memref<32x128xf32, #tpu.memory_space<vmem>>, %arg11: memref<256x128xf32, #tpu.memory_space<vmem>>, %arg12: memref<8x128xf32, #tpu.memory_space<vmem>>) attributes {dimension_semantics = [#tpu.dimension_semantics<parallel>], iteration_bounds = array<i64: 1>, scalar_prefetch = 0 : i64, scratch_operands = 0 : i64, tpu.core_type = #tpu.core_type<tc>, window_params = [{transform_indices = @transform_0, window_bounds = array<i64: 8, 16>}, {pipeline_mode = #tpu.pipeline_mode<synchronous>, transform_indices = @transform_1, window_bounds = array<i64: 16, 64>}, {pipeline_mode = #tpu.pipeline_mode<synchronous>, transform_indices = @transform_2, window_bounds = array<i64: 128, 64>}, {pipeline_mode = #tpu.pipeline_mode<synchronous>, transform_indices = @transform_3, window_bounds = array<i64: 1, 64>}, {pipeline_mode = #tpu.pipeline_mode<synchronous>, transform_indices = @transform_4, window_bounds = array<i64: 1, 64>}, {pipeline_mode = #tpu.pipeline_mode<synchronous>, transform_indices = @transform_5, window_bounds = array<i64: 64, 32>}, {pipeline_mode = #tpu.pipeline_mode<synchronous>, transform_indices = @transform_6, window_bounds = array<i64: 512, 32>}, {pipeline_mode = #tpu.pipeline_mode<synchronous>, transform_indices = @transform_7, window_bounds = array<i64: 1, 32>}, {pipeline_mode = #tpu.pipeline_mode<synchronous>, transform_indices = @transform_8, window_bounds = array<i64: 1, 32>}, {pipeline_mode = #tpu.pipeline_mode<synchronous>, transform_indices = @transform_9, window_bounds = array<i64: 32, 128>}, {pipeline_mode = #tpu.pipeline_mode<synchronous>, transform_indices = @transform_10, window_bounds = array<i64: 256, 128>}, {transform_indices = @transform_11, window_bounds = array<i64: 8, 128>}]} {
    %c0 = arith.constant 0 : index
    %c0_0 = arith.constant 0 : index
    %0 = vector.load %arg1[%c0, %c0_0] : memref<8x16xf32, #tpu.memory_space<vmem>>, vector<8x16xf32>
    %1 = arith.negf %0 : vector<8x16xf32>
    %2 = math.exp %1 : vector<8x16xf32>
    %cst = arith.constant 1.000000e+00 : f32
    %3 = vector.broadcast %cst : f32 to vector<8x16xf32>
    %4 = arith.addf %3, %2 : vector<8x16xf32>
    %5 = arith.divf %3, %4 : vector<8x16xf32>
    %6 = arith.mulf %0, %5 : vector<8x16xf32>
    %c0_1 = arith.constant 0 : index
    %c0_2 = arith.constant 0 : index
    %7 = vector.load %arg2[%c0_1, %c0_2] : memref<16x64xf32, #tpu.memory_space<vmem>>, vector<16x64xf32>
    %cst_3 = arith.constant dense<0.000000e+00> : vector<8x64xf32>
    %8 = tpu.matmul %6, %7, %cst_3 {dimension_numbers = #tpu.dot_dimension_numbers<[1], [0], [0], [1], [0, 0, 1, 1], [], []>} : vector<8x16xf32>, vector<16x64xf32>, vector<8x64xf32> -> vector<8x64xf32>
    %cst_4 = arith.constant -2.200000e+00 : f32
    %9 = vector.broadcast %cst_4 : f32 to vector<8x16xf32>
    %10 = arith.cmpf oge, %0, %9 : vector<8x16xf32>
    %11 = arith.extui %10 : vector<8x16xi1> to vector<8x16xi32>
    %12 = arith.sitofp %11 : vector<8x16xi32> to vector<8x16xf32>
    %cst_5 = arith.constant -1.800000e+00 : f32
    %13 = vector.broadcast %cst_5 : f32 to vector<8x16xf32>
    %14 = arith.cmpf oge, %0, %13 : vector<8x16xf32>
    %15 = arith.extui %14 : vector<8x16xi1> to vector<8x16xi32>
    %16 = arith.sitofp %15 : vector<8x16xi32> to vector<8x16xf32>
    %cst_6 = arith.constant -1.400000e+00 : f32
    %17 = vector.broadcast %cst_6 : f32 to vector<8x16xf32>
    %18 = arith.cmpf oge, %0, %17 : vector<8x16xf32>
    %19 = arith.extui %18 : vector<8x16xi1> to vector<8x16xi32>
    %20 = arith.sitofp %19 : vector<8x16xi32> to vector<8x16xf32>
    %cst_7 = arith.constant -1.000000e+00 : f32
    %21 = vector.broadcast %cst_7 : f32 to vector<8x16xf32>
    %22 = arith.cmpf oge, %0, %21 : vector<8x16xf32>
    %23 = arith.extui %22 : vector<8x16xi1> to vector<8x16xi32>
    %24 = arith.sitofp %23 : vector<8x16xi32> to vector<8x16xf32>
    %cst_8 = arith.constant -6.000000e-01 : f32
    %25 = vector.broadcast %cst_8 : f32 to vector<8x16xf32>
    %26 = arith.cmpf oge, %0, %25 : vector<8x16xf32>
    %27 = arith.extui %26 : vector<8x16xi1> to vector<8x16xi32>
    %28 = arith.sitofp %27 : vector<8x16xi32> to vector<8x16xf32>
    %cst_9 = arith.constant -0.199999988 : f32
    %29 = vector.broadcast %cst_9 : f32 to vector<8x16xf32>
    %30 = arith.cmpf oge, %0, %29 : vector<8x16xf32>
    %31 = arith.extui %30 : vector<8x16xi1> to vector<8x16xi32>
    %32 = arith.sitofp %31 : vector<8x16xi32> to vector<8x16xf32>
    %cst_10 = arith.constant 0.200000048 : f32
    %33 = vector.broadcast %cst_10 : f32 to vector<8x16xf32>
    %34 = arith.cmpf oge, %0, %33 : vector<8x16xf32>
    %35 = arith.extui %34 : vector<8x16xi1> to vector<8x16xi32>
    %36 = arith.sitofp %35 : vector<8x16xi32> to vector<8x16xf32>
    %cst_11 = arith.constant 6.000000e-01 : f32
    %37 = vector.broadcast %cst_11 : f32 to vector<8x16xf32>
    %38 = arith.cmpf oge, %0, %37 : vector<8x16xf32>
    %39 = arith.extui %38 : vector<8x16xi1> to vector<8x16xi32>
    %40 = arith.sitofp %39 : vector<8x16xi32> to vector<8x16xf32>
    %cst_12 = arith.constant 1.000000e+00 : f32
    %41 = vector.broadcast %cst_12 : f32 to vector<8x16xf32>
    %42 = arith.cmpf oge, %0, %41 : vector<8x16xf32>
    %43 = arith.extui %42 : vector<8x16xi1> to vector<8x16xi32>
    %44 = arith.sitofp %43 : vector<8x16xi32> to vector<8x16xf32>
    %cst_13 = arith.constant 1.4000001 : f32
    %45 = vector.broadcast %cst_13 : f32 to vector<8x16xf32>
    %46 = arith.cmpf oge, %0, %45 : vector<8x16xf32>
    %47 = arith.extui %46 : vector<8x16xi1> to vector<8x16xi32>
    %48 = arith.sitofp %47 : vector<8x16xi32> to vector<8x16xf32>
    %cst_14 = arith.constant 1.800000e+00 : f32
    %49 = vector.broadcast %cst_14 : f32 to vector<8x16xf32>
    %50 = arith.cmpf oge, %0, %49 : vector<8x16xf32>
    %51 = arith.extui %50 : vector<8x16xi1> to vector<8x16xi32>
    %52 = arith.sitofp %51 : vector<8x16xi32> to vector<8x16xf32>
    %cst_15 = arith.constant 2.200000e+00 : f32
    %53 = vector.broadcast %cst_15 : f32 to vector<8x16xf32>
    %54 = arith.cmpf oge, %0, %53 : vector<8x16xf32>
    %55 = arith.extui %54 : vector<8x16xi1> to vector<8x16xi32>
    %56 = arith.sitofp %55 : vector<8x16xi32> to vector<8x16xf32>
    %57 = arith.subf %12, %16 : vector<8x16xf32>
    %58 = arith.subf %16, %20 : vector<8x16xf32>
    %59 = arith.subf %20, %24 : vector<8x16xf32>
    %60 = arith.subf %24, %28 : vector<8x16xf32>
    %61 = arith.subf %28, %32 : vector<8x16xf32>
    %62 = arith.subf %32, %36 : vector<8x16xf32>
    %63 = arith.subf %36, %40 : vector<8x16xf32>
    %64 = arith.subf %40, %44 : vector<8x16xf32>
    %65 = arith.subf %44, %48 : vector<8x16xf32>
    %66 = arith.subf %48, %52 : vector<8x16xf32>
    %67 = arith.subf %52, %56 : vector<8x16xf32>
    %cst_16 = arith.constant -2.200000e+00 : f32
    %68 = vector.broadcast %cst_16 : f32 to vector<8x16xf32>
    %69 = arith.subf %0, %68 : vector<8x16xf32>
    %cst_17 = arith.constant 2.49999952 : f32
    %70 = vector.broadcast %cst_17 : f32 to vector<8x16xf32>
    %71 = arith.mulf %69, %70 : vector<8x16xf32>
    %72 = arith.mulf %71, %57 : vector<8x16xf32>
    %cst_18 = arith.constant -1.400000e+00 : f32
    %73 = vector.broadcast %cst_18 : f32 to vector<8x16xf32>
    %74 = arith.subf %73, %0 : vector<8x16xf32>
    %cst_19 = arith.constant 2.50000024 : f32
    %75 = vector.broadcast %cst_19 : f32 to vector<8x16xf32>
    %76 = arith.mulf %74, %75 : vector<8x16xf32>
    %77 = arith.mulf %76, %58 : vector<8x16xf32>
    %78 = arith.addf %72, %77 : vector<8x16xf32>
    %cst_20 = arith.constant -1.800000e+00 : f32
    %79 = vector.broadcast %cst_20 : f32 to vector<8x16xf32>
    %80 = arith.subf %0, %79 : vector<8x16xf32>
    %cst_21 = arith.constant 2.50000024 : f32
    %81 = vector.broadcast %cst_21 : f32 to vector<8x16xf32>
    %82 = arith.mulf %80, %81 : vector<8x16xf32>
    %83 = arith.mulf %82, %58 : vector<8x16xf32>
    %cst_22 = arith.constant -1.000000e+00 : f32
    %84 = vector.broadcast %cst_22 : f32 to vector<8x16xf32>
    %85 = arith.subf %84, %0 : vector<8x16xf32>
    %cst_23 = arith.constant 2.50000024 : f32
    %86 = vector.broadcast %cst_23 : f32 to vector<8x16xf32>
    %87 = arith.mulf %85, %86 : vector<8x16xf32>
    %88 = arith.mulf %87, %59 : vector<8x16xf32>
    %89 = arith.addf %83, %88 : vector<8x16xf32>
    %cst_24 = arith.constant -1.400000e+00 : f32
    %90 = vector.broadcast %cst_24 : f32 to vector<8x16xf32>
    %91 = arith.subf %0, %90 : vector<8x16xf32>
    %cst_25 = arith.constant 2.50000024 : f32
    %92 = vector.broadcast %cst_25 : f32 to vector<8x16xf32>
    %93 = arith.mulf %91, %92 : vector<8x16xf32>
    %94 = arith.mulf %93, %59 : vector<8x16xf32>
    %cst_26 = arith.constant -6.000000e-01 : f32
    %95 = vector.broadcast %cst_26 : f32 to vector<8x16xf32>
    %96 = arith.subf %95, %0 : vector<8x16xf32>
    %cst_27 = arith.constant 2.50000024 : f32
    %97 = vector.broadcast %cst_27 : f32 to vector<8x16xf32>
    %98 = arith.mulf %96, %97 : vector<8x16xf32>
    %99 = arith.mulf %98, %60 : vector<8x16xf32>
    %100 = arith.addf %94, %99 : vector<8x16xf32>
    %cst_28 = arith.constant -1.000000e+00 : f32
    %101 = vector.broadcast %cst_28 : f32 to vector<8x16xf32>
    %102 = arith.subf %0, %101 : vector<8x16xf32>
    %cst_29 = arith.constant 2.50000024 : f32
    %103 = vector.broadcast %cst_29 : f32 to vector<8x16xf32>
    %104 = arith.mulf %102, %103 : vector<8x16xf32>
    %105 = arith.mulf %104, %60 : vector<8x16xf32>
    %cst_30 = arith.constant -0.199999988 : f32
    %106 = vector.broadcast %cst_30 : f32 to vector<8x16xf32>
    %107 = arith.subf %106, %0 : vector<8x16xf32>
    %cst_31 = arith.constant 2.49999976 : f32
    %108 = vector.broadcast %cst_31 : f32 to vector<8x16xf32>
    %109 = arith.mulf %107, %108 : vector<8x16xf32>
    %110 = arith.mulf %109, %61 : vector<8x16xf32>
    %111 = arith.addf %105, %110 : vector<8x16xf32>
    %cst_32 = arith.constant -6.000000e-01 : f32
    %112 = vector.broadcast %cst_32 : f32 to vector<8x16xf32>
    %113 = arith.subf %0, %112 : vector<8x16xf32>
    %cst_33 = arith.constant 2.49999976 : f32
    %114 = vector.broadcast %cst_33 : f32 to vector<8x16xf32>
    %115 = arith.mulf %113, %114 : vector<8x16xf32>
    %116 = arith.mulf %115, %61 : vector<8x16xf32>
    %cst_34 = arith.constant 0.200000048 : f32
    %117 = vector.broadcast %cst_34 : f32 to vector<8x16xf32>
    %118 = arith.subf %117, %0 : vector<8x16xf32>
    %cst_35 = arith.constant 2.49999976 : f32
    %119 = vector.broadcast %cst_35 : f32 to vector<8x16xf32>
    %120 = arith.mulf %118, %119 : vector<8x16xf32>
    %121 = arith.mulf %120, %62 : vector<8x16xf32>
    %122 = arith.addf %116, %121 : vector<8x16xf32>
    %cst_36 = arith.constant -0.199999988 : f32
    %123 = vector.broadcast %cst_36 : f32 to vector<8x16xf32>
    %124 = arith.subf %0, %123 : vector<8x16xf32>
    %cst_37 = arith.constant 2.49999976 : f32
    %125 = vector.broadcast %cst_37 : f32 to vector<8x16xf32>
    %126 = arith.mulf %124, %125 : vector<8x16xf32>
    %127 = arith.mulf %126, %62 : vector<8x16xf32>
    %cst_38 = arith.constant 6.000000e-01 : f32
    %128 = vector.broadcast %cst_38 : f32 to vector<8x16xf32>
    %129 = arith.subf %128, %0 : vector<8x16xf32>
    %cst_39 = arith.constant 2.50000024 : f32
    %130 = vector.broadcast %cst_39 : f32 to vector<8x16xf32>
    %131 = arith.mulf %129, %130 : vector<8x16xf32>
    %132 = arith.mulf %131, %63 : vector<8x16xf32>
    %133 = arith.addf %127, %132 : vector<8x16xf32>
    %cst_40 = arith.constant 0.200000048 : f32
    %134 = vector.broadcast %cst_40 : f32 to vector<8x16xf32>
    %135 = arith.subf %0, %134 : vector<8x16xf32>
    %cst_41 = arith.constant 2.50000024 : f32
    %136 = vector.broadcast %cst_41 : f32 to vector<8x16xf32>
    %137 = arith.mulf %135, %136 : vector<8x16xf32>
    %138 = arith.mulf %137, %63 : vector<8x16xf32>
    %cst_42 = arith.constant 1.000000e+00 : f32
    %139 = vector.broadcast %cst_42 : f32 to vector<8x16xf32>
    %140 = arith.subf %139, %0 : vector<8x16xf32>
    %cst_43 = arith.constant 2.50000024 : f32
    %141 = vector.broadcast %cst_43 : f32 to vector<8x16xf32>
    %142 = arith.mulf %140, %141 : vector<8x16xf32>
    %143 = arith.mulf %142, %64 : vector<8x16xf32>
    %144 = arith.addf %138, %143 : vector<8x16xf32>
    %cst_44 = arith.constant 6.000000e-01 : f32
    %145 = vector.broadcast %cst_44 : f32 to vector<8x16xf32>
    %146 = arith.subf %0, %145 : vector<8x16xf32>
    %cst_45 = arith.constant 2.50000024 : f32
    %147 = vector.broadcast %cst_45 : f32 to vector<8x16xf32>
    %148 = arith.mulf %146, %147 : vector<8x16xf32>
    %149 = arith.mulf %148, %64 : vector<8x16xf32>
    %cst_46 = arith.constant 1.4000001 : f32
    %150 = vector.broadcast %cst_46 : f32 to vector<8x16xf32>
    %151 = arith.subf %150, %0 : vector<8x16xf32>
    %cst_47 = arith.constant 2.49999952 : f32
    %152 = vector.broadcast %cst_47 : f32 to vector<8x16xf32>
    %153 = arith.mulf %151, %152 : vector<8x16xf32>
    %154 = arith.mulf %153, %65 : vector<8x16xf32>
    %155 = arith.addf %149, %154 : vector<8x16xf32>
    %cst_48 = arith.constant 1.000000e+00 : f32
    %156 = vector.broadcast %cst_48 : f32 to vector<8x16xf32>
    %157 = arith.subf %0, %156 : vector<8x16xf32>
    %cst_49 = arith.constant 2.49999952 : f32
    %158 = vector.broadcast %cst_49 : f32 to vector<8x16xf32>
    %159 = arith.mulf %157, %158 : vector<8x16xf32>
    %160 = arith.mulf %159, %65 : vector<8x16xf32>
    %cst_50 = arith.constant 1.800000e+00 : f32
    %161 = vector.broadcast %cst_50 : f32 to vector<8x16xf32>
    %162 = arith.subf %161, %0 : vector<8x16xf32>
    %cst_51 = arith.constant 2.50000095 : f32
    %163 = vector.broadcast %cst_51 : f32 to vector<8x16xf32>
    %164 = arith.mulf %162, %163 : vector<8x16xf32>
    %165 = arith.mulf %164, %66 : vector<8x16xf32>
    %166 = arith.addf %160, %165 : vector<8x16xf32>
    %cst_52 = arith.constant 1.4000001 : f32
    %167 = vector.broadcast %cst_52 : f32 to vector<8x16xf32>
    %168 = arith.subf %0, %167 : vector<8x16xf32>
    %cst_53 = arith.constant 2.50000095 : f32
    %169 = vector.broadcast %cst_53 : f32 to vector<8x16xf32>
    %170 = arith.mulf %168, %169 : vector<8x16xf32>
    %171 = arith.mulf %170, %66 : vector<8x16xf32>
    %cst_54 = arith.constant 2.200000e+00 : f32
    %172 = vector.broadcast %cst_54 : f32 to vector<8x16xf32>
    %173 = arith.subf %172, %0 : vector<8x16xf32>
    %cst_55 = arith.constant 2.49999952 : f32
    %174 = vector.broadcast %cst_55 : f32 to vector<8x16xf32>
    %175 = arith.mulf %173, %174 : vector<8x16xf32>
    %176 = arith.mulf %175, %67 : vector<8x16xf32>
    %177 = arith.addf %171, %176 : vector<8x16xf32>
    %cst_56 = arith.constant -2.200000e+00 : f32
    %178 = vector.broadcast %cst_56 : f32 to vector<8x16xf32>
    %179 = arith.subf %0, %178 : vector<8x16xf32>
    %cst_57 = arith.constant 1.24999988 : f32
    %180 = vector.broadcast %cst_57 : f32 to vector<8x16xf32>
    %181 = arith.mulf %179, %180 : vector<8x16xf32>
    %182 = arith.mulf %181, %78 : vector<8x16xf32>
    %cst_58 = arith.constant -1.000000e+00 : f32
    %183 = vector.broadcast %cst_58 : f32 to vector<8x16xf32>
    %184 = arith.subf %183, %0 : vector<8x16xf32>
    %cst_59 = arith.constant 1.25000012 : f32
    %185 = vector.broadcast %cst_59 : f32 to vector<8x16xf32>
    %186 = arith.mulf %184, %185 : vector<8x16xf32>
    %187 = arith.mulf %186, %89 : vector<8x16xf32>
    %188 = arith.addf %182, %187 : vector<8x16xf32>
    %cst_60 = arith.constant -1.800000e+00 : f32
    %189 = vector.broadcast %cst_60 : f32 to vector<8x16xf32>
    %190 = arith.subf %0, %189 : vector<8x16xf32>
    %cst_61 = arith.constant 1.25000012 : f32
    %191 = vector.broadcast %cst_61 : f32 to vector<8x16xf32>
    %192 = arith.mulf %190, %191 : vector<8x16xf32>
    %193 = arith.mulf %192, %89 : vector<8x16xf32>
    %cst_62 = arith.constant -6.000000e-01 : f32
    %194 = vector.broadcast %cst_62 : f32 to vector<8x16xf32>
    %195 = arith.subf %194, %0 : vector<8x16xf32>
    %cst_63 = arith.constant 1.25000012 : f32
    %196 = vector.broadcast %cst_63 : f32 to vector<8x16xf32>
    %197 = arith.mulf %195, %196 : vector<8x16xf32>
    %198 = arith.mulf %197, %100 : vector<8x16xf32>
    %199 = arith.addf %193, %198 : vector<8x16xf32>
    %cst_64 = arith.constant -1.400000e+00 : f32
    %200 = vector.broadcast %cst_64 : f32 to vector<8x16xf32>
    %201 = arith.subf %0, %200 : vector<8x16xf32>
    %cst_65 = arith.constant 1.25000012 : f32
    %202 = vector.broadcast %cst_65 : f32 to vector<8x16xf32>
    %203 = arith.mulf %201, %202 : vector<8x16xf32>
    %204 = arith.mulf %203, %100 : vector<8x16xf32>
    %cst_66 = arith.constant -0.199999988 : f32
    %205 = vector.broadcast %cst_66 : f32 to vector<8x16xf32>
    %206 = arith.subf %205, %0 : vector<8x16xf32>
    %cst_67 = arith.constant 1.250000e+00 : f32
    %207 = vector.broadcast %cst_67 : f32 to vector<8x16xf32>
    %208 = arith.mulf %206, %207 : vector<8x16xf32>
    %209 = arith.mulf %208, %111 : vector<8x16xf32>
    %210 = arith.addf %204, %209 : vector<8x16xf32>
    %cst_68 = arith.constant -1.000000e+00 : f32
    %211 = vector.broadcast %cst_68 : f32 to vector<8x16xf32>
    %212 = arith.subf %0, %211 : vector<8x16xf32>
    %cst_69 = arith.constant 1.250000e+00 : f32
    %213 = vector.broadcast %cst_69 : f32 to vector<8x16xf32>
    %214 = arith.mulf %212, %213 : vector<8x16xf32>
    %215 = arith.mulf %214, %111 : vector<8x16xf32>
    %cst_70 = arith.constant 0.200000048 : f32
    %216 = vector.broadcast %cst_70 : f32 to vector<8x16xf32>
    %217 = arith.subf %216, %0 : vector<8x16xf32>
    %cst_71 = arith.constant 1.24999988 : f32
    %218 = vector.broadcast %cst_71 : f32 to vector<8x16xf32>
    %219 = arith.mulf %217, %218 : vector<8x16xf32>
    %220 = arith.mulf %219, %122 : vector<8x16xf32>
    %221 = arith.addf %215, %220 : vector<8x16xf32>
    %cst_72 = arith.constant -6.000000e-01 : f32
    %222 = vector.broadcast %cst_72 : f32 to vector<8x16xf32>
    %223 = arith.subf %0, %222 : vector<8x16xf32>
    %cst_73 = arith.constant 1.24999988 : f32
    %224 = vector.broadcast %cst_73 : f32 to vector<8x16xf32>
    %225 = arith.mulf %223, %224 : vector<8x16xf32>
    %226 = arith.mulf %225, %122 : vector<8x16xf32>
    %cst_74 = arith.constant 6.000000e-01 : f32
    %227 = vector.broadcast %cst_74 : f32 to vector<8x16xf32>
    %228 = arith.subf %227, %0 : vector<8x16xf32>
    %cst_75 = arith.constant 1.250000e+00 : f32
    %229 = vector.broadcast %cst_75 : f32 to vector<8x16xf32>
    %230 = arith.mulf %228, %229 : vector<8x16xf32>
    %231 = arith.mulf %230, %133 : vector<8x16xf32>
    %232 = arith.addf %226, %231 : vector<8x16xf32>
    %cst_76 = arith.constant -0.199999988 : f32
    %233 = vector.broadcast %cst_76 : f32 to vector<8x16xf32>
    %234 = arith.subf %0, %233 : vector<8x16xf32>
    %cst_77 = arith.constant 1.250000e+00 : f32
    %235 = vector.broadcast %cst_77 : f32 to vector<8x16xf32>
    %236 = arith.mulf %234, %235 : vector<8x16xf32>
    %237 = arith.mulf %236, %133 : vector<8x16xf32>
    %cst_78 = arith.constant 1.000000e+00 : f32
    %238 = vector.broadcast %cst_78 : f32 to vector<8x16xf32>
    %239 = arith.subf %238, %0 : vector<8x16xf32>
    %cst_79 = arith.constant 1.25000012 : f32
    %240 = vector.broadcast %cst_79 : f32 to vector<8x16xf32>
    %241 = arith.mulf %239, %240 : vector<8x16xf32>
    %242 = arith.mulf %241, %144 : vector<8x16xf32>
    %243 = arith.addf %237, %242 : vector<8x16xf32>
    %cst_80 = arith.constant 0.200000048 : f32
    %244 = vector.broadcast %cst_80 : f32 to vector<8x16xf32>
    %245 = arith.subf %0, %244 : vector<8x16xf32>
    %cst_81 = arith.constant 1.25000012 : f32
    %246 = vector.broadcast %cst_81 : f32 to vector<8x16xf32>
    %247 = arith.mulf %245, %246 : vector<8x16xf32>
    %248 = arith.mulf %247, %144 : vector<8x16xf32>
    %cst_82 = arith.constant 1.4000001 : f32
    %249 = vector.broadcast %cst_82 : f32 to vector<8x16xf32>
    %250 = arith.subf %249, %0 : vector<8x16xf32>
    %cst_83 = arith.constant 1.24999988 : f32
    %251 = vector.broadcast %cst_83 : f32 to vector<8x16xf32>
    %252 = arith.mulf %250, %251 : vector<8x16xf32>
    %253 = arith.mulf %252, %155 : vector<8x16xf32>
    %254 = arith.addf %248, %253 : vector<8x16xf32>
    %cst_84 = arith.constant 6.000000e-01 : f32
    %255 = vector.broadcast %cst_84 : f32 to vector<8x16xf32>
    %256 = arith.subf %0, %255 : vector<8x16xf32>
    %cst_85 = arith.constant 1.24999988 : f32
    %257 = vector.broadcast %cst_85 : f32 to vector<8x16xf32>
    %258 = arith.mulf %256, %257 : vector<8x16xf32>
    %259 = arith.mulf %258, %155 : vector<8x16xf32>
    %cst_86 = arith.constant 1.800000e+00 : f32
    %260 = vector.broadcast %cst_86 : f32 to vector<8x16xf32>
    %261 = arith.subf %260, %0 : vector<8x16xf32>
    %cst_87 = arith.constant 1.25000012 : f32
    %262 = vector.broadcast %cst_87 : f32 to vector<8x16xf32>
    %263 = arith.mulf %261, %262 : vector<8x16xf32>
    %264 = arith.mulf %263, %166 : vector<8x16xf32>
    %265 = arith.addf %259, %264 : vector<8x16xf32>
    %cst_88 = arith.constant 1.000000e+00 : f32
    %266 = vector.broadcast %cst_88 : f32 to vector<8x16xf32>
    %267 = arith.subf %0, %266 : vector<8x16xf32>
    %cst_89 = arith.constant 1.25000012 : f32
    %268 = vector.broadcast %cst_89 : f32 to vector<8x16xf32>
    %269 = arith.mulf %267, %268 : vector<8x16xf32>
    %270 = arith.mulf %269, %166 : vector<8x16xf32>
    %cst_90 = arith.constant 2.200000e+00 : f32
    %271 = vector.broadcast %cst_90 : f32 to vector<8x16xf32>
    %272 = arith.subf %271, %0 : vector<8x16xf32>
    %cst_91 = arith.constant 1.25000012 : f32
    %273 = vector.broadcast %cst_91 : f32 to vector<8x16xf32>
    %274 = arith.mulf %272, %273 : vector<8x16xf32>
    %275 = arith.mulf %274, %177 : vector<8x16xf32>
    %276 = arith.addf %270, %275 : vector<8x16xf32>
    %cst_92 = arith.constant -2.200000e+00 : f32
    %277 = vector.broadcast %cst_92 : f32 to vector<8x16xf32>
    %278 = arith.subf %0, %277 : vector<8x16xf32>
    %cst_93 = arith.constant 0.833333313 : f32
    %279 = vector.broadcast %cst_93 : f32 to vector<8x16xf32>
    %280 = arith.mulf %278, %279 : vector<8x16xf32>
    %281 = arith.mulf %280, %188 : vector<8x16xf32>
    %cst_94 = arith.constant -6.000000e-01 : f32
    %282 = vector.broadcast %cst_94 : f32 to vector<8x16xf32>
    %283 = arith.subf %282, %0 : vector<8x16xf32>
    %cst_95 = arith.constant 0.833333373 : f32
    %284 = vector.broadcast %cst_95 : f32 to vector<8x16xf32>
    %285 = arith.mulf %283, %284 : vector<8x16xf32>
    %286 = arith.mulf %285, %199 : vector<8x16xf32>
    %287 = arith.addf %281, %286 : vector<8x16xf32>
    %cst_96 = arith.constant -1.800000e+00 : f32
    %288 = vector.broadcast %cst_96 : f32 to vector<8x16xf32>
    %289 = arith.subf %0, %288 : vector<8x16xf32>
    %cst_97 = arith.constant 0.833333373 : f32
    %290 = vector.broadcast %cst_97 : f32 to vector<8x16xf32>
    %291 = arith.mulf %289, %290 : vector<8x16xf32>
    %292 = arith.mulf %291, %199 : vector<8x16xf32>
    %cst_98 = arith.constant -0.199999988 : f32
    %293 = vector.broadcast %cst_98 : f32 to vector<8x16xf32>
    %294 = arith.subf %293, %0 : vector<8x16xf32>
    %cst_99 = arith.constant 0.833333313 : f32
    %295 = vector.broadcast %cst_99 : f32 to vector<8x16xf32>
    %296 = arith.mulf %294, %295 : vector<8x16xf32>
    %297 = arith.mulf %296, %210 : vector<8x16xf32>
    %298 = arith.addf %292, %297 : vector<8x16xf32>
    %cst_100 = arith.constant -1.400000e+00 : f32
    %299 = vector.broadcast %cst_100 : f32 to vector<8x16xf32>
    %300 = arith.subf %0, %299 : vector<8x16xf32>
    %cst_101 = arith.constant 0.833333313 : f32
    %301 = vector.broadcast %cst_101 : f32 to vector<8x16xf32>
    %302 = arith.mulf %300, %301 : vector<8x16xf32>
    %303 = arith.mulf %302, %210 : vector<8x16xf32>
    %cst_102 = arith.constant 0.200000048 : f32
    %304 = vector.broadcast %cst_102 : f32 to vector<8x16xf32>
    %305 = arith.subf %304, %0 : vector<8x16xf32>
    %cst_103 = arith.constant 0.833333313 : f32
    %306 = vector.broadcast %cst_103 : f32 to vector<8x16xf32>
    %307 = arith.mulf %305, %306 : vector<8x16xf32>
    %308 = arith.mulf %307, %221 : vector<8x16xf32>
    %309 = arith.addf %303, %308 : vector<8x16xf32>
    %cst_104 = arith.constant -1.000000e+00 : f32
    %310 = vector.broadcast %cst_104 : f32 to vector<8x16xf32>
    %311 = arith.subf %0, %310 : vector<8x16xf32>
    %cst_105 = arith.constant 0.833333313 : f32
    %312 = vector.broadcast %cst_105 : f32 to vector<8x16xf32>
    %313 = arith.mulf %311, %312 : vector<8x16xf32>
    %314 = arith.mulf %313, %221 : vector<8x16xf32>
    %cst_106 = arith.constant 6.000000e-01 : f32
    %315 = vector.broadcast %cst_106 : f32 to vector<8x16xf32>
    %316 = arith.subf %315, %0 : vector<8x16xf32>
    %cst_107 = arith.constant 0.833333313 : f32
    %317 = vector.broadcast %cst_107 : f32 to vector<8x16xf32>
    %318 = arith.mulf %316, %317 : vector<8x16xf32>
    %319 = arith.mulf %318, %232 : vector<8x16xf32>
    %320 = arith.addf %314, %319 : vector<8x16xf32>
    %cst_108 = arith.constant -6.000000e-01 : f32
    %321 = vector.broadcast %cst_108 : f32 to vector<8x16xf32>
    %322 = arith.subf %0, %321 : vector<8x16xf32>
    %cst_109 = arith.constant 0.833333313 : f32
    %323 = vector.broadcast %cst_109 : f32 to vector<8x16xf32>
    %324 = arith.mulf %322, %323 : vector<8x16xf32>
    %325 = arith.mulf %324, %232 : vector<8x16xf32>
    %cst_110 = arith.constant 1.000000e+00 : f32
    %326 = vector.broadcast %cst_110 : f32 to vector<8x16xf32>
    %327 = arith.subf %326, %0 : vector<8x16xf32>
    %cst_111 = arith.constant 0.833333313 : f32
    %328 = vector.broadcast %cst_111 : f32 to vector<8x16xf32>
    %329 = arith.mulf %327, %328 : vector<8x16xf32>
    %330 = arith.mulf %329, %243 : vector<8x16xf32>
    %331 = arith.addf %325, %330 : vector<8x16xf32>
    %cst_112 = arith.constant -0.199999988 : f32
    %332 = vector.broadcast %cst_112 : f32 to vector<8x16xf32>
    %333 = arith.subf %0, %332 : vector<8x16xf32>
    %cst_113 = arith.constant 0.833333313 : f32
    %334 = vector.broadcast %cst_113 : f32 to vector<8x16xf32>
    %335 = arith.mulf %333, %334 : vector<8x16xf32>
    %336 = arith.mulf %335, %243 : vector<8x16xf32>
    %cst_114 = arith.constant 1.4000001 : f32
    %337 = vector.broadcast %cst_114 : f32 to vector<8x16xf32>
    %338 = arith.subf %337, %0 : vector<8x16xf32>
    %cst_115 = arith.constant 0.833333313 : f32
    %339 = vector.broadcast %cst_115 : f32 to vector<8x16xf32>
    %340 = arith.mulf %338, %339 : vector<8x16xf32>
    %341 = arith.mulf %340, %254 : vector<8x16xf32>
    %342 = arith.addf %336, %341 : vector<8x16xf32>
    %cst_116 = arith.constant 0.200000048 : f32
    %343 = vector.broadcast %cst_116 : f32 to vector<8x16xf32>
    %344 = arith.subf %0, %343 : vector<8x16xf32>
    %cst_117 = arith.constant 0.833333313 : f32
    %345 = vector.broadcast %cst_117 : f32 to vector<8x16xf32>
    %346 = arith.mulf %344, %345 : vector<8x16xf32>
    %347 = arith.mulf %346, %254 : vector<8x16xf32>
    %cst_118 = arith.constant 1.800000e+00 : f32
    %348 = vector.broadcast %cst_118 : f32 to vector<8x16xf32>
    %349 = arith.subf %348, %0 : vector<8x16xf32>
    %cst_119 = arith.constant 0.833333373 : f32
    %350 = vector.broadcast %cst_119 : f32 to vector<8x16xf32>
    %351 = arith.mulf %349, %350 : vector<8x16xf32>
    %352 = arith.mulf %351, %265 : vector<8x16xf32>
    %353 = arith.addf %347, %352 : vector<8x16xf32>
    %cst_120 = arith.constant 6.000000e-01 : f32
    %354 = vector.broadcast %cst_120 : f32 to vector<8x16xf32>
    %355 = arith.subf %0, %354 : vector<8x16xf32>
    %cst_121 = arith.constant 0.833333373 : f32
    %356 = vector.broadcast %cst_121 : f32 to vector<8x16xf32>
    %357 = arith.mulf %355, %356 : vector<8x16xf32>
    %358 = arith.mulf %357, %265 : vector<8x16xf32>
    %cst_122 = arith.constant 2.200000e+00 : f32
    %359 = vector.broadcast %cst_122 : f32 to vector<8x16xf32>
    %360 = arith.subf %359, %0 : vector<8x16xf32>
    %cst_123 = arith.constant 0.833333313 : f32
    %361 = vector.broadcast %cst_123 : f32 to vector<8x16xf32>
    %362 = arith.mulf %360, %361 : vector<8x16xf32>
    %363 = arith.mulf %362, %276 : vector<8x16xf32>
    %364 = arith.addf %358, %363 : vector<8x16xf32>
    %365 = tpu.concatenate %287, %298, %309, %320, %331, %342, %353, %364 in 1 : vector<8x16xf32>, vector<8x16xf32>, vector<8x16xf32>, vector<8x16xf32>, vector<8x16xf32>, vector<8x16xf32>, vector<8x16xf32>, vector<8x16xf32> -> vector<8x128xf32>
    %c0_124 = arith.constant 0 : index
    %c0_125 = arith.constant 0 : index
    %366 = vector.load %arg3[%c0_124, %c0_125] : memref<128x64xf32, #tpu.memory_space<vmem>>, vector<128x64xf32>
    %cst_126 = arith.constant dense<0.000000e+00> : vector<8x64xf32>
    %367 = tpu.matmul %365, %366, %cst_126 {dimension_numbers = #tpu.dot_dimension_numbers<[1], [0], [0], [1], [0, 0, 1, 1], [], []>} : vector<8x128xf32>, vector<128x64xf32>, vector<8x64xf32> -> vector<8x64xf32>
    %368 = arith.addf %8, %367 : vector<8x64xf32>
    %cst_127 = arith.constant dense<0.000000e+00> : vector<8xf32>
    %369 = vector.multi_reduction <add>, %368, %cst_127 [1] : vector<8x64xf32> to vector<8xf32>
    %370 = vector.shape_cast %369 : vector<8xf32> to vector<8x1xf32>
    %cst_128 = arith.constant 6.400000e+01 : f32
    %371 = vector.broadcast %cst_128 : f32 to vector<8x1xf32>
    %372 = arith.divf %370, %371 : vector<8x1xf32>
    %373 = vector.broadcast %372 : vector<8x1xf32> to vector<8x64xf32>
    %374 = arith.subf %368, %373 : vector<8x64xf32>
    %375 = arith.mulf %374, %374 : vector<8x64xf32>
    %cst_129 = arith.constant dense<0.000000e+00> : vector<8xf32>
    %376 = vector.multi_reduction <add>, %375, %cst_129 [1] : vector<8x64xf32> to vector<8xf32>
    %377 = vector.shape_cast %376 : vector<8xf32> to vector<8x1xf32>
    %cst_130 = arith.constant 6.400000e+01 : f32
    %378 = vector.broadcast %cst_130 : f32 to vector<8x1xf32>
    %379 = arith.divf %377, %378 : vector<8x1xf32>
    %380 = vector.broadcast %372 : vector<8x1xf32> to vector<8x64xf32>
    %381 = arith.subf %368, %380 : vector<8x64xf32>
    %cst_131 = arith.constant 9.99999974E-6 : f32
    %382 = vector.broadcast %cst_131 : f32 to vector<8x1xf32>
    %383 = arith.addf %379, %382 : vector<8x1xf32>
    %384 = math.rsqrt %383 : vector<8x1xf32>
    %385 = vector.broadcast %384 : vector<8x1xf32> to vector<8x64xf32>
    %386 = arith.mulf %381, %385 : vector<8x64xf32>
    %c0_132 = arith.constant 0 : index
    %c0_133 = arith.constant 0 : index
    %387 = vector.load %arg4[%c0_132, %c0_133] : memref<1x64xf32, #tpu.memory_space<vmem>>, vector<1x64xf32>
    %388 = vector.broadcast %387 : vector<1x64xf32> to vector<8x64xf32>
    %389 = arith.mulf %386, %388 : vector<8x64xf32>
    %c0_134 = arith.constant 0 : index
    %c0_135 = arith.constant 0 : index
    %390 = vector.load %arg5[%c0_134, %c0_135] : memref<1x64xf32, #tpu.memory_space<vmem>>, vector<1x64xf32>
    %391 = vector.broadcast %390 : vector<1x64xf32> to vector<8x64xf32>
    %392 = arith.addf %389, %391 : vector<8x64xf32>
    %393 = arith.negf %392 : vector<8x64xf32>
    %394 = math.exp %393 : vector<8x64xf32>
    %cst_136 = arith.constant 1.000000e+00 : f32
    %395 = vector.broadcast %cst_136 : f32 to vector<8x64xf32>
    %396 = arith.addf %395, %394 : vector<8x64xf32>
    %397 = arith.divf %395, %396 : vector<8x64xf32>
    %398 = arith.mulf %392, %397 : vector<8x64xf32>
    %c0_137 = arith.constant 0 : index
    %c0_138 = arith.constant 0 : index
    %399 = vector.load %arg6[%c0_137, %c0_138] : memref<64x32xf32, #tpu.memory_space<vmem>>, vector<64x32xf32>
    %cst_139 = arith.constant dense<0.000000e+00> : vector<8x32xf32>
    %400 = tpu.matmul %398, %399, %cst_139 {dimension_numbers = #tpu.dot_dimension_numbers<[1], [0], [0], [1], [0, 0, 1, 1], [], []>} : vector<8x64xf32>, vector<64x32xf32>, vector<8x32xf32> -> vector<8x32xf32>
    %cst_140 = arith.constant -2.200000e+00 : f32
    %401 = vector.broadcast %cst_140 : f32 to vector<8x64xf32>
    %402 = arith.cmpf oge, %392, %401 : vector<8x64xf32>
    %403 = arith.extui %402 : vector<8x64xi1> to vector<8x64xi32>
    %404 = arith.sitofp %403 : vector<8x64xi32> to vector<8x64xf32>
    %cst_141 = arith.constant -1.800000e+00 : f32
    %405 = vector.broadcast %cst_141 : f32 to vector<8x64xf32>
    %406 = arith.cmpf oge, %392, %405 : vector<8x64xf32>
    %407 = arith.extui %406 : vector<8x64xi1> to vector<8x64xi32>
    %408 = arith.sitofp %407 : vector<8x64xi32> to vector<8x64xf32>
    %cst_142 = arith.constant -1.400000e+00 : f32
    %409 = vector.broadcast %cst_142 : f32 to vector<8x64xf32>
    %410 = arith.cmpf oge, %392, %409 : vector<8x64xf32>
    %411 = arith.extui %410 : vector<8x64xi1> to vector<8x64xi32>
    %412 = arith.sitofp %411 : vector<8x64xi32> to vector<8x64xf32>
    %cst_143 = arith.constant -1.000000e+00 : f32
    %413 = vector.broadcast %cst_143 : f32 to vector<8x64xf32>
    %414 = arith.cmpf oge, %392, %413 : vector<8x64xf32>
    %415 = arith.extui %414 : vector<8x64xi1> to vector<8x64xi32>
    %416 = arith.sitofp %415 : vector<8x64xi32> to vector<8x64xf32>
    %cst_144 = arith.constant -6.000000e-01 : f32
    %417 = vector.broadcast %cst_144 : f32 to vector<8x64xf32>
    %418 = arith.cmpf oge, %392, %417 : vector<8x64xf32>
    %419 = arith.extui %418 : vector<8x64xi1> to vector<8x64xi32>
    %420 = arith.sitofp %419 : vector<8x64xi32> to vector<8x64xf32>
    %cst_145 = arith.constant -0.199999988 : f32
    %421 = vector.broadcast %cst_145 : f32 to vector<8x64xf32>
    %422 = arith.cmpf oge, %392, %421 : vector<8x64xf32>
    %423 = arith.extui %422 : vector<8x64xi1> to vector<8x64xi32>
    %424 = arith.sitofp %423 : vector<8x64xi32> to vector<8x64xf32>
    %cst_146 = arith.constant 0.200000048 : f32
    %425 = vector.broadcast %cst_146 : f32 to vector<8x64xf32>
    %426 = arith.cmpf oge, %392, %425 : vector<8x64xf32>
    %427 = arith.extui %426 : vector<8x64xi1> to vector<8x64xi32>
    %428 = arith.sitofp %427 : vector<8x64xi32> to vector<8x64xf32>
    %cst_147 = arith.constant 6.000000e-01 : f32
    %429 = vector.broadcast %cst_147 : f32 to vector<8x64xf32>
    %430 = arith.cmpf oge, %392, %429 : vector<8x64xf32>
    %431 = arith.extui %430 : vector<8x64xi1> to vector<8x64xi32>
    %432 = arith.sitofp %431 : vector<8x64xi32> to vector<8x64xf32>
    %cst_148 = arith.constant 1.000000e+00 : f32
    %433 = vector.broadcast %cst_148 : f32 to vector<8x64xf32>
    %434 = arith.cmpf oge, %392, %433 : vector<8x64xf32>
    %435 = arith.extui %434 : vector<8x64xi1> to vector<8x64xi32>
    %436 = arith.sitofp %435 : vector<8x64xi32> to vector<8x64xf32>
    %cst_149 = arith.constant 1.4000001 : f32
    %437 = vector.broadcast %cst_149 : f32 to vector<8x64xf32>
    %438 = arith.cmpf oge, %392, %437 : vector<8x64xf32>
    %439 = arith.extui %438 : vector<8x64xi1> to vector<8x64xi32>
    %440 = arith.sitofp %439 : vector<8x64xi32> to vector<8x64xf32>
    %cst_150 = arith.constant 1.800000e+00 : f32
    %441 = vector.broadcast %cst_150 : f32 to vector<8x64xf32>
    %442 = arith.cmpf oge, %392, %441 : vector<8x64xf32>
    %443 = arith.extui %442 : vector<8x64xi1> to vector<8x64xi32>
    %444 = arith.sitofp %443 : vector<8x64xi32> to vector<8x64xf32>
    %cst_151 = arith.constant 2.200000e+00 : f32
    %445 = vector.broadcast %cst_151 : f32 to vector<8x64xf32>
    %446 = arith.cmpf oge, %392, %445 : vector<8x64xf32>
    %447 = arith.extui %446 : vector<8x64xi1> to vector<8x64xi32>
    %448 = arith.sitofp %447 : vector<8x64xi32> to vector<8x64xf32>
    %449 = arith.subf %404, %408 : vector<8x64xf32>
    %450 = arith.subf %408, %412 : vector<8x64xf32>
    %451 = arith.subf %412, %416 : vector<8x64xf32>
    %452 = arith.subf %416, %420 : vector<8x64xf32>
    %453 = arith.subf %420, %424 : vector<8x64xf32>
    %454 = arith.subf %424, %428 : vector<8x64xf32>
    %455 = arith.subf %428, %432 : vector<8x64xf32>
    %456 = arith.subf %432, %436 : vector<8x64xf32>
    %457 = arith.subf %436, %440 : vector<8x64xf32>
    %458 = arith.subf %440, %444 : vector<8x64xf32>
    %459 = arith.subf %444, %448 : vector<8x64xf32>
    %cst_152 = arith.constant -2.200000e+00 : f32
    %460 = vector.broadcast %cst_152 : f32 to vector<8x64xf32>
    %461 = arith.subf %392, %460 : vector<8x64xf32>
    %cst_153 = arith.constant 2.49999952 : f32
    %462 = vector.broadcast %cst_153 : f32 to vector<8x64xf32>
    %463 = arith.mulf %461, %462 : vector<8x64xf32>
    %464 = arith.mulf %463, %449 : vector<8x64xf32>
    %cst_154 = arith.constant -1.400000e+00 : f32
    %465 = vector.broadcast %cst_154 : f32 to vector<8x64xf32>
    %466 = arith.subf %465, %392 : vector<8x64xf32>
    %cst_155 = arith.constant 2.50000024 : f32
    %467 = vector.broadcast %cst_155 : f32 to vector<8x64xf32>
    %468 = arith.mulf %466, %467 : vector<8x64xf32>
    %469 = arith.mulf %468, %450 : vector<8x64xf32>
    %470 = arith.addf %464, %469 : vector<8x64xf32>
    %cst_156 = arith.constant -1.800000e+00 : f32
    %471 = vector.broadcast %cst_156 : f32 to vector<8x64xf32>
    %472 = arith.subf %392, %471 : vector<8x64xf32>
    %cst_157 = arith.constant 2.50000024 : f32
    %473 = vector.broadcast %cst_157 : f32 to vector<8x64xf32>
    %474 = arith.mulf %472, %473 : vector<8x64xf32>
    %475 = arith.mulf %474, %450 : vector<8x64xf32>
    %cst_158 = arith.constant -1.000000e+00 : f32
    %476 = vector.broadcast %cst_158 : f32 to vector<8x64xf32>
    %477 = arith.subf %476, %392 : vector<8x64xf32>
    %cst_159 = arith.constant 2.50000024 : f32
    %478 = vector.broadcast %cst_159 : f32 to vector<8x64xf32>
    %479 = arith.mulf %477, %478 : vector<8x64xf32>
    %480 = arith.mulf %479, %451 : vector<8x64xf32>
    %481 = arith.addf %475, %480 : vector<8x64xf32>
    %cst_160 = arith.constant -1.400000e+00 : f32
    %482 = vector.broadcast %cst_160 : f32 to vector<8x64xf32>
    %483 = arith.subf %392, %482 : vector<8x64xf32>
    %cst_161 = arith.constant 2.50000024 : f32
    %484 = vector.broadcast %cst_161 : f32 to vector<8x64xf32>
    %485 = arith.mulf %483, %484 : vector<8x64xf32>
    %486 = arith.mulf %485, %451 : vector<8x64xf32>
    %cst_162 = arith.constant -6.000000e-01 : f32
    %487 = vector.broadcast %cst_162 : f32 to vector<8x64xf32>
    %488 = arith.subf %487, %392 : vector<8x64xf32>
    %cst_163 = arith.constant 2.50000024 : f32
    %489 = vector.broadcast %cst_163 : f32 to vector<8x64xf32>
    %490 = arith.mulf %488, %489 : vector<8x64xf32>
    %491 = arith.mulf %490, %452 : vector<8x64xf32>
    %492 = arith.addf %486, %491 : vector<8x64xf32>
    %cst_164 = arith.constant -1.000000e+00 : f32
    %493 = vector.broadcast %cst_164 : f32 to vector<8x64xf32>
    %494 = arith.subf %392, %493 : vector<8x64xf32>
    %cst_165 = arith.constant 2.50000024 : f32
    %495 = vector.broadcast %cst_165 : f32 to vector<8x64xf32>
    %496 = arith.mulf %494, %495 : vector<8x64xf32>
    %497 = arith.mulf %496, %452 : vector<8x64xf32>
    %cst_166 = arith.constant -0.199999988 : f32
    %498 = vector.broadcast %cst_166 : f32 to vector<8x64xf32>
    %499 = arith.subf %498, %392 : vector<8x64xf32>
    %cst_167 = arith.constant 2.49999976 : f32
    %500 = vector.broadcast %cst_167 : f32 to vector<8x64xf32>
    %501 = arith.mulf %499, %500 : vector<8x64xf32>
    %502 = arith.mulf %501, %453 : vector<8x64xf32>
    %503 = arith.addf %497, %502 : vector<8x64xf32>
    %cst_168 = arith.constant -6.000000e-01 : f32
    %504 = vector.broadcast %cst_168 : f32 to vector<8x64xf32>
    %505 = arith.subf %392, %504 : vector<8x64xf32>
    %cst_169 = arith.constant 2.49999976 : f32
    %506 = vector.broadcast %cst_169 : f32 to vector<8x64xf32>
    %507 = arith.mulf %505, %506 : vector<8x64xf32>
    %508 = arith.mulf %507, %453 : vector<8x64xf32>
    %cst_170 = arith.constant 0.200000048 : f32
    %509 = vector.broadcast %cst_170 : f32 to vector<8x64xf32>
    %510 = arith.subf %509, %392 : vector<8x64xf32>
    %cst_171 = arith.constant 2.49999976 : f32
    %511 = vector.broadcast %cst_171 : f32 to vector<8x64xf32>
    %512 = arith.mulf %510, %511 : vector<8x64xf32>
    %513 = arith.mulf %512, %454 : vector<8x64xf32>
    %514 = arith.addf %508, %513 : vector<8x64xf32>
    %cst_172 = arith.constant -0.199999988 : f32
    %515 = vector.broadcast %cst_172 : f32 to vector<8x64xf32>
    %516 = arith.subf %392, %515 : vector<8x64xf32>
    %cst_173 = arith.constant 2.49999976 : f32
    %517 = vector.broadcast %cst_173 : f32 to vector<8x64xf32>
    %518 = arith.mulf %516, %517 : vector<8x64xf32>
    %519 = arith.mulf %518, %454 : vector<8x64xf32>
    %cst_174 = arith.constant 6.000000e-01 : f32
    %520 = vector.broadcast %cst_174 : f32 to vector<8x64xf32>
    %521 = arith.subf %520, %392 : vector<8x64xf32>
    %cst_175 = arith.constant 2.50000024 : f32
    %522 = vector.broadcast %cst_175 : f32 to vector<8x64xf32>
    %523 = arith.mulf %521, %522 : vector<8x64xf32>
    %524 = arith.mulf %523, %455 : vector<8x64xf32>
    %525 = arith.addf %519, %524 : vector<8x64xf32>
    %cst_176 = arith.constant 0.200000048 : f32
    %526 = vector.broadcast %cst_176 : f32 to vector<8x64xf32>
    %527 = arith.subf %392, %526 : vector<8x64xf32>
    %cst_177 = arith.constant 2.50000024 : f32
    %528 = vector.broadcast %cst_177 : f32 to vector<8x64xf32>
    %529 = arith.mulf %527, %528 : vector<8x64xf32>
    %530 = arith.mulf %529, %455 : vector<8x64xf32>
    %cst_178 = arith.constant 1.000000e+00 : f32
    %531 = vector.broadcast %cst_178 : f32 to vector<8x64xf32>
    %532 = arith.subf %531, %392 : vector<8x64xf32>
    %cst_179 = arith.constant 2.50000024 : f32
    %533 = vector.broadcast %cst_179 : f32 to vector<8x64xf32>
    %534 = arith.mulf %532, %533 : vector<8x64xf32>
    %535 = arith.mulf %534, %456 : vector<8x64xf32>
    %536 = arith.addf %530, %535 : vector<8x64xf32>
    %cst_180 = arith.constant 6.000000e-01 : f32
    %537 = vector.broadcast %cst_180 : f32 to vector<8x64xf32>
    %538 = arith.subf %392, %537 : vector<8x64xf32>
    %cst_181 = arith.constant 2.50000024 : f32
    %539 = vector.broadcast %cst_181 : f32 to vector<8x64xf32>
    %540 = arith.mulf %538, %539 : vector<8x64xf32>
    %541 = arith.mulf %540, %456 : vector<8x64xf32>
    %cst_182 = arith.constant 1.4000001 : f32
    %542 = vector.broadcast %cst_182 : f32 to vector<8x64xf32>
    %543 = arith.subf %542, %392 : vector<8x64xf32>
    %cst_183 = arith.constant 2.49999952 : f32
    %544 = vector.broadcast %cst_183 : f32 to vector<8x64xf32>
    %545 = arith.mulf %543, %544 : vector<8x64xf32>
    %546 = arith.mulf %545, %457 : vector<8x64xf32>
    %547 = arith.addf %541, %546 : vector<8x64xf32>
    %cst_184 = arith.constant 1.000000e+00 : f32
    %548 = vector.broadcast %cst_184 : f32 to vector<8x64xf32>
    %549 = arith.subf %392, %548 : vector<8x64xf32>
    %cst_185 = arith.constant 2.49999952 : f32
    %550 = vector.broadcast %cst_185 : f32 to vector<8x64xf32>
    %551 = arith.mulf %549, %550 : vector<8x64xf32>
    %552 = arith.mulf %551, %457 : vector<8x64xf32>
    %cst_186 = arith.constant 1.800000e+00 : f32
    %553 = vector.broadcast %cst_186 : f32 to vector<8x64xf32>
    %554 = arith.subf %553, %392 : vector<8x64xf32>
    %cst_187 = arith.constant 2.50000095 : f32
    %555 = vector.broadcast %cst_187 : f32 to vector<8x64xf32>
    %556 = arith.mulf %554, %555 : vector<8x64xf32>
    %557 = arith.mulf %556, %458 : vector<8x64xf32>
    %558 = arith.addf %552, %557 : vector<8x64xf32>
    %cst_188 = arith.constant 1.4000001 : f32
    %559 = vector.broadcast %cst_188 : f32 to vector<8x64xf32>
    %560 = arith.subf %392, %559 : vector<8x64xf32>
    %cst_189 = arith.constant 2.50000095 : f32
    %561 = vector.broadcast %cst_189 : f32 to vector<8x64xf32>
    %562 = arith.mulf %560, %561 : vector<8x64xf32>
    %563 = arith.mulf %562, %458 : vector<8x64xf32>
    %cst_190 = arith.constant 2.200000e+00 : f32
    %564 = vector.broadcast %cst_190 : f32 to vector<8x64xf32>
    %565 = arith.subf %564, %392 : vector<8x64xf32>
    %cst_191 = arith.constant 2.49999952 : f32
    %566 = vector.broadcast %cst_191 : f32 to vector<8x64xf32>
    %567 = arith.mulf %565, %566 : vector<8x64xf32>
    %568 = arith.mulf %567, %459 : vector<8x64xf32>
    %569 = arith.addf %563, %568 : vector<8x64xf32>
    %cst_192 = arith.constant -2.200000e+00 : f32
    %570 = vector.broadcast %cst_192 : f32 to vector<8x64xf32>
    %571 = arith.subf %392, %570 : vector<8x64xf32>
    %cst_193 = arith.constant 1.24999988 : f32
    %572 = vector.broadcast %cst_193 : f32 to vector<8x64xf32>
    %573 = arith.mulf %571, %572 : vector<8x64xf32>
    %574 = arith.mulf %573, %470 : vector<8x64xf32>
    %cst_194 = arith.constant -1.000000e+00 : f32
    %575 = vector.broadcast %cst_194 : f32 to vector<8x64xf32>
    %576 = arith.subf %575, %392 : vector<8x64xf32>
    %cst_195 = arith.constant 1.25000012 : f32
    %577 = vector.broadcast %cst_195 : f32 to vector<8x64xf32>
    %578 = arith.mulf %576, %577 : vector<8x64xf32>
    %579 = arith.mulf %578, %481 : vector<8x64xf32>
    %580 = arith.addf %574, %579 : vector<8x64xf32>
    %cst_196 = arith.constant -1.800000e+00 : f32
    %581 = vector.broadcast %cst_196 : f32 to vector<8x64xf32>
    %582 = arith.subf %392, %581 : vector<8x64xf32>
    %cst_197 = arith.constant 1.25000012 : f32
    %583 = vector.broadcast %cst_197 : f32 to vector<8x64xf32>
    %584 = arith.mulf %582, %583 : vector<8x64xf32>
    %585 = arith.mulf %584, %481 : vector<8x64xf32>
    %cst_198 = arith.constant -6.000000e-01 : f32
    %586 = vector.broadcast %cst_198 : f32 to vector<8x64xf32>
    %587 = arith.subf %586, %392 : vector<8x64xf32>
    %cst_199 = arith.constant 1.25000012 : f32
    %588 = vector.broadcast %cst_199 : f32 to vector<8x64xf32>
    %589 = arith.mulf %587, %588 : vector<8x64xf32>
    %590 = arith.mulf %589, %492 : vector<8x64xf32>
    %591 = arith.addf %585, %590 : vector<8x64xf32>
    %cst_200 = arith.constant -1.400000e+00 : f32
    %592 = vector.broadcast %cst_200 : f32 to vector<8x64xf32>
    %593 = arith.subf %392, %592 : vector<8x64xf32>
    %cst_201 = arith.constant 1.25000012 : f32
    %594 = vector.broadcast %cst_201 : f32 to vector<8x64xf32>
    %595 = arith.mulf %593, %594 : vector<8x64xf32>
    %596 = arith.mulf %595, %492 : vector<8x64xf32>
    %cst_202 = arith.constant -0.199999988 : f32
    %597 = vector.broadcast %cst_202 : f32 to vector<8x64xf32>
    %598 = arith.subf %597, %392 : vector<8x64xf32>
    %cst_203 = arith.constant 1.250000e+00 : f32
    %599 = vector.broadcast %cst_203 : f32 to vector<8x64xf32>
    %600 = arith.mulf %598, %599 : vector<8x64xf32>
    %601 = arith.mulf %600, %503 : vector<8x64xf32>
    %602 = arith.addf %596, %601 : vector<8x64xf32>
    %cst_204 = arith.constant -1.000000e+00 : f32
    %603 = vector.broadcast %cst_204 : f32 to vector<8x64xf32>
    %604 = arith.subf %392, %603 : vector<8x64xf32>
    %cst_205 = arith.constant 1.250000e+00 : f32
    %605 = vector.broadcast %cst_205 : f32 to vector<8x64xf32>
    %606 = arith.mulf %604, %605 : vector<8x64xf32>
    %607 = arith.mulf %606, %503 : vector<8x64xf32>
    %cst_206 = arith.constant 0.200000048 : f32
    %608 = vector.broadcast %cst_206 : f32 to vector<8x64xf32>
    %609 = arith.subf %608, %392 : vector<8x64xf32>
    %cst_207 = arith.constant 1.24999988 : f32
    %610 = vector.broadcast %cst_207 : f32 to vector<8x64xf32>
    %611 = arith.mulf %609, %610 : vector<8x64xf32>
    %612 = arith.mulf %611, %514 : vector<8x64xf32>
    %613 = arith.addf %607, %612 : vector<8x64xf32>
    %cst_208 = arith.constant -6.000000e-01 : f32
    %614 = vector.broadcast %cst_208 : f32 to vector<8x64xf32>
    %615 = arith.subf %392, %614 : vector<8x64xf32>
    %cst_209 = arith.constant 1.24999988 : f32
    %616 = vector.broadcast %cst_209 : f32 to vector<8x64xf32>
    %617 = arith.mulf %615, %616 : vector<8x64xf32>
    %618 = arith.mulf %617, %514 : vector<8x64xf32>
    %cst_210 = arith.constant 6.000000e-01 : f32
    %619 = vector.broadcast %cst_210 : f32 to vector<8x64xf32>
    %620 = arith.subf %619, %392 : vector<8x64xf32>
    %cst_211 = arith.constant 1.250000e+00 : f32
    %621 = vector.broadcast %cst_211 : f32 to vector<8x64xf32>
    %622 = arith.mulf %620, %621 : vector<8x64xf32>
    %623 = arith.mulf %622, %525 : vector<8x64xf32>
    %624 = arith.addf %618, %623 : vector<8x64xf32>
    %cst_212 = arith.constant -0.199999988 : f32
    %625 = vector.broadcast %cst_212 : f32 to vector<8x64xf32>
    %626 = arith.subf %392, %625 : vector<8x64xf32>
    %cst_213 = arith.constant 1.250000e+00 : f32
    %627 = vector.broadcast %cst_213 : f32 to vector<8x64xf32>
    %628 = arith.mulf %626, %627 : vector<8x64xf32>
    %629 = arith.mulf %628, %525 : vector<8x64xf32>
    %cst_214 = arith.constant 1.000000e+00 : f32
    %630 = vector.broadcast %cst_214 : f32 to vector<8x64xf32>
    %631 = arith.subf %630, %392 : vector<8x64xf32>
    %cst_215 = arith.constant 1.25000012 : f32
    %632 = vector.broadcast %cst_215 : f32 to vector<8x64xf32>
    %633 = arith.mulf %631, %632 : vector<8x64xf32>
    %634 = arith.mulf %633, %536 : vector<8x64xf32>
    %635 = arith.addf %629, %634 : vector<8x64xf32>
    %cst_216 = arith.constant 0.200000048 : f32
    %636 = vector.broadcast %cst_216 : f32 to vector<8x64xf32>
    %637 = arith.subf %392, %636 : vector<8x64xf32>
    %cst_217 = arith.constant 1.25000012 : f32
    %638 = vector.broadcast %cst_217 : f32 to vector<8x64xf32>
    %639 = arith.mulf %637, %638 : vector<8x64xf32>
    %640 = arith.mulf %639, %536 : vector<8x64xf32>
    %cst_218 = arith.constant 1.4000001 : f32
    %641 = vector.broadcast %cst_218 : f32 to vector<8x64xf32>
    %642 = arith.subf %641, %392 : vector<8x64xf32>
    %cst_219 = arith.constant 1.24999988 : f32
    %643 = vector.broadcast %cst_219 : f32 to vector<8x64xf32>
    %644 = arith.mulf %642, %643 : vector<8x64xf32>
    %645 = arith.mulf %644, %547 : vector<8x64xf32>
    %646 = arith.addf %640, %645 : vector<8x64xf32>
    %cst_220 = arith.constant 6.000000e-01 : f32
    %647 = vector.broadcast %cst_220 : f32 to vector<8x64xf32>
    %648 = arith.subf %392, %647 : vector<8x64xf32>
    %cst_221 = arith.constant 1.24999988 : f32
    %649 = vector.broadcast %cst_221 : f32 to vector<8x64xf32>
    %650 = arith.mulf %648, %649 : vector<8x64xf32>
    %651 = arith.mulf %650, %547 : vector<8x64xf32>
    %cst_222 = arith.constant 1.800000e+00 : f32
    %652 = vector.broadcast %cst_222 : f32 to vector<8x64xf32>
    %653 = arith.subf %652, %392 : vector<8x64xf32>
    %cst_223 = arith.constant 1.25000012 : f32
    %654 = vector.broadcast %cst_223 : f32 to vector<8x64xf32>
    %655 = arith.mulf %653, %654 : vector<8x64xf32>
    %656 = arith.mulf %655, %558 : vector<8x64xf32>
    %657 = arith.addf %651, %656 : vector<8x64xf32>
    %cst_224 = arith.constant 1.000000e+00 : f32
    %658 = vector.broadcast %cst_224 : f32 to vector<8x64xf32>
    %659 = arith.subf %392, %658 : vector<8x64xf32>
    %cst_225 = arith.constant 1.25000012 : f32
    %660 = vector.broadcast %cst_225 : f32 to vector<8x64xf32>
    %661 = arith.mulf %659, %660 : vector<8x64xf32>
    %662 = arith.mulf %661, %558 : vector<8x64xf32>
    %cst_226 = arith.constant 2.200000e+00 : f32
    %663 = vector.broadcast %cst_226 : f32 to vector<8x64xf32>
    %664 = arith.subf %663, %392 : vector<8x64xf32>
    %cst_227 = arith.constant 1.25000012 : f32
    %665 = vector.broadcast %cst_227 : f32 to vector<8x64xf32>
    %666 = arith.mulf %664, %665 : vector<8x64xf32>
    %667 = arith.mulf %666, %569 : vector<8x64xf32>
    %668 = arith.addf %662, %667 : vector<8x64xf32>
    %cst_228 = arith.constant -2.200000e+00 : f32
    %669 = vector.broadcast %cst_228 : f32 to vector<8x64xf32>
    %670 = arith.subf %392, %669 : vector<8x64xf32>
    %cst_229 = arith.constant 0.833333313 : f32
    %671 = vector.broadcast %cst_229 : f32 to vector<8x64xf32>
    %672 = arith.mulf %670, %671 : vector<8x64xf32>
    %673 = arith.mulf %672, %580 : vector<8x64xf32>
    %cst_230 = arith.constant -6.000000e-01 : f32
    %674 = vector.broadcast %cst_230 : f32 to vector<8x64xf32>
    %675 = arith.subf %674, %392 : vector<8x64xf32>
    %cst_231 = arith.constant 0.833333373 : f32
    %676 = vector.broadcast %cst_231 : f32 to vector<8x64xf32>
    %677 = arith.mulf %675, %676 : vector<8x64xf32>
    %678 = arith.mulf %677, %591 : vector<8x64xf32>
    %679 = arith.addf %673, %678 : vector<8x64xf32>
    %cst_232 = arith.constant -1.800000e+00 : f32
    %680 = vector.broadcast %cst_232 : f32 to vector<8x64xf32>
    %681 = arith.subf %392, %680 : vector<8x64xf32>
    %cst_233 = arith.constant 0.833333373 : f32
    %682 = vector.broadcast %cst_233 : f32 to vector<8x64xf32>
    %683 = arith.mulf %681, %682 : vector<8x64xf32>
    %684 = arith.mulf %683, %591 : vector<8x64xf32>
    %cst_234 = arith.constant -0.199999988 : f32
    %685 = vector.broadcast %cst_234 : f32 to vector<8x64xf32>
    %686 = arith.subf %685, %392 : vector<8x64xf32>
    %cst_235 = arith.constant 0.833333313 : f32
    %687 = vector.broadcast %cst_235 : f32 to vector<8x64xf32>
    %688 = arith.mulf %686, %687 : vector<8x64xf32>
    %689 = arith.mulf %688, %602 : vector<8x64xf32>
    %690 = arith.addf %684, %689 : vector<8x64xf32>
    %cst_236 = arith.constant -1.400000e+00 : f32
    %691 = vector.broadcast %cst_236 : f32 to vector<8x64xf32>
    %692 = arith.subf %392, %691 : vector<8x64xf32>
    %cst_237 = arith.constant 0.833333313 : f32
    %693 = vector.broadcast %cst_237 : f32 to vector<8x64xf32>
    %694 = arith.mulf %692, %693 : vector<8x64xf32>
    %695 = arith.mulf %694, %602 : vector<8x64xf32>
    %cst_238 = arith.constant 0.200000048 : f32
    %696 = vector.broadcast %cst_238 : f32 to vector<8x64xf32>
    %697 = arith.subf %696, %392 : vector<8x64xf32>
    %cst_239 = arith.constant 0.833333313 : f32
    %698 = vector.broadcast %cst_239 : f32 to vector<8x64xf32>
    %699 = arith.mulf %697, %698 : vector<8x64xf32>
    %700 = arith.mulf %699, %613 : vector<8x64xf32>
    %701 = arith.addf %695, %700 : vector<8x64xf32>
    %cst_240 = arith.constant -1.000000e+00 : f32
    %702 = vector.broadcast %cst_240 : f32 to vector<8x64xf32>
    %703 = arith.subf %392, %702 : vector<8x64xf32>
    %cst_241 = arith.constant 0.833333313 : f32
    %704 = vector.broadcast %cst_241 : f32 to vector<8x64xf32>
    %705 = arith.mulf %703, %704 : vector<8x64xf32>
    %706 = arith.mulf %705, %613 : vector<8x64xf32>
    %cst_242 = arith.constant 6.000000e-01 : f32
    %707 = vector.broadcast %cst_242 : f32 to vector<8x64xf32>
    %708 = arith.subf %707, %392 : vector<8x64xf32>
    %cst_243 = arith.constant 0.833333313 : f32
    %709 = vector.broadcast %cst_243 : f32 to vector<8x64xf32>
    %710 = arith.mulf %708, %709 : vector<8x64xf32>
    %711 = arith.mulf %710, %624 : vector<8x64xf32>
    %712 = arith.addf %706, %711 : vector<8x64xf32>
    %cst_244 = arith.constant -6.000000e-01 : f32
    %713 = vector.broadcast %cst_244 : f32 to vector<8x64xf32>
    %714 = arith.subf %392, %713 : vector<8x64xf32>
    %cst_245 = arith.constant 0.833333313 : f32
    %715 = vector.broadcast %cst_245 : f32 to vector<8x64xf32>
    %716 = arith.mulf %714, %715 : vector<8x64xf32>
    %717 = arith.mulf %716, %624 : vector<8x64xf32>
    %cst_246 = arith.constant 1.000000e+00 : f32
    %718 = vector.broadcast %cst_246 : f32 to vector<8x64xf32>
    %719 = arith.subf %718, %392 : vector<8x64xf32>
    %cst_247 = arith.constant 0.833333313 : f32
    %720 = vector.broadcast %cst_247 : f32 to vector<8x64xf32>
    %721 = arith.mulf %719, %720 : vector<8x64xf32>
    %722 = arith.mulf %721, %635 : vector<8x64xf32>
    %723 = arith.addf %717, %722 : vector<8x64xf32>
    %cst_248 = arith.constant -0.199999988 : f32
    %724 = vector.broadcast %cst_248 : f32 to vector<8x64xf32>
    %725 = arith.subf %392, %724 : vector<8x64xf32>
    %cst_249 = arith.constant 0.833333313 : f32
    %726 = vector.broadcast %cst_249 : f32 to vector<8x64xf32>
    %727 = arith.mulf %725, %726 : vector<8x64xf32>
    %728 = arith.mulf %727, %635 : vector<8x64xf32>
    %cst_250 = arith.constant 1.4000001 : f32
    %729 = vector.broadcast %cst_250 : f32 to vector<8x64xf32>
    %730 = arith.subf %729, %392 : vector<8x64xf32>
    %cst_251 = arith.constant 0.833333313 : f32
    %731 = vector.broadcast %cst_251 : f32 to vector<8x64xf32>
    %732 = arith.mulf %730, %731 : vector<8x64xf32>
    %733 = arith.mulf %732, %646 : vector<8x64xf32>
    %734 = arith.addf %728, %733 : vector<8x64xf32>
    %cst_252 = arith.constant 0.200000048 : f32
    %735 = vector.broadcast %cst_252 : f32 to vector<8x64xf32>
    %736 = arith.subf %392, %735 : vector<8x64xf32>
    %cst_253 = arith.constant 0.833333313 : f32
    %737 = vector.broadcast %cst_253 : f32 to vector<8x64xf32>
    %738 = arith.mulf %736, %737 : vector<8x64xf32>
    %739 = arith.mulf %738, %646 : vector<8x64xf32>
    %cst_254 = arith.constant 1.800000e+00 : f32
    %740 = vector.broadcast %cst_254 : f32 to vector<8x64xf32>
    %741 = arith.subf %740, %392 : vector<8x64xf32>
    %cst_255 = arith.constant 0.833333373 : f32
    %742 = vector.broadcast %cst_255 : f32 to vector<8x64xf32>
    %743 = arith.mulf %741, %742 : vector<8x64xf32>
    %744 = arith.mulf %743, %657 : vector<8x64xf32>
    %745 = arith.addf %739, %744 : vector<8x64xf32>
    %cst_256 = arith.constant 6.000000e-01 : f32
    %746 = vector.broadcast %cst_256 : f32 to vector<8x64xf32>
    %747 = arith.subf %392, %746 : vector<8x64xf32>
    %cst_257 = arith.constant 0.833333373 : f32
    %748 = vector.broadcast %cst_257 : f32 to vector<8x64xf32>
    %749 = arith.mulf %747, %748 : vector<8x64xf32>
    %750 = arith.mulf %749, %657 : vector<8x64xf32>
    %cst_258 = arith.constant 2.200000e+00 : f32
    %751 = vector.broadcast %cst_258 : f32 to vector<8x64xf32>
    %752 = arith.subf %751, %392 : vector<8x64xf32>
    %cst_259 = arith.constant 0.833333313 : f32
    %753 = vector.broadcast %cst_259 : f32 to vector<8x64xf32>
    %754 = arith.mulf %752, %753 : vector<8x64xf32>
    %755 = arith.mulf %754, %668 : vector<8x64xf32>
    %756 = arith.addf %750, %755 : vector<8x64xf32>
    %757 = tpu.concatenate %679, %690, %701, %712, %723, %734, %745, %756 in 1 : vector<8x64xf32>, vector<8x64xf32>, vector<8x64xf32>, vector<8x64xf32>, vector<8x64xf32>, vector<8x64xf32>, vector<8x64xf32>, vector<8x64xf32> -> vector<8x512xf32>
    %c0_260 = arith.constant 0 : index
    %c0_261 = arith.constant 0 : index
    %758 = vector.load %arg7[%c0_260, %c0_261] : memref<512x32xf32, #tpu.memory_space<vmem>>, vector<512x32xf32>
    %cst_262 = arith.constant dense<0.000000e+00> : vector<8x32xf32>
    %759 = tpu.matmul %757, %758, %cst_262 {dimension_numbers = #tpu.dot_dimension_numbers<[1], [0], [0], [1], [0, 0, 1, 1], [], []>} : vector<8x512xf32>, vector<512x32xf32>, vector<8x32xf32> -> vector<8x32xf32>
    %760 = arith.addf %400, %759 : vector<8x32xf32>
    %cst_263 = arith.constant dense<0.000000e+00> : vector<8xf32>
    %761 = vector.multi_reduction <add>, %760, %cst_263 [1] : vector<8x32xf32> to vector<8xf32>
    %762 = vector.shape_cast %761 : vector<8xf32> to vector<8x1xf32>
    %cst_264 = arith.constant 3.200000e+01 : f32
    %763 = vector.broadcast %cst_264 : f32 to vector<8x1xf32>
    %764 = arith.divf %762, %763 : vector<8x1xf32>
    %765 = vector.broadcast %764 : vector<8x1xf32> to vector<8x32xf32>
    %766 = arith.subf %760, %765 : vector<8x32xf32>
    %767 = arith.mulf %766, %766 : vector<8x32xf32>
    %cst_265 = arith.constant dense<0.000000e+00> : vector<8xf32>
    %768 = vector.multi_reduction <add>, %767, %cst_265 [1] : vector<8x32xf32> to vector<8xf32>
    %769 = vector.shape_cast %768 : vector<8xf32> to vector<8x1xf32>
    %cst_266 = arith.constant 3.200000e+01 : f32
    %770 = vector.broadcast %cst_266 : f32 to vector<8x1xf32>
    %771 = arith.divf %769, %770 : vector<8x1xf32>
    %772 = vector.broadcast %764 : vector<8x1xf32> to vector<8x32xf32>
    %773 = arith.subf %760, %772 : vector<8x32xf32>
    %cst_267 = arith.constant 9.99999974E-6 : f32
    %774 = vector.broadcast %cst_267 : f32 to vector<8x1xf32>
    %775 = arith.addf %771, %774 : vector<8x1xf32>
    %776 = math.rsqrt %775 : vector<8x1xf32>
    %777 = vector.broadcast %776 : vector<8x1xf32> to vector<8x32xf32>
    %778 = arith.mulf %773, %777 : vector<8x32xf32>
    %c0_268 = arith.constant 0 : index
    %c0_269 = arith.constant 0 : index
    %779 = vector.load %arg8[%c0_268, %c0_269] : memref<1x32xf32, #tpu.memory_space<vmem>>, vector<1x32xf32>
    %780 = vector.broadcast %779 : vector<1x32xf32> to vector<8x32xf32>
    %781 = arith.mulf %778, %780 : vector<8x32xf32>
    %c0_270 = arith.constant 0 : index
    %c0_271 = arith.constant 0 : index
    %782 = vector.load %arg9[%c0_270, %c0_271] : memref<1x32xf32, #tpu.memory_space<vmem>>, vector<1x32xf32>
    %783 = vector.broadcast %782 : vector<1x32xf32> to vector<8x32xf32>
    %784 = arith.addf %781, %783 : vector<8x32xf32>
    %785 = arith.negf %784 : vector<8x32xf32>
    %786 = math.exp %785 : vector<8x32xf32>
    %cst_272 = arith.constant 1.000000e+00 : f32
    %787 = vector.broadcast %cst_272 : f32 to vector<8x32xf32>
    %788 = arith.addf %787, %786 : vector<8x32xf32>
    %789 = arith.divf %787, %788 : vector<8x32xf32>
    %790 = arith.mulf %784, %789 : vector<8x32xf32>
    %c0_273 = arith.constant 0 : index
    %c0_274 = arith.constant 0 : index
    %791 = vector.load %arg10[%c0_273, %c0_274] : memref<32x128xf32, #tpu.memory_space<vmem>>, vector<32x128xf32>
    %cst_275 = arith.constant dense<0.000000e+00> : vector<8x128xf32>
    %792 = tpu.matmul %790, %791, %cst_275 {dimension_numbers = #tpu.dot_dimension_numbers<[1], [0], [0], [1], [0, 0, 1, 1], [], []>} : vector<8x32xf32>, vector<32x128xf32>, vector<8x128xf32> -> vector<8x128xf32>
    %cst_276 = arith.constant -2.200000e+00 : f32
    %793 = vector.broadcast %cst_276 : f32 to vector<8x32xf32>
    %794 = arith.cmpf oge, %784, %793 : vector<8x32xf32>
    %795 = arith.extui %794 : vector<8x32xi1> to vector<8x32xi32>
    %796 = arith.sitofp %795 : vector<8x32xi32> to vector<8x32xf32>
    %cst_277 = arith.constant -1.800000e+00 : f32
    %797 = vector.broadcast %cst_277 : f32 to vector<8x32xf32>
    %798 = arith.cmpf oge, %784, %797 : vector<8x32xf32>
    %799 = arith.extui %798 : vector<8x32xi1> to vector<8x32xi32>
    %800 = arith.sitofp %799 : vector<8x32xi32> to vector<8x32xf32>
    %cst_278 = arith.constant -1.400000e+00 : f32
    %801 = vector.broadcast %cst_278 : f32 to vector<8x32xf32>
    %802 = arith.cmpf oge, %784, %801 : vector<8x32xf32>
    %803 = arith.extui %802 : vector<8x32xi1> to vector<8x32xi32>
    %804 = arith.sitofp %803 : vector<8x32xi32> to vector<8x32xf32>
    %cst_279 = arith.constant -1.000000e+00 : f32
    %805 = vector.broadcast %cst_279 : f32 to vector<8x32xf32>
    %806 = arith.cmpf oge, %784, %805 : vector<8x32xf32>
    %807 = arith.extui %806 : vector<8x32xi1> to vector<8x32xi32>
    %808 = arith.sitofp %807 : vector<8x32xi32> to vector<8x32xf32>
    %cst_280 = arith.constant -6.000000e-01 : f32
    %809 = vector.broadcast %cst_280 : f32 to vector<8x32xf32>
    %810 = arith.cmpf oge, %784, %809 : vector<8x32xf32>
    %811 = arith.extui %810 : vector<8x32xi1> to vector<8x32xi32>
    %812 = arith.sitofp %811 : vector<8x32xi32> to vector<8x32xf32>
    %cst_281 = arith.constant -0.199999988 : f32
    %813 = vector.broadcast %cst_281 : f32 to vector<8x32xf32>
    %814 = arith.cmpf oge, %784, %813 : vector<8x32xf32>
    %815 = arith.extui %814 : vector<8x32xi1> to vector<8x32xi32>
    %816 = arith.sitofp %815 : vector<8x32xi32> to vector<8x32xf32>
    %cst_282 = arith.constant 0.200000048 : f32
    %817 = vector.broadcast %cst_282 : f32 to vector<8x32xf32>
    %818 = arith.cmpf oge, %784, %817 : vector<8x32xf32>
    %819 = arith.extui %818 : vector<8x32xi1> to vector<8x32xi32>
    %820 = arith.sitofp %819 : vector<8x32xi32> to vector<8x32xf32>
    %cst_283 = arith.constant 6.000000e-01 : f32
    %821 = vector.broadcast %cst_283 : f32 to vector<8x32xf32>
    %822 = arith.cmpf oge, %784, %821 : vector<8x32xf32>
    %823 = arith.extui %822 : vector<8x32xi1> to vector<8x32xi32>
    %824 = arith.sitofp %823 : vector<8x32xi32> to vector<8x32xf32>
    %cst_284 = arith.constant 1.000000e+00 : f32
    %825 = vector.broadcast %cst_284 : f32 to vector<8x32xf32>
    %826 = arith.cmpf oge, %784, %825 : vector<8x32xf32>
    %827 = arith.extui %826 : vector<8x32xi1> to vector<8x32xi32>
    %828 = arith.sitofp %827 : vector<8x32xi32> to vector<8x32xf32>
    %cst_285 = arith.constant 1.4000001 : f32
    %829 = vector.broadcast %cst_285 : f32 to vector<8x32xf32>
    %830 = arith.cmpf oge, %784, %829 : vector<8x32xf32>
    %831 = arith.extui %830 : vector<8x32xi1> to vector<8x32xi32>
    %832 = arith.sitofp %831 : vector<8x32xi32> to vector<8x32xf32>
    %cst_286 = arith.constant 1.800000e+00 : f32
    %833 = vector.broadcast %cst_286 : f32 to vector<8x32xf32>
    %834 = arith.cmpf oge, %784, %833 : vector<8x32xf32>
    %835 = arith.extui %834 : vector<8x32xi1> to vector<8x32xi32>
    %836 = arith.sitofp %835 : vector<8x32xi32> to vector<8x32xf32>
    %cst_287 = arith.constant 2.200000e+00 : f32
    %837 = vector.broadcast %cst_287 : f32 to vector<8x32xf32>
    %838 = arith.cmpf oge, %784, %837 : vector<8x32xf32>
    %839 = arith.extui %838 : vector<8x32xi1> to vector<8x32xi32>
    %840 = arith.sitofp %839 : vector<8x32xi32> to vector<8x32xf32>
    %841 = arith.subf %796, %800 : vector<8x32xf32>
    %842 = arith.subf %800, %804 : vector<8x32xf32>
    %843 = arith.subf %804, %808 : vector<8x32xf32>
    %844 = arith.subf %808, %812 : vector<8x32xf32>
    %845 = arith.subf %812, %816 : vector<8x32xf32>
    %846 = arith.subf %816, %820 : vector<8x32xf32>
    %847 = arith.subf %820, %824 : vector<8x32xf32>
    %848 = arith.subf %824, %828 : vector<8x32xf32>
    %849 = arith.subf %828, %832 : vector<8x32xf32>
    %850 = arith.subf %832, %836 : vector<8x32xf32>
    %851 = arith.subf %836, %840 : vector<8x32xf32>
    %cst_288 = arith.constant -2.200000e+00 : f32
    %852 = vector.broadcast %cst_288 : f32 to vector<8x32xf32>
    %853 = arith.subf %784, %852 : vector<8x32xf32>
    %cst_289 = arith.constant 2.49999952 : f32
    %854 = vector.broadcast %cst_289 : f32 to vector<8x32xf32>
    %855 = arith.mulf %853, %854 : vector<8x32xf32>
    %856 = arith.mulf %855, %841 : vector<8x32xf32>
    %cst_290 = arith.constant -1.400000e+00 : f32
    %857 = vector.broadcast %cst_290 : f32 to vector<8x32xf32>
    %858 = arith.subf %857, %784 : vector<8x32xf32>
    %cst_291 = arith.constant 2.50000024 : f32
    %859 = vector.broadcast %cst_291 : f32 to vector<8x32xf32>
    %860 = arith.mulf %858, %859 : vector<8x32xf32>
    %861 = arith.mulf %860, %842 : vector<8x32xf32>
    %862 = arith.addf %856, %861 : vector<8x32xf32>
    %cst_292 = arith.constant -1.800000e+00 : f32
    %863 = vector.broadcast %cst_292 : f32 to vector<8x32xf32>
    %864 = arith.subf %784, %863 : vector<8x32xf32>
    %cst_293 = arith.constant 2.50000024 : f32
    %865 = vector.broadcast %cst_293 : f32 to vector<8x32xf32>
    %866 = arith.mulf %864, %865 : vector<8x32xf32>
    %867 = arith.mulf %866, %842 : vector<8x32xf32>
    %cst_294 = arith.constant -1.000000e+00 : f32
    %868 = vector.broadcast %cst_294 : f32 to vector<8x32xf32>
    %869 = arith.subf %868, %784 : vector<8x32xf32>
    %cst_295 = arith.constant 2.50000024 : f32
    %870 = vector.broadcast %cst_295 : f32 to vector<8x32xf32>
    %871 = arith.mulf %869, %870 : vector<8x32xf32>
    %872 = arith.mulf %871, %843 : vector<8x32xf32>
    %873 = arith.addf %867, %872 : vector<8x32xf32>
    %cst_296 = arith.constant -1.400000e+00 : f32
    %874 = vector.broadcast %cst_296 : f32 to vector<8x32xf32>
    %875 = arith.subf %784, %874 : vector<8x32xf32>
    %cst_297 = arith.constant 2.50000024 : f32
    %876 = vector.broadcast %cst_297 : f32 to vector<8x32xf32>
    %877 = arith.mulf %875, %876 : vector<8x32xf32>
    %878 = arith.mulf %877, %843 : vector<8x32xf32>
    %cst_298 = arith.constant -6.000000e-01 : f32
    %879 = vector.broadcast %cst_298 : f32 to vector<8x32xf32>
    %880 = arith.subf %879, %784 : vector<8x32xf32>
    %cst_299 = arith.constant 2.50000024 : f32
    %881 = vector.broadcast %cst_299 : f32 to vector<8x32xf32>
    %882 = arith.mulf %880, %881 : vector<8x32xf32>
    %883 = arith.mulf %882, %844 : vector<8x32xf32>
    %884 = arith.addf %878, %883 : vector<8x32xf32>
    %cst_300 = arith.constant -1.000000e+00 : f32
    %885 = vector.broadcast %cst_300 : f32 to vector<8x32xf32>
    %886 = arith.subf %784, %885 : vector<8x32xf32>
    %cst_301 = arith.constant 2.50000024 : f32
    %887 = vector.broadcast %cst_301 : f32 to vector<8x32xf32>
    %888 = arith.mulf %886, %887 : vector<8x32xf32>
    %889 = arith.mulf %888, %844 : vector<8x32xf32>
    %cst_302 = arith.constant -0.199999988 : f32
    %890 = vector.broadcast %cst_302 : f32 to vector<8x32xf32>
    %891 = arith.subf %890, %784 : vector<8x32xf32>
    %cst_303 = arith.constant 2.49999976 : f32
    %892 = vector.broadcast %cst_303 : f32 to vector<8x32xf32>
    %893 = arith.mulf %891, %892 : vector<8x32xf32>
    %894 = arith.mulf %893, %845 : vector<8x32xf32>
    %895 = arith.addf %889, %894 : vector<8x32xf32>
    %cst_304 = arith.constant -6.000000e-01 : f32
    %896 = vector.broadcast %cst_304 : f32 to vector<8x32xf32>
    %897 = arith.subf %784, %896 : vector<8x32xf32>
    %cst_305 = arith.constant 2.49999976 : f32
    %898 = vector.broadcast %cst_305 : f32 to vector<8x32xf32>
    %899 = arith.mulf %897, %898 : vector<8x32xf32>
    %900 = arith.mulf %899, %845 : vector<8x32xf32>
    %cst_306 = arith.constant 0.200000048 : f32
    %901 = vector.broadcast %cst_306 : f32 to vector<8x32xf32>
    %902 = arith.subf %901, %784 : vector<8x32xf32>
    %cst_307 = arith.constant 2.49999976 : f32
    %903 = vector.broadcast %cst_307 : f32 to vector<8x32xf32>
    %904 = arith.mulf %902, %903 : vector<8x32xf32>
    %905 = arith.mulf %904, %846 : vector<8x32xf32>
    %906 = arith.addf %900, %905 : vector<8x32xf32>
    %cst_308 = arith.constant -0.199999988 : f32
    %907 = vector.broadcast %cst_308 : f32 to vector<8x32xf32>
    %908 = arith.subf %784, %907 : vector<8x32xf32>
    %cst_309 = arith.constant 2.49999976 : f32
    %909 = vector.broadcast %cst_309 : f32 to vector<8x32xf32>
    %910 = arith.mulf %908, %909 : vector<8x32xf32>
    %911 = arith.mulf %910, %846 : vector<8x32xf32>
    %cst_310 = arith.constant 6.000000e-01 : f32
    %912 = vector.broadcast %cst_310 : f32 to vector<8x32xf32>
    %913 = arith.subf %912, %784 : vector<8x32xf32>
    %cst_311 = arith.constant 2.50000024 : f32
    %914 = vector.broadcast %cst_311 : f32 to vector<8x32xf32>
    %915 = arith.mulf %913, %914 : vector<8x32xf32>
    %916 = arith.mulf %915, %847 : vector<8x32xf32>
    %917 = arith.addf %911, %916 : vector<8x32xf32>
    %cst_312 = arith.constant 0.200000048 : f32
    %918 = vector.broadcast %cst_312 : f32 to vector<8x32xf32>
    %919 = arith.subf %784, %918 : vector<8x32xf32>
    %cst_313 = arith.constant 2.50000024 : f32
    %920 = vector.broadcast %cst_313 : f32 to vector<8x32xf32>
    %921 = arith.mulf %919, %920 : vector<8x32xf32>
    %922 = arith.mulf %921, %847 : vector<8x32xf32>
    %cst_314 = arith.constant 1.000000e+00 : f32
    %923 = vector.broadcast %cst_314 : f32 to vector<8x32xf32>
    %924 = arith.subf %923, %784 : vector<8x32xf32>
    %cst_315 = arith.constant 2.50000024 : f32
    %925 = vector.broadcast %cst_315 : f32 to vector<8x32xf32>
    %926 = arith.mulf %924, %925 : vector<8x32xf32>
    %927 = arith.mulf %926, %848 : vector<8x32xf32>
    %928 = arith.addf %922, %927 : vector<8x32xf32>
    %cst_316 = arith.constant 6.000000e-01 : f32
    %929 = vector.broadcast %cst_316 : f32 to vector<8x32xf32>
    %930 = arith.subf %784, %929 : vector<8x32xf32>
    %cst_317 = arith.constant 2.50000024 : f32
    %931 = vector.broadcast %cst_317 : f32 to vector<8x32xf32>
    %932 = arith.mulf %930, %931 : vector<8x32xf32>
    %933 = arith.mulf %932, %848 : vector<8x32xf32>
    %cst_318 = arith.constant 1.4000001 : f32
    %934 = vector.broadcast %cst_318 : f32 to vector<8x32xf32>
    %935 = arith.subf %934, %784 : vector<8x32xf32>
    %cst_319 = arith.constant 2.49999952 : f32
    %936 = vector.broadcast %cst_319 : f32 to vector<8x32xf32>
    %937 = arith.mulf %935, %936 : vector<8x32xf32>
    %938 = arith.mulf %937, %849 : vector<8x32xf32>
    %939 = arith.addf %933, %938 : vector<8x32xf32>
    %cst_320 = arith.constant 1.000000e+00 : f32
    %940 = vector.broadcast %cst_320 : f32 to vector<8x32xf32>
    %941 = arith.subf %784, %940 : vector<8x32xf32>
    %cst_321 = arith.constant 2.49999952 : f32
    %942 = vector.broadcast %cst_321 : f32 to vector<8x32xf32>
    %943 = arith.mulf %941, %942 : vector<8x32xf32>
    %944 = arith.mulf %943, %849 : vector<8x32xf32>
    %cst_322 = arith.constant 1.800000e+00 : f32
    %945 = vector.broadcast %cst_322 : f32 to vector<8x32xf32>
    %946 = arith.subf %945, %784 : vector<8x32xf32>
    %cst_323 = arith.constant 2.50000095 : f32
    %947 = vector.broadcast %cst_323 : f32 to vector<8x32xf32>
    %948 = arith.mulf %946, %947 : vector<8x32xf32>
    %949 = arith.mulf %948, %850 : vector<8x32xf32>
    %950 = arith.addf %944, %949 : vector<8x32xf32>
    %cst_324 = arith.constant 1.4000001 : f32
    %951 = vector.broadcast %cst_324 : f32 to vector<8x32xf32>
    %952 = arith.subf %784, %951 : vector<8x32xf32>
    %cst_325 = arith.constant 2.50000095 : f32
    %953 = vector.broadcast %cst_325 : f32 to vector<8x32xf32>
    %954 = arith.mulf %952, %953 : vector<8x32xf32>
    %955 = arith.mulf %954, %850 : vector<8x32xf32>
    %cst_326 = arith.constant 2.200000e+00 : f32
    %956 = vector.broadcast %cst_326 : f32 to vector<8x32xf32>
    %957 = arith.subf %956, %784 : vector<8x32xf32>
    %cst_327 = arith.constant 2.49999952 : f32
    %958 = vector.broadcast %cst_327 : f32 to vector<8x32xf32>
    %959 = arith.mulf %957, %958 : vector<8x32xf32>
    %960 = arith.mulf %959, %851 : vector<8x32xf32>
    %961 = arith.addf %955, %960 : vector<8x32xf32>
    %cst_328 = arith.constant -2.200000e+00 : f32
    %962 = vector.broadcast %cst_328 : f32 to vector<8x32xf32>
    %963 = arith.subf %784, %962 : vector<8x32xf32>
    %cst_329 = arith.constant 1.24999988 : f32
    %964 = vector.broadcast %cst_329 : f32 to vector<8x32xf32>
    %965 = arith.mulf %963, %964 : vector<8x32xf32>
    %966 = arith.mulf %965, %862 : vector<8x32xf32>
    %cst_330 = arith.constant -1.000000e+00 : f32
    %967 = vector.broadcast %cst_330 : f32 to vector<8x32xf32>
    %968 = arith.subf %967, %784 : vector<8x32xf32>
    %cst_331 = arith.constant 1.25000012 : f32
    %969 = vector.broadcast %cst_331 : f32 to vector<8x32xf32>
    %970 = arith.mulf %968, %969 : vector<8x32xf32>
    %971 = arith.mulf %970, %873 : vector<8x32xf32>
    %972 = arith.addf %966, %971 : vector<8x32xf32>
    %cst_332 = arith.constant -1.800000e+00 : f32
    %973 = vector.broadcast %cst_332 : f32 to vector<8x32xf32>
    %974 = arith.subf %784, %973 : vector<8x32xf32>
    %cst_333 = arith.constant 1.25000012 : f32
    %975 = vector.broadcast %cst_333 : f32 to vector<8x32xf32>
    %976 = arith.mulf %974, %975 : vector<8x32xf32>
    %977 = arith.mulf %976, %873 : vector<8x32xf32>
    %cst_334 = arith.constant -6.000000e-01 : f32
    %978 = vector.broadcast %cst_334 : f32 to vector<8x32xf32>
    %979 = arith.subf %978, %784 : vector<8x32xf32>
    %cst_335 = arith.constant 1.25000012 : f32
    %980 = vector.broadcast %cst_335 : f32 to vector<8x32xf32>
    %981 = arith.mulf %979, %980 : vector<8x32xf32>
    %982 = arith.mulf %981, %884 : vector<8x32xf32>
    %983 = arith.addf %977, %982 : vector<8x32xf32>
    %cst_336 = arith.constant -1.400000e+00 : f32
    %984 = vector.broadcast %cst_336 : f32 to vector<8x32xf32>
    %985 = arith.subf %784, %984 : vector<8x32xf32>
    %cst_337 = arith.constant 1.25000012 : f32
    %986 = vector.broadcast %cst_337 : f32 to vector<8x32xf32>
    %987 = arith.mulf %985, %986 : vector<8x32xf32>
    %988 = arith.mulf %987, %884 : vector<8x32xf32>
    %cst_338 = arith.constant -0.199999988 : f32
    %989 = vector.broadcast %cst_338 : f32 to vector<8x32xf32>
    %990 = arith.subf %989, %784 : vector<8x32xf32>
    %cst_339 = arith.constant 1.250000e+00 : f32
    %991 = vector.broadcast %cst_339 : f32 to vector<8x32xf32>
    %992 = arith.mulf %990, %991 : vector<8x32xf32>
    %993 = arith.mulf %992, %895 : vector<8x32xf32>
    %994 = arith.addf %988, %993 : vector<8x32xf32>
    %cst_340 = arith.constant -1.000000e+00 : f32
    %995 = vector.broadcast %cst_340 : f32 to vector<8x32xf32>
    %996 = arith.subf %784, %995 : vector<8x32xf32>
    %cst_341 = arith.constant 1.250000e+00 : f32
    %997 = vector.broadcast %cst_341 : f32 to vector<8x32xf32>
    %998 = arith.mulf %996, %997 : vector<8x32xf32>
    %999 = arith.mulf %998, %895 : vector<8x32xf32>
    %cst_342 = arith.constant 0.200000048 : f32
    %1000 = vector.broadcast %cst_342 : f32 to vector<8x32xf32>
    %1001 = arith.subf %1000, %784 : vector<8x32xf32>
    %cst_343 = arith.constant 1.24999988 : f32
    %1002 = vector.broadcast %cst_343 : f32 to vector<8x32xf32>
    %1003 = arith.mulf %1001, %1002 : vector<8x32xf32>
    %1004 = arith.mulf %1003, %906 : vector<8x32xf32>
    %1005 = arith.addf %999, %1004 : vector<8x32xf32>
    %cst_344 = arith.constant -6.000000e-01 : f32
    %1006 = vector.broadcast %cst_344 : f32 to vector<8x32xf32>
    %1007 = arith.subf %784, %1006 : vector<8x32xf32>
    %cst_345 = arith.constant 1.24999988 : f32
    %1008 = vector.broadcast %cst_345 : f32 to vector<8x32xf32>
    %1009 = arith.mulf %1007, %1008 : vector<8x32xf32>
    %1010 = arith.mulf %1009, %906 : vector<8x32xf32>
    %cst_346 = arith.constant 6.000000e-01 : f32
    %1011 = vector.broadcast %cst_346 : f32 to vector<8x32xf32>
    %1012 = arith.subf %1011, %784 : vector<8x32xf32>
    %cst_347 = arith.constant 1.250000e+00 : f32
    %1013 = vector.broadcast %cst_347 : f32 to vector<8x32xf32>
    %1014 = arith.mulf %1012, %1013 : vector<8x32xf32>
    %1015 = arith.mulf %1014, %917 : vector<8x32xf32>
    %1016 = arith.addf %1010, %1015 : vector<8x32xf32>
    %cst_348 = arith.constant -0.199999988 : f32
    %1017 = vector.broadcast %cst_348 : f32 to vector<8x32xf32>
    %1018 = arith.subf %784, %1017 : vector<8x32xf32>
    %cst_349 = arith.constant 1.250000e+00 : f32
    %1019 = vector.broadcast %cst_349 : f32 to vector<8x32xf32>
    %1020 = arith.mulf %1018, %1019 : vector<8x32xf32>
    %1021 = arith.mulf %1020, %917 : vector<8x32xf32>
    %cst_350 = arith.constant 1.000000e+00 : f32
    %1022 = vector.broadcast %cst_350 : f32 to vector<8x32xf32>
    %1023 = arith.subf %1022, %784 : vector<8x32xf32>
    %cst_351 = arith.constant 1.25000012 : f32
    %1024 = vector.broadcast %cst_351 : f32 to vector<8x32xf32>
    %1025 = arith.mulf %1023, %1024 : vector<8x32xf32>
    %1026 = arith.mulf %1025, %928 : vector<8x32xf32>
    %1027 = arith.addf %1021, %1026 : vector<8x32xf32>
    %cst_352 = arith.constant 0.200000048 : f32
    %1028 = vector.broadcast %cst_352 : f32 to vector<8x32xf32>
    %1029 = arith.subf %784, %1028 : vector<8x32xf32>
    %cst_353 = arith.constant 1.25000012 : f32
    %1030 = vector.broadcast %cst_353 : f32 to vector<8x32xf32>
    %1031 = arith.mulf %1029, %1030 : vector<8x32xf32>
    %1032 = arith.mulf %1031, %928 : vector<8x32xf32>
    %cst_354 = arith.constant 1.4000001 : f32
    %1033 = vector.broadcast %cst_354 : f32 to vector<8x32xf32>
    %1034 = arith.subf %1033, %784 : vector<8x32xf32>
    %cst_355 = arith.constant 1.24999988 : f32
    %1035 = vector.broadcast %cst_355 : f32 to vector<8x32xf32>
    %1036 = arith.mulf %1034, %1035 : vector<8x32xf32>
    %1037 = arith.mulf %1036, %939 : vector<8x32xf32>
    %1038 = arith.addf %1032, %1037 : vector<8x32xf32>
    %cst_356 = arith.constant 6.000000e-01 : f32
    %1039 = vector.broadcast %cst_356 : f32 to vector<8x32xf32>
    %1040 = arith.subf %784, %1039 : vector<8x32xf32>
    %cst_357 = arith.constant 1.24999988 : f32
    %1041 = vector.broadcast %cst_357 : f32 to vector<8x32xf32>
    %1042 = arith.mulf %1040, %1041 : vector<8x32xf32>
    %1043 = arith.mulf %1042, %939 : vector<8x32xf32>
    %cst_358 = arith.constant 1.800000e+00 : f32
    %1044 = vector.broadcast %cst_358 : f32 to vector<8x32xf32>
    %1045 = arith.subf %1044, %784 : vector<8x32xf32>
    %cst_359 = arith.constant 1.25000012 : f32
    %1046 = vector.broadcast %cst_359 : f32 to vector<8x32xf32>
    %1047 = arith.mulf %1045, %1046 : vector<8x32xf32>
    %1048 = arith.mulf %1047, %950 : vector<8x32xf32>
    %1049 = arith.addf %1043, %1048 : vector<8x32xf32>
    %cst_360 = arith.constant 1.000000e+00 : f32
    %1050 = vector.broadcast %cst_360 : f32 to vector<8x32xf32>
    %1051 = arith.subf %784, %1050 : vector<8x32xf32>
    %cst_361 = arith.constant 1.25000012 : f32
    %1052 = vector.broadcast %cst_361 : f32 to vector<8x32xf32>
    %1053 = arith.mulf %1051, %1052 : vector<8x32xf32>
    %1054 = arith.mulf %1053, %950 : vector<8x32xf32>
    %cst_362 = arith.constant 2.200000e+00 : f32
    %1055 = vector.broadcast %cst_362 : f32 to vector<8x32xf32>
    %1056 = arith.subf %1055, %784 : vector<8x32xf32>
    %cst_363 = arith.constant 1.25000012 : f32
    %1057 = vector.broadcast %cst_363 : f32 to vector<8x32xf32>
    %1058 = arith.mulf %1056, %1057 : vector<8x32xf32>
    %1059 = arith.mulf %1058, %961 : vector<8x32xf32>
    %1060 = arith.addf %1054, %1059 : vector<8x32xf32>
    %cst_364 = arith.constant -2.200000e+00 : f32
    %1061 = vector.broadcast %cst_364 : f32 to vector<8x32xf32>
    %1062 = arith.subf %784, %1061 : vector<8x32xf32>
    %cst_365 = arith.constant 0.833333313 : f32
    %1063 = vector.broadcast %cst_365 : f32 to vector<8x32xf32>
    %1064 = arith.mulf %1062, %1063 : vector<8x32xf32>
    %1065 = arith.mulf %1064, %972 : vector<8x32xf32>
    %cst_366 = arith.constant -6.000000e-01 : f32
    %1066 = vector.broadcast %cst_366 : f32 to vector<8x32xf32>
    %1067 = arith.subf %1066, %784 : vector<8x32xf32>
    %cst_367 = arith.constant 0.833333373 : f32
    %1068 = vector.broadcast %cst_367 : f32 to vector<8x32xf32>
    %1069 = arith.mulf %1067, %1068 : vector<8x32xf32>
    %1070 = arith.mulf %1069, %983 : vector<8x32xf32>
    %1071 = arith.addf %1065, %1070 : vector<8x32xf32>
    %cst_368 = arith.constant -1.800000e+00 : f32
    %1072 = vector.broadcast %cst_368 : f32 to vector<8x32xf32>
    %1073 = arith.subf %784, %1072 : vector<8x32xf32>
    %cst_369 = arith.constant 0.833333373 : f32
    %1074 = vector.broadcast %cst_369 : f32 to vector<8x32xf32>
    %1075 = arith.mulf %1073, %1074 : vector<8x32xf32>
    %1076 = arith.mulf %1075, %983 : vector<8x32xf32>
    %cst_370 = arith.constant -0.199999988 : f32
    %1077 = vector.broadcast %cst_370 : f32 to vector<8x32xf32>
    %1078 = arith.subf %1077, %784 : vector<8x32xf32>
    %cst_371 = arith.constant 0.833333313 : f32
    %1079 = vector.broadcast %cst_371 : f32 to vector<8x32xf32>
    %1080 = arith.mulf %1078, %1079 : vector<8x32xf32>
    %1081 = arith.mulf %1080, %994 : vector<8x32xf32>
    %1082 = arith.addf %1076, %1081 : vector<8x32xf32>
    %cst_372 = arith.constant -1.400000e+00 : f32
    %1083 = vector.broadcast %cst_372 : f32 to vector<8x32xf32>
    %1084 = arith.subf %784, %1083 : vector<8x32xf32>
    %cst_373 = arith.constant 0.833333313 : f32
    %1085 = vector.broadcast %cst_373 : f32 to vector<8x32xf32>
    %1086 = arith.mulf %1084, %1085 : vector<8x32xf32>
    %1087 = arith.mulf %1086, %994 : vector<8x32xf32>
    %cst_374 = arith.constant 0.200000048 : f32
    %1088 = vector.broadcast %cst_374 : f32 to vector<8x32xf32>
    %1089 = arith.subf %1088, %784 : vector<8x32xf32>
    %cst_375 = arith.constant 0.833333313 : f32
    %1090 = vector.broadcast %cst_375 : f32 to vector<8x32xf32>
    %1091 = arith.mulf %1089, %1090 : vector<8x32xf32>
    %1092 = arith.mulf %1091, %1005 : vector<8x32xf32>
    %1093 = arith.addf %1087, %1092 : vector<8x32xf32>
    %cst_376 = arith.constant -1.000000e+00 : f32
    %1094 = vector.broadcast %cst_376 : f32 to vector<8x32xf32>
    %1095 = arith.subf %784, %1094 : vector<8x32xf32>
    %cst_377 = arith.constant 0.833333313 : f32
    %1096 = vector.broadcast %cst_377 : f32 to vector<8x32xf32>
    %1097 = arith.mulf %1095, %1096 : vector<8x32xf32>
    %1098 = arith.mulf %1097, %1005 : vector<8x32xf32>
    %cst_378 = arith.constant 6.000000e-01 : f32
    %1099 = vector.broadcast %cst_378 : f32 to vector<8x32xf32>
    %1100 = arith.subf %1099, %784 : vector<8x32xf32>
    %cst_379 = arith.constant 0.833333313 : f32
    %1101 = vector.broadcast %cst_379 : f32 to vector<8x32xf32>
    %1102 = arith.mulf %1100, %1101 : vector<8x32xf32>
    %1103 = arith.mulf %1102, %1016 : vector<8x32xf32>
    %1104 = arith.addf %1098, %1103 : vector<8x32xf32>
    %cst_380 = arith.constant -6.000000e-01 : f32
    %1105 = vector.broadcast %cst_380 : f32 to vector<8x32xf32>
    %1106 = arith.subf %784, %1105 : vector<8x32xf32>
    %cst_381 = arith.constant 0.833333313 : f32
    %1107 = vector.broadcast %cst_381 : f32 to vector<8x32xf32>
    %1108 = arith.mulf %1106, %1107 : vector<8x32xf32>
    %1109 = arith.mulf %1108, %1016 : vector<8x32xf32>
    %cst_382 = arith.constant 1.000000e+00 : f32
    %1110 = vector.broadcast %cst_382 : f32 to vector<8x32xf32>
    %1111 = arith.subf %1110, %784 : vector<8x32xf32>
    %cst_383 = arith.constant 0.833333313 : f32
    %1112 = vector.broadcast %cst_383 : f32 to vector<8x32xf32>
    %1113 = arith.mulf %1111, %1112 : vector<8x32xf32>
    %1114 = arith.mulf %1113, %1027 : vector<8x32xf32>
    %1115 = arith.addf %1109, %1114 : vector<8x32xf32>
    %cst_384 = arith.constant -0.199999988 : f32
    %1116 = vector.broadcast %cst_384 : f32 to vector<8x32xf32>
    %1117 = arith.subf %784, %1116 : vector<8x32xf32>
    %cst_385 = arith.constant 0.833333313 : f32
    %1118 = vector.broadcast %cst_385 : f32 to vector<8x32xf32>
    %1119 = arith.mulf %1117, %1118 : vector<8x32xf32>
    %1120 = arith.mulf %1119, %1027 : vector<8x32xf32>
    %cst_386 = arith.constant 1.4000001 : f32
    %1121 = vector.broadcast %cst_386 : f32 to vector<8x32xf32>
    %1122 = arith.subf %1121, %784 : vector<8x32xf32>
    %cst_387 = arith.constant 0.833333313 : f32
    %1123 = vector.broadcast %cst_387 : f32 to vector<8x32xf32>
    %1124 = arith.mulf %1122, %1123 : vector<8x32xf32>
    %1125 = arith.mulf %1124, %1038 : vector<8x32xf32>
    %1126 = arith.addf %1120, %1125 : vector<8x32xf32>
    %cst_388 = arith.constant 0.200000048 : f32
    %1127 = vector.broadcast %cst_388 : f32 to vector<8x32xf32>
    %1128 = arith.subf %784, %1127 : vector<8x32xf32>
    %cst_389 = arith.constant 0.833333313 : f32
    %1129 = vector.broadcast %cst_389 : f32 to vector<8x32xf32>
    %1130 = arith.mulf %1128, %1129 : vector<8x32xf32>
    %1131 = arith.mulf %1130, %1038 : vector<8x32xf32>
    %cst_390 = arith.constant 1.800000e+00 : f32
    %1132 = vector.broadcast %cst_390 : f32 to vector<8x32xf32>
    %1133 = arith.subf %1132, %784 : vector<8x32xf32>
    %cst_391 = arith.constant 0.833333373 : f32
    %1134 = vector.broadcast %cst_391 : f32 to vector<8x32xf32>
    %1135 = arith.mulf %1133, %1134 : vector<8x32xf32>
    %1136 = arith.mulf %1135, %1049 : vector<8x32xf32>
    %1137 = arith.addf %1131, %1136 : vector<8x32xf32>
    %cst_392 = arith.constant 6.000000e-01 : f32
    %1138 = vector.broadcast %cst_392 : f32 to vector<8x32xf32>
    %1139 = arith.subf %784, %1138 : vector<8x32xf32>
    %cst_393 = arith.constant 0.833333373 : f32
    %1140 = vector.broadcast %cst_393 : f32 to vector<8x32xf32>
    %1141 = arith.mulf %1139, %1140 : vector<8x32xf32>
    %1142 = arith.mulf %1141, %1049 : vector<8x32xf32>
    %cst_394 = arith.constant 2.200000e+00 : f32
    %1143 = vector.broadcast %cst_394 : f32 to vector<8x32xf32>
    %1144 = arith.subf %1143, %784 : vector<8x32xf32>
    %cst_395 = arith.constant 0.833333313 : f32
    %1145 = vector.broadcast %cst_395 : f32 to vector<8x32xf32>
    %1146 = arith.mulf %1144, %1145 : vector<8x32xf32>
    %1147 = arith.mulf %1146, %1060 : vector<8x32xf32>
    %1148 = arith.addf %1142, %1147 : vector<8x32xf32>
    %1149 = tpu.concatenate %1071, %1082, %1093, %1104, %1115, %1126, %1137, %1148 in 1 : vector<8x32xf32>, vector<8x32xf32>, vector<8x32xf32>, vector<8x32xf32>, vector<8x32xf32>, vector<8x32xf32>, vector<8x32xf32>, vector<8x32xf32> -> vector<8x256xf32>
    %c0_396 = arith.constant 0 : index
    %c0_397 = arith.constant 0 : index
    %1150 = vector.load %arg11[%c0_396, %c0_397] : memref<256x128xf32, #tpu.memory_space<vmem>>, vector<256x128xf32>
    %cst_398 = arith.constant dense<0.000000e+00> : vector<8x128xf32>
    %1151 = tpu.matmul %1149, %1150, %cst_398 {dimension_numbers = #tpu.dot_dimension_numbers<[1], [0], [0], [1], [0, 0, 1, 1], [], []>} : vector<8x256xf32>, vector<256x128xf32>, vector<8x128xf32> -> vector<8x128xf32>
    %1152 = arith.addf %792, %1151 : vector<8x128xf32>
    %c0_399 = arith.constant 0 : index
    %c0_400 = arith.constant 0 : index
    %1153 = vector.load %arg12[%c0_399, %c0_400] : memref<8x128xf32, #tpu.memory_space<vmem>>, vector<8x128xf32>
    tpu.vector_store %arg12[%c0_399, %c0_400], %1152 {strides = array<i32>} : memref<8x128xf32, #tpu.memory_space<vmem>>, vector<8x128xf32>,
    return
  }
  func.func @transform_0(%arg0: i32) -> (i32, i32) {
    %c0_i32 = arith.constant 0 : i32
    %c0_i32_0 = arith.constant 0 : i32
    return %arg0, %c0_i32 : i32, i32
  }
  func.func @transform_1(%arg0: i32) -> (i32, i32) {
    %c0_i32 = arith.constant 0 : i32
    %c0_i32_0 = arith.constant 0 : i32
    %c0_i32_1 = arith.constant 0 : i32
    return %c0_i32, %c0_i32_0 : i32, i32
  }
  func.func @transform_2(%arg0: i32) -> (i32, i32) {
    %c0_i32 = arith.constant 0 : i32
    %c0_i32_0 = arith.constant 0 : i32
    %c0_i32_1 = arith.constant 0 : i32
    return %c0_i32, %c0_i32_0 : i32, i32
  }
  func.func @transform_3(%arg0: i32) -> (i32, i32) {
    %c0_i32 = arith.constant 0 : i32
    %c0_i32_0 = arith.constant 0 : i32
    %c0_i32_1 = arith.constant 0 : i32
    return %c0_i32, %c0_i32_0 : i32, i32
  }
  func.func @transform_4(%arg0: i32) -> (i32, i32) {
    %c0_i32 = arith.constant 0 : i32
    %c0_i32_0 = arith.constant 0 : i32
    %c0_i32_1 = arith.constant 0 : i32
    return %c0_i32, %c0_i32_0 : i32, i32
  }
  func.func @transform_5(%arg0: i32) -> (i32, i32) {
    %c0_i32 = arith.constant 0 : i32
    %c0_i32_0 = arith.constant 0 : i32
    %c0_i32_1 = arith.constant 0 : i32
    return %c0_i32, %c0_i32_0 : i32, i32
  }
  func.func @transform_6(%arg0: i32) -> (i32, i32) {
    %c0_i32 = arith.constant 0 : i32
    %c0_i32_0 = arith.constant 0 : i32
    %c0_i32_1 = arith.constant 0 : i32
    return %c0_i32, %c0_i32_0 : i32, i32
  }
  func.func @transform_7(%arg0: i32) -> (i32, i32) {
    %c0_i32 = arith.constant 0 : i32
    %c0_i32_0 = arith.constant 0 : i32
    %c0_i32_1 = arith.constant 0 : i32
    return %c0_i32, %c0_i32_0 : i32, i32
  }
  func.func @transform_8(%arg0: i32) -> (i32, i32) {
    %c0_i32 = arith.constant 0 : i32
    %c0_i32_0 = arith.constant 0 : i32
    %c0_i32_1 = arith.constant 0 : i32
    return %c0_i32, %c0_i32_0 : i32, i32
  }
  func.func @transform_9(%arg0: i32) -> (i32, i32) {
    %c0_i32 = arith.constant 0 : i32
    %c0_i32_0 = arith.constant 0 : i32
    %c0_i32_1 = arith.constant 0 : i32
    return %c0_i32, %c0_i32_0 : i32, i32
  }
  func.func @transform_10(%arg0: i32) -> (i32, i32) {
    %c0_i32 = arith.constant 0 : i32
    %c0_i32_0 = arith.constant 0 : i32
    %c0_i32_1 = arith.constant 0 : i32
    return %c0_i32, %c0_i32_0 : i32, i32
  }
  func.func @transform_11(%arg0: i32) -> (i32, i32) {
    %c0_i32 = arith.constant 0 : i32
    %c0_i32_0 = arith.constant 0 : i32
    return %arg0, %c0_i32 : i32, i32
  }
}

</mosaic_0001>

<llo_original>
// kernel: tpu_custom_call.1
$region0: #{tpu_custom_call.1}
  #allocation0 [shape = 'u32[]', space=smem, size = 0x4, offset = 0x4, fixed_abs, tag = 'smem constant byte address 0x4 - core index']
  #allocation1 [shape = 'u32[144,128]{1,0:T(1,128)}', space=vmem, size = 0x12000, scoped, tag = 'internal scratch']
  %s0 = inlined_call_operand.vmem [shape: f32[8,16], index: 0, kind: input, shape index: {}]
  %s1 = inlined_call_operand.vmem [shape: f32[16,64], index: 1, kind: input, shape index: {}]
  %s2 = inlined_call_operand.vmem [shape: f32[128,64], index: 2, kind: input, shape index: {}]
  %s3 = inlined_call_operand.vmem [shape: f32[1,64], index: 3, kind: input, shape index: {}]
  %s4 = inlined_call_operand.vmem [shape: f32[1,64], index: 4, kind: input, shape index: {}]
  %s5 = inlined_call_operand.vmem [shape: f32[64,32], index: 5, kind: input, shape index: {}]
  %s6 = inlined_call_operand.vmem [shape: f32[512,32], index: 6, kind: input, shape index: {}]
  %s7 = inlined_call_operand.vmem [shape: f32[1,32], index: 7, kind: input, shape index: {}]
  %s8 = inlined_call_operand.vmem [shape: f32[1,32], index: 8, kind: input, shape index: {}]
  %s9 = inlined_call_operand.vmem [shape: f32[32,128], index: 9, kind: input, shape index: {}]
  %s10 = inlined_call_operand.vmem [shape: f32[256,128], index: 10, kind: input, shape index: {}]
  %s11 = inlined_call_operand.hbm [shape: f32[8,128], index: 11, kind: output, shape index: {}]
  %s12 = sld [smem:[#allocation0]]
  $region54: #{tpu_custom_call.1} parent=0
    _
  %s14 = ssub.s32 1, %s12
  %s15 = scalar_select 0, %s14, %s12
  $region1: #{tpu_custom_call.1} parent=0
    #allocation2 [shape = 'u8[4096]{0}', space=vmem, size = 0x1000, scoped, tag = 'output window, operand 0, single buffered']
    #allocation3 [shape = 's32[1]{0}', space=sflag, size = 0x4, scoped, tag = 'scoped memory for tpu_custom_call.1']
    %16 = vsyncpa [#allocation3], 0
    // Predicated region
    $region2: #{tpu_custom_call.1} parent=1 // pred_check
      _
    $region3: #{tpu_custom_call.1} parent=1 // pred_check_branch
      %18 = sbr.rel (0) target = $region5
    $region4: #{tpu_custom_call.1} parent=1 // pred_region
      _
    $region5: #{tpu_custom_call.1} parent=1 // pred_fallthru
      _
    // Predicated region
    $region6: #{tpu_custom_call.1} parent=1 // pred_check
      _
    $region7: #{tpu_custom_call.1} parent=1 // pred_check_branch
      %20 = sbr.rel (0) target = $region9
    $region8: #{tpu_custom_call.1} parent=1 // pred_region
      _
    $region9: #{tpu_custom_call.1} parent=1 // pred_fallthru
      _
    // Predicated region
    $region10: #{tpu_custom_call.1} parent=1 // pred_check
      _
    $region11: #{tpu_custom_call.1} parent=1 // pred_check_branch
      %22 = sbr.rel (0) target = $region13
    $region12: #{tpu_custom_call.1} parent=1 // pred_region
      _
    $region13: #{tpu_custom_call.1} parent=1 // pred_fallthru
      _
    // Predicated region
    $region14: #{tpu_custom_call.1} parent=1 // pred_check
      _
    $region15: #{tpu_custom_call.1} parent=1 // pred_check_branch
      %24 = sbr.rel (0) target = $region17
    $region16: #{tpu_custom_call.1} parent=1 // pred_region
      _
    $region17: #{tpu_custom_call.1} parent=1 // pred_fallthru
      _
    // Predicated region
    $region18: #{tpu_custom_call.1} parent=1 // pred_check
      _
    $region19: #{tpu_custom_call.1} parent=1 // pred_check_branch
      %26 = sbr.rel (0) target = $region21
    $region20: #{tpu_custom_call.1} parent=1 // pred_region
      _
    $region21: #{tpu_custom_call.1} parent=1 // pred_fallthru
      _
    // Predicated region
    $region22: #{tpu_custom_call.1} parent=1 // pred_check
      _
    $region23: #{tpu_custom_call.1} parent=1 // pred_check_branch
      %28 = sbr.rel (0) target = $region25
    $region24: #{tpu_custom_call.1} parent=1 // pred_region
      _
    $region25: #{tpu_custom_call.1} parent=1 // pred_fallthru
      _
    // Predicated region
    $region26: #{tpu_custom_call.1} parent=1 // pred_check
      _
    $region27: #{tpu_custom_call.1} parent=1 // pred_check_branch
      %30 = sbr.rel (0) target = $region29
    $region28: #{tpu_custom_call.1} parent=1 // pred_region
      _
    $region29: #{tpu_custom_call.1} parent=1 // pred_fallthru
      _
    // Predicated region
    $region30: #{tpu_custom_call.1} parent=1 // pred_check
      _
    $region31: #{tpu_custom_call.1} parent=1 // pred_check_branch
      %32 = sbr.rel (0) target = $region33
    $region32: #{tpu_custom_call.1} parent=1 // pred_region
      _
    $region33: #{tpu_custom_call.1} parent=1 // pred_fallthru
      _
    // Predicated region
    $region34: #{tpu_custom_call.1} parent=1 // pred_check
      _
    $region35: #{tpu_custom_call.1} parent=1 // pred_check_branch
      %34 = sbr.rel (0) target = $region37
    $region36: #{tpu_custom_call.1} parent=1 // pred_region
      _
    $region37: #{tpu_custom_call.1} parent=1 // pred_fallthru
      _
    // Predicated region
    $region38: #{tpu_custom_call.1} parent=1 // pred_check
      _
    $region39: #{tpu_custom_call.1} parent=1 // pred_check_branch
      %36 = sbr.rel (0) target = $region41
    $region40: #{tpu_custom_call.1} parent=1 // pred_region
      _
    $region41: #{tpu_custom_call.1} parent=1 // pred_fallthru
      _
    // Predicated region
    $region42: #{tpu_custom_call.1} parent=1 // pred_check
      _
    $region43: #{tpu_custom_call.1} parent=1 // pred_check_branch
      %38 = sbr.rel (0) target = $region45
    $region44: #{tpu_custom_call.1} parent=1 // pred_region
      _
    $region45: #{tpu_custom_call.1} parent=1 // pred_fallthru
      _
    %v39 = vld [vmem:[%s0] sm:$0xff]
    %v40 = vxor.u32 %v39, 2147483648
    %v41 = vmul.f32 %v40, 1.442695
    %v42 = vpow.pop %v41
    %v43 = vadd.f32 %v42, 1.0
    %v44 = vrcp.pop %v43
    %v45 = vmul.f32 1.0, %v44
    %v46 = vmul.f32 %v39, %v45
    %v47 = vld [vmem:[%s1] sm:$0xff]
    %v48 = vld [vmem:[%s1 + $0x8] sm:$0xff]
    %vm49 = vcmp.ge.f32.partialorder %v39, -2.2
    %v50 = vsel %vm49, 1, 0
    %v51 = vcvt.s32.f32 %v50
    %vm52 = vcmp.ge.f32.partialorder %v39, -1.8
    %v53 = vsel %vm52, 1, 0
    %v54 = vcvt.s32.f32 %v53
    %vm55 = vcmp.ge.f32.partialorder %v39, -1.4
    %v56 = vsel %vm55, 1, 0
    %v57 = vcvt.s32.f32 %v56
    %vm58 = vcmp.ge.f32.partialorder %v39, -1.0
    %v59 = vsel %vm58, 1, 0
    %v60 = vcvt.s32.f32 %v59
    %vm61 = vcmp.ge.f32.partialorder %v39, -0.6
    %v62 = vsel %vm61, 1, 0
    %v63 = vcvt.s32.f32 %v62
    %vm64 = vcmp.ge.f32.partialorder %v39, -0.19999999
    %v65 = vsel %vm64, 1, 0
    %v66 = vcvt.s32.f32 %v65
    %vm67 = vcmp.ge.f32.partialorder %v39, 0.20000005
    %v68 = vsel %vm67, 1, 0
    %v69 = vcvt.s32.f32 %v68
    %vm70 = vcmp.ge.f32.partialorder %v39, 0.6
    %v71 = vsel %vm70, 1, 0
    %v72 = vcvt.s32.f32 %v71
    %vm73 = vcmp.ge.f32.partialorder %v39, 1.0
    %v74 = vsel %vm73, 1, 0
    %v75 = vcvt.s32.f32 %v74
    %vm76 = vcmp.ge.f32.partialorder %v39, 1.4000001
    %v77 = vsel %vm76, 1, 0
    %v78 = vcvt.s32.f32 %v77
    %vm79 = vcmp.ge.f32.partialorder %v39, 1.8
    %v80 = vsel %vm79, 1, 0
    %v81 = vcvt.s32.f32 %v80
    %vm82 = vcmp.ge.f32.partialorder %v39, 2.2
    %v83 = vsel %vm82, 1, 0
    %v84 = vcvt.s32.f32 %v83
    %v85 = vsub.f32 %v51, %v54
    %v86 = vsub.f32 %v54, %v57
    %v87 = vsub.f32 %v57, %v60
    %v88 = vsub.f32 %v60, %v63
    %v89 = vsub.f32 %v63, %v66
    %v90 = vsub.f32 %v66, %v69
    %v91 = vsub.f32 %v69, %v72
    %v92 = vsub.f32 %v72, %v75
    %v93 = vsub.f32 %v75, %v78
    %v94 = vsub.f32 %v78, %v81
    %v95 = vsub.f32 %v81, %v84
    %v96 = vsub.f32 %v39, -2.2
    %v97 = vmul.f32 %v96, 2.4999995
    %v98 = vmul.f32 %v97, %v85
    %v99 = vsub.f32 -1.4, %v39
    %v100 = vmul.f32 %v99, 2.5000002
    %v101 = vmul.f32 %v100, %v86
    %v102 = vadd.f32 %v98, %v101
    %v103 = vsub.f32 %v39, -1.8
    %v104 = vmul.f32 %v103, 2.5000002
    %v105 = vmul.f32 %v104, %v86
    %v106 = vsub.f32 -1.0, %v39
    %v107 = vmul.f32 %v106, 2.5000002
    %v108 = vmul.f32 %v107, %v87
    %v109 = vadd.f32 %v105, %v108
    %v110 = vsub.f32 %v39, -1.4
    %v111 = vmul.f32 %v110, 2.5000002
    %v112 = vmul.f32 %v111, %v87
    %v113 = vsub.f32 -0.6, %v39
    %v114 = vmul.f32 %v113, 2.5000002
    %v115 = vmul.f32 %v114, %v88
    %v116 = vadd.f32 %v112, %v115
    %v117 = vsub.f32 %v39, -1.0
    %v118 = vmul.f32 %v117, 2.5000002
    %v119 = vmul.f32 %v118, %v88
    %v120 = vsub.f32 -0.19999999, %v39
    %v121 = vmul.f32 %v120, 2.4999998
    %v122 = vmul.f32 %v121, %v89
    %v123 = vadd.f32 %v119, %v122
    %v124 = vsub.f32 %v39, -0.6
    %v125 = vmul.f32 %v124, 2.4999998
    %v126 = vmul.f32 %v125, %v89
    %v127 = vsub.f32 0.20000005, %v39
    %v128 = vmul.f32 %v127, 2.4999998
    %v129 = vmul.f32 %v128, %v90
    %v130 = vadd.f32 %v126, %v129
    %v131 = vsub.f32 %v39, -0.19999999
    %v132 = vmul.f32 %v131, 2.4999998
    %v133 = vmul.f32 %v132, %v90
    %v134 = vsub.f32 0.6, %v39
    %v135 = vmul.f32 %v134, 2.5000002
    %v136 = vmul.f32 %v135, %v91
    %v137 = vadd.f32 %v133, %v136
    %v138 = vsub.f32 %v39, 0.20000005
    %v139 = vmul.f32 %v138, 2.5000002
    %v140 = vmul.f32 %v139, %v91
    %v141 = vsub.f32 1.0, %v39
    %v142 = vmul.f32 %v141, 2.5000002
    %v143 = vmul.f32 %v142, %v92
    %v144 = vadd.f32 %v140, %v143
    %v145 = vsub.f32 %v39, 0.6
    %v146 = vmul.f32 %v145, 2.5000002
    %v147 = vmul.f32 %v146, %v92
    %v148 = vsub.f32 1.4000001, %v39
    %v149 = vmul.f32 %v148, 2.4999995
    %v150 = vmul.f32 %v149, %v93
    %v151 = vadd.f32 %v147, %v150
    %v152 = vsub.f32 %v39, 1.0
    %v153 = vmul.f32 %v152, 2.4999995
    %v154 = vmul.f32 %v153, %v93
    %v155 = vsub.f32 1.8, %v39
    %v156 = vmul.f32 %v155, 2.500001
    %v157 = vmul.f32 %v156, %v94
    %v158 = vadd.f32 %v154, %v157
    %v159 = vsub.f32 %v39, 1.4000001
    %v160 = vmul.f32 %v159, 2.500001
    %v161 = vmul.f32 %v160, %v94
    %v162 = vsub.f32 2.2, %v39
    %v163 = vmul.f32 %v162, 2.4999995
    %v164 = vmul.f32 %v163, %v95
    %v165 = vadd.f32 %v161, %v164
    %v166 = vmul.f32 %v96, 1.2499999
    %v167 = vmul.f32 %v166, %v102
    %v168 = vmul.f32 %v106, 1.2500001
    %v169 = vmul.f32 %v168, %v109
    %v170 = vadd.f32 %v167, %v169
    %v171 = vmul.f32 %v103, 1.2500001
    %v172 = vmul.f32 %v171, %v109
    %v173 = vmul.f32 %v113, 1.2500001
    %v174 = vmul.f32 %v173, %v116
    %v175 = vadd.f32 %v172, %v174
    %v176 = vmul.f32 %v110, 1.2500001
    %v177 = vmul.f32 %v176, %v116
    %v178 = vmul.f32 %v120, 1.25
    %v179 = vmul.f32 %v178, %v123
    %v180 = vadd.f32 %v177, %v179
    %v181 = vmul.f32 %v117, 1.25
    %v182 = vmul.f32 %v181, %v123
    %v183 = vmul.f32 %v127, 1.2499999
    %v184 = vmul.f32 %v183, %v130
    %v185 = vadd.f32 %v182, %v184
    %v186 = vmul.f32 %v124, 1.2499999
    %v187 = vmul.f32 %v186, %v130
    %v188 = vmul.f32 %v134, 1.25
    %v189 = vmul.f32 %v188, %v137
    %v190 = vadd.f32 %v187, %v189
    %v191 = vmul.f32 %v131, 1.25
    %v192 = vmul.f32 %v191, %v137
    %v193 = vmul.f32 %v141, 1.2500001
    %v194 = vmul.f32 %v193, %v144
    %v195 = vadd.f32 %v192, %v194
    %v196 = vmul.f32 %v138, 1.2500001
    %v197 = vmul.f32 %v196, %v144
    %v198 = vmul.f32 %v148, 1.2499999
    %v199 = vmul.f32 %v198, %v151
    %v200 = vadd.f32 %v197, %v199
    %v201 = vmul.f32 %v145, 1.2499999
    %v202 = vmul.f32 %v201, %v151
    %v203 = vmul.f32 %v155, 1.2500001
    %v204 = vmul.f32 %v203, %v158
    %v205 = vadd.f32 %v202, %v204
    %v206 = vmul.f32 %v152, 1.2500001
    %v207 = vmul.f32 %v206, %v158
    %v208 = vmul.f32 %v162, 1.2500001
    %v209 = vmul.f32 %v208, %v165
    %v210 = vadd.f32 %v207, %v209
    %v211 = vmul.f32 %v96, 0.8333333
    %v212 = vmul.f32 %v211, %v170
    %v213 = vmul.f32 %v113, 0.8333334
    %v214 = vmul.f32 %v213, %v175
    %v215 = vadd.f32 %v212, %v214
    %v216 = vmul.f32 %v103, 0.8333334
    %v217 = vmul.f32 %v216, %v175
    %v218 = vmul.f32 %v120, 0.8333333
    %v219 = vmul.f32 %v218, %v180
    %v220 = vadd.f32 %v217, %v219
    %v221 = vmul.f32 %v110, 0.8333333
    %v222 = vmul.f32 %v221, %v180
    %v223 = vmul.f32 %v127, 0.8333333
    %v224 = vmul.f32 %v223, %v185
    %v225 = vadd.f32 %v222, %v224
    %v226 = vmul.f32 %v117, 0.8333333
    %v227 = vmul.f32 %v226, %v185
    %v228 = vmul.f32 %v134, 0.8333333
    %v229 = vmul.f32 %v228, %v190
    %v230 = vadd.f32 %v227, %v229
    %v231 = vmul.f32 %v124, 0.8333333
    %v232 = vmul.f32 %v231, %v190
    %v233 = vmul.f32 %v141, 0.8333333
    %v234 = vmul.f32 %v233, %v195
    %v235 = vadd.f32 %v232, %v234
    %v236 = vmul.f32 %v131, 0.8333333
    %v237 = vmul.f32 %v236, %v195
    %v238 = vmul.f32 %v148, 0.8333333
    %v239 = vmul.f32 %v238, %v200
    %v240 = vadd.f32 %v237, %v239
    %v241 = vmul.f32 %v138, 0.8333333
    %v242 = vmul.f32 %v241, %v200
    %v243 = vmul.f32 %v155, 0.8333334
    %v244 = vmul.f32 %v243, %v205
    %v245 = vadd.f32 %v242, %v244
    %v246 = vmul.f32 %v145, 0.8333334
    %v247 = vmul.f32 %v246, %v205
    %v248 = vmul.f32 %v162, 0.8333333
    %v249 = vmul.f32 %v248, %v210
    %v250 = vadd.f32 %v247, %v249
    %252 = vrot.lane.b32.xlu0 %v220, 16
    %v253 = vpop.permute.xlu0 %252
    %256 = vrot.lane.b32.xlu0 %v225, 32
    %v257 = vpop.permute.xlu0 %256
    %260 = vrot.lane.b32.xlu0 %v230, 48
    %v261 = vpop.permute.xlu0 %260
    %264 = vrot.lane.b32.xlu0 %v235, 64
    %v265 = vpop.permute.xlu0 %264
    %268 = vrot.lane.b32.xlu0 %v240, 80
    %v269 = vpop.permute.xlu0 %268
    %272 = vrot.lane.b32.xlu0 %v245, 96
    %v273 = vpop.permute.xlu0 %272
    %276 = vrot.lane.b32.xlu0 %v250, 112
    %v277 = vpop.permute.xlu0 %276
    %vm279 = vcmask 130048
    %v280 = vsel %vm279, %v215, %v253
    %vm281 = vcmask 261120
    %v282 = vsel %vm281, %v280, %v257
    %vm283 = vcmask 392192
    %v284 = vsel %vm283, %v282, %v261
    %vm285 = vcmask 523264
    %v286 = vsel %vm285, %v284, %v265
    %vm287 = vcmask 654336
    %v288 = vsel %vm287, %v286, %v269
    %vm289 = vcmask 785408
    %v290 = vsel %vm289, %v288, %v273
    %vm291 = vcmask 916480
    %v292 = vsel %vm291, %v290, %v277
    %v293 = vld [vmem:[%s2] sm:$0xff]
    %v294 = vld [vmem:[%s2 + $0x8] sm:$0xff]
    %v295 = vld [vmem:[%s2 + $0x10] sm:$0xff]
    %v296 = vld [vmem:[%s2 + $0x18] sm:$0xff]
    %v297 = vld [vmem:[%s2 + $0x20] sm:$0xff]
    %v298 = vld [vmem:[%s2 + $0x28] sm:$0xff]
    %v299 = vld [vmem:[%s2 + $0x30] sm:$0xff]
    %v300 = vld [vmem:[%s2 + $0x38] sm:$0xff]
    %v301 = vld [vmem:[%s2 + $0x40] sm:$0xff]
    %v302 = vld [vmem:[%s2 + $0x48] sm:$0xff]
    %v303 = vld [vmem:[%s2 + $0x50] sm:$0xff]
    %v304 = vld [vmem:[%s2 + $0x58] sm:$0xff]
    %v305 = vld [vmem:[%s2 + $0x60] sm:$0xff]
    %v306 = vld [vmem:[%s2 + $0x68] sm:$0xff]
    %v307 = vld [vmem:[%s2 + $0x70] sm:$0xff]
    %v308 = vld [vmem:[%s2 + $0x78] sm:$0xff]
    %309 = vmatprep.subr.mxu0 0.0
    %310 = vmatpush1.msra.mxu0 %v293
    %311 = vmatprep.subr.mxu0 0.0
    %312 = vmatpush1.msra.mxu0 %v294
    %313 = vmatprep.subr.mxu0 0.0
    %314 = vmatpush1.msra.mxu0 %v295
    %315 = vmatprep.subr.mxu0 0.0
    %316 = vmatpush1.msra.mxu0 %v296
    %317 = vmatprep.subr.mxu0 0.0
    %318 = vmatpush1.msra.mxu0 %v297
    %319 = vmatprep.subr.mxu0 0.0
    %320 = vmatpush1.msra.mxu0 %v298
    %321 = vmatprep.subr.mxu0 0.0
    %322 = vmatpush1.msra.mxu0 %v299
    %323 = vmatprep.subr.mxu0 0.0
    %324 = vmatpush1.msra.mxu0 %v300
    %325 = vmatprep.subr.mxu0 0.0
    %326 = vmatpush1.msra.mxu0 %v301
    %327 = vmatprep.subr.mxu0 0.0
    %328 = vmatpush1.msra.mxu0 %v302
    %329 = vmatprep.subr.mxu0 0.0
    %330 = vmatpush1.msra.mxu0 %v303
    %331 = vmatprep.subr.mxu0 0.0
    %332 = vmatpush1.msra.mxu0 %v304
    %333 = vmatprep.subr.mxu0 0.0
    %334 = vmatpush1.msra.mxu0 %v305
    %335 = vmatprep.subr.mxu0 0.0
    %336 = vmatpush1.msra.mxu0 %v306
    %337 = vmatprep.subr.mxu0 0.0
    %338 = vmatpush1.msra.mxu0 %v307
    %339 = vmatprep.subr.mxu0 0.0
    %340 = vmatpush1.msra.mxu0 %v308
    %341 = vmatprep.subr.mxu0 0.0
    %342 = vmatpush1.msra.mxu0 0.0
    %343 = vmatprep.subr.mxu0 0.0
    %344 = vmatpush1.msra.mxu0 0.0
    %345 = vmatprep.subr.mxu0 0.0
    %346 = vmatpush1.msra.mxu0 0.0
    %347 = vmatprep.subr.mxu0 0.0
    %348 = vmatpush1.msra.mxu0 0.0
    %349 = vmatprep.subr.mxu0 0.0
    %350 = vmatpush1.msra.mxu0 0.0
    %351 = vmatprep.subr.mxu0 0.0
    %352 = vmatpush1.msra.mxu0 0.0
    %353 = vmatprep.subr.mxu0 0.0
    %354 = vmatpush1.msra.mxu0 0.0
    %355 = vmatprep.subr.mxu0 0.0
    %356 = vmatpush1.msra.mxu0 0.0
    %357 = vmatprep.subr.mxu0 0.0
    %358 = vmatpush1.msra.mxu0 0.0
    %359 = vmatprep.subr.mxu0 0.0
    %360 = vmatpush1.msra.mxu0 0.0
    %361 = vmatprep.subr.mxu0 0.0
    %362 = vmatpush1.msra.mxu0 0.0
    %363 = vmatprep.subr.mxu0 0.0
    %364 = vmatpush1.msra.mxu0 0.0
    %365 = vmatprep.subr.mxu0 0.0
    %366 = vmatpush1.msra.mxu0 0.0
    %367 = vmatprep.subr.mxu0 0.0
    %368 = vmatpush1.msra.mxu0 0.0
    %369 = vmatprep.subr.mxu0 0.0
    %370 = vmatpush1.msra.mxu0 0.0
    %371 = vmatprep.subr.mxu0 0.0
    %372 = vmatpush1.msra.mxu0 0.0
    %373 = vmatprep.mubr.f32.mxu0 0.0
    %374 = vmatmul.mubr.f32.gmra.mrb[0].mxu0 %v292
    %v375 = vpop.f32.mrb[0].mxu0
    %v376 = vadd.f32 0.0, %v375
    %v377 = vpop.f32.mrb[0].mxu0
    %378 = vdwg.mxu0
    %v380 = vsel %vm279, %v46, 0
    %382 = vmatprep.subr.mxu0 0.0
    %383 = vmatpush1.msra.mxu0 %v47
    %384 = vmatprep.subr.mxu0 0.0
    %385 = vmatpush1.msra.mxu0 %v48
    %386 = vmatprep.subr.mxu0 0.0
    %387 = vmatpush1.msra.mxu0 0.0
    %388 = vmatprep.subr.mxu0 0.0
    %389 = vmatpush1.msra.mxu0 0.0
    %390 = vmatprep.subr.mxu0 0.0
    %391 = vmatpush1.msra.mxu0 0.0
    %392 = vmatprep.subr.mxu0 0.0
    %393 = vmatpush1.msra.mxu0 0.0
    %394 = vmatprep.subr.mxu0 0.0
    %395 = vmatpush1.msra.mxu0 0.0
    %396 = vmatprep.subr.mxu0 0.0
    %397 = vmatpush1.msra.mxu0 0.0
    %398 = vmatprep.subr.mxu0 0.0
    %399 = vmatpush1.msra.mxu0 0.0
    %400 = vmatprep.subr.mxu0 0.0
    %401 = vmatpush1.msra.mxu0 0.0
    %402 = vmatprep.subr.mxu0 0.0
    %403 = vmatpush1.msra.mxu0 0.0
    %404 = vmatprep.subr.mxu0 0.0
    %405 = vmatpush1.msra.mxu0 0.0
    %406 = vmatprep.subr.mxu0 0.0
    %407 = vmatpush1.msra.mxu0 0.0
    %408 = vmatprep.subr.mxu0 0.0
    %409 = vmatpush1.msra.mxu0 0.0
    %410 = vmatprep.subr.mxu0 0.0
    %411 = vmatpush1.msra.mxu0 0.0
    %412 = vmatprep.subr.mxu0 0.0
    %413 = vmatpush1.msra.mxu0 0.0
    %414 = vmatprep.subr.mxu0 0.0
    %415 = vmatpush1.msra.mxu0 0.0
    %416 = vmatprep.subr.mxu0 0.0
    %417 = vmatpush1.msra.mxu0 0.0
    %418 = vmatprep.subr.mxu0 0.0
    %419 = vmatpush1.msra.mxu0 0.0
    %420 = vmatprep.subr.mxu0 0.0
    %421 = vmatpush1.msra.mxu0 0.0
    %422 = vmatprep.subr.mxu0 0.0
    %423 = vmatpush1.msra.mxu0 0.0
    %424 = vmatprep.subr.mxu0 0.0
    %425 = vmatpush1.msra.mxu0 0.0
    %426 = vmatprep.subr.mxu0 0.0
    %427 = vmatpush1.msra.mxu0 0.0
    %428 = vmatprep.subr.mxu0 0.0
    %429 = vmatpush1.msra.mxu0 0.0
    %430 = vmatprep.subr.mxu0 0.0
    %431 = vmatpush1.msra.mxu0 0.0
    %432 = vmatprep.subr.mxu0 0.0
    %433 = vmatpush1.msra.mxu0 0.0
    %434 = vmatprep.subr.mxu0 0.0
    %435 = vmatpush1.msra.mxu0 0.0
    %436 = vmatprep.subr.mxu0 0.0
    %437 = vmatpush1.msra.mxu0 0.0
    %438 = vmatprep.subr.mxu0 0.0
    %439 = vmatpush1.msra.mxu0 0.0
    %440 = vmatprep.subr.mxu0 0.0
    %441 = vmatpush1.msra.mxu0 0.0
    %442 = vmatprep.subr.mxu0 0.0
    %443 = vmatpush1.msra.mxu0 0.0
    %444 = vmatprep.subr.mxu0 0.0
    %445 = vmatpush1.msra.mxu0 0.0
    %446 = vmatprep.mubr.f32.mxu0 0.0
    %447 = vmatmul.mubr.f32.gmra.mrb[0].mxu0 %v380
    %v448 = vpop.f32.mrb[0].mxu0
    %v449 = vadd.f32 %v376, %v448
    %v450 = vpop.f32.mrb[0].mxu0
    %451 = vdwg.mxu0
    %v452 = vsel %vm285, %v449, 0.0
    %453 = vadd.xlane.f32.xlu0 %v452
    %v454 = vpop.xlane.xlu0 %453
    %v455 = vrcp.pop 64.0
    %v456 = vmul.f32 %v454, %v455
    %v457 = vsub.f32 %v449, %v456
    %v458 = vmul.f32 %v457, %v457
    %v459 = vsel %vm285, %v458, 0.0
    %460 = vadd.xlane.f32.xlu0 %v459
    %v461 = vpop.xlane.xlu0 %460
    %v462 = vmul.f32 %v461, %v455
    %v463 = vadd.f32 %v462, 1e-05
    %v464 = vrsqrt.pop %v463
    %v465 = vmul.f32 %v457, %v464
    %v466 = vld [vmem:[%s3] sm:$0x1]
    %v468 = vlaneseq
    %v469 = vshrl.u32 %v468, 7
    %v470 = vsub.s32 0, %v469
    %v471 = vrot.slane %v466, %v470
    %v473 = vmul.f32 %v465, %v471
    %v474 = vld [vmem:[%s4] sm:$0x1]
    %v476 = vlaneseq
    %v477 = vshrl.u32 %v476, 7
    %v478 = vsub.s32 0, %v477
    %v479 = vrot.slane %v474, %v478
    %v481 = vadd.f32 %v473, %v479
    %v482 = vxor.u32 %v481, 2147483648
    %v483 = vmul.f32 %v482, 1.442695
    %v484 = vpow.pop %v483
    %v485 = vadd.f32 %v484, 1.0
    %v486 = vrcp.pop %v485
    %v487 = vmul.f32 1.0, %v486
    %v488 = vmul.f32 %v481, %v487
    %v489 = vld [vmem:[%s5] sm:$0xff]
    %v490 = vld [vmem:[%s5 + $0x8] sm:$0xff]
    %v491 = vld [vmem:[%s5 + $0x10] sm:$0xff]
    %v492 = vld [vmem:[%s5 + $0x18] sm:$0xff]
    %v493 = vld [vmem:[%s5 + $0x20] sm:$0xff]
    %v494 = vld [vmem:[%s5 + $0x28] sm:$0xff]
    %v495 = vld [vmem:[%s5 + $0x30] sm:$0xff]
    %v496 = vld [vmem:[%s5 + $0x38] sm:$0xff]
    %vm497 = vcmp.ge.f32.partialorder %v481, -2.2
    %v498 = vsel %vm497, 1, 0
    %v499 = vcvt.s32.f32 %v498
    %vm500 = vcmp.ge.f32.partialorder %v481, -1.8
    %v501 = vsel %vm500, 1, 0
    %v502 = vcvt.s32.f32 %v501
    %vm503 = vcmp.ge.f32.partialorder %v481, -1.4
    %v504 = vsel %vm503, 1, 0
    %v505 = vcvt.s32.f32 %v504
    %vm506 = vcmp.ge.f32.partialorder %v481, -1.0
    %v507 = vsel %vm506, 1, 0
    %v508 = vcvt.s32.f32 %v507
    %vm509 = vcmp.ge.f32.partialorder %v481, -0.6
    %v510 = vsel %vm509, 1, 0
    %v511 = vcvt.s32.f32 %v510
    %vm512 = vcmp.ge.f32.partialorder %v481, -0.19999999
    %v513 = vsel %vm512, 1, 0
    %v514 = vcvt.s32.f32 %v513
    %vm515 = vcmp.ge.f32.partialorder %v481, 0.20000005
    %v516 = vsel %vm515, 1, 0
    %v517 = vcvt.s32.f32 %v516
    %vm518 = vcmp.ge.f32.partialorder %v481, 0.6
    %v519 = vsel %vm518, 1, 0
    %v520 = vcvt.s32.f32 %v519
    %vm521 = vcmp.ge.f32.partialorder %v481, 1.0
    %v522 = vsel %vm521, 1, 0
    %v523 = vcvt.s32.f32 %v522
    %vm524 = vcmp.ge.f32.partialorder %v481, 1.4000001
    %v525 = vsel %vm524, 1, 0
    %v526 = vcvt.s32.f32 %v525
    %vm527 = vcmp.ge.f32.partialorder %v481, 1.8
    %v528 = vsel %vm527, 1, 0
    %v529 = vcvt.s32.f32 %v528
    %vm530 = vcmp.ge.f32.partialorder %v481, 2.2
    %v531 = vsel %vm530, 1, 0
    %v532 = vcvt.s32.f32 %v531
    %v533 = vsub.f32 %v499, %v502
    %v534 = vsub.f32 %v502, %v505
    %v535 = vsub.f32 %v505, %v508
    %v536 = vsub.f32 %v508, %v511
    %v537 = vsub.f32 %v511, %v514
    %v538 = vsub.f32 %v514, %v517
    %v539 = vsub.f32 %v517, %v520
    %v540 = vsub.f32 %v520, %v523
    %v541 = vsub.f32 %v523, %v526
    %v542 = vsub.f32 %v526, %v529
    %v543 = vsub.f32 %v529, %v532
    %v544 = vsub.f32 %v481, -2.2
    %v545 = vmul.f32 %v544, 2.4999995
    %v546 = vmul.f32 %v545, %v533
    %v547 = vsub.f32 -1.4, %v481
    %v548 = vmul.f32 %v547, 2.5000002
    %v549 = vmul.f32 %v548, %v534
    %v550 = vadd.f32 %v546, %v549
    %v551 = vsub.f32 %v481, -1.8
    %v552 = vmul.f32 %v551, 2.5000002
    %v553 = vmul.f32 %v552, %v534
    %v554 = vsub.f32 -1.0, %v481
    %v555 = vmul.f32 %v554, 2.5000002
    %v556 = vmul.f32 %v555, %v535
    %v557 = vadd.f32 %v553, %v556
    %v558 = vsub.f32 %v481, -1.4
    %v559 = vmul.f32 %v558, 2.5000002
    %v560 = vmul.f32 %v559, %v535
    %v561 = vsub.f32 -0.6, %v481
    %v562 = vmul.f32 %v561, 2.5000002
    %v563 = vmul.f32 %v562, %v536
    %v564 = vadd.f32 %v560, %v563
    %v565 = vsub.f32 %v481, -1.0
    %v566 = vmul.f32 %v565, 2.5000002
    %v567 = vmul.f32 %v566, %v536
    %v568 = vsub.f32 -0.19999999, %v481
    %v569 = vmul.f32 %v568, 2.4999998
    %v570 = vmul.f32 %v569, %v537
    %v571 = vadd.f32 %v567, %v570
    %v572 = vsub.f32 %v481, -0.6
    %v573 = vmul.f32 %v572, 2.4999998
    %v574 = vmul.f32 %v573, %v537
    %v575 = vsub.f32 0.20000005, %v481
    %v576 = vmul.f32 %v575, 2.4999998
    %v577 = vmul.f32 %v576, %v538
    %v578 = vadd.f32 %v574, %v577
    %v579 = vsub.f32 %v481, -0.19999999
    %v580 = vmul.f32 %v579, 2.4999998
    %v581 = vmul.f32 %v580, %v538
    %v582 = vsub.f32 0.6, %v481
    %v583 = vmul.f32 %v582, 2.5000002
    %v584 = vmul.f32 %v583, %v539
    %v585 = vadd.f32 %v581, %v584
    %v586 = vsub.f32 %v481, 0.20000005
    %v587 = vmul.f32 %v586, 2.5000002
    %v588 = vmul.f32 %v587, %v539
    %v589 = vsub.f32 1.0, %v481
    %v590 = vmul.f32 %v589, 2.5000002
    %v591 = vmul.f32 %v590, %v540
    %v592 = vadd.f32 %v588, %v591
    %v593 = vsub.f32 %v481, 0.6
    %v594 = vmul.f32 %v593, 2.5000002
    %v595 = vmul.f32 %v594, %v540
    %v596 = vsub.f32 1.4000001, %v481
    %v597 = vmul.f32 %v596, 2.4999995
    %v598 = vmul.f32 %v597, %v541
    %v599 = vadd.f32 %v595, %v598
    %v600 = vsub.f32 %v481, 1.0
    %v601 = vmul.f32 %v600, 2.4999995
    %v602 = vmul.f32 %v601, %v541
    %v603 = vsub.f32 1.8, %v481
    %v604 = vmul.f32 %v603, 2.500001
    %v605 = vmul.f32 %v604, %v542
    %v606 = vadd.f32 %v602, %v605
    %v607 = vsub.f32 %v481, 1.4000001
    %v608 = vmul.f32 %v607, 2.500001
    %v609 = vmul.f32 %v608, %v542
    %v610 = vsub.f32 2.2, %v481
    %v611 = vmul.f32 %v610, 2.4999995
    %v612 = vmul.f32 %v611, %v543
    %v613 = vadd.f32 %v609, %v612
    %v614 = vmul.f32 %v544, 1.2499999
    %v615 = vmul.f32 %v614, %v550
    %v616 = vmul.f32 %v554, 1.2500001
    %v617 = vmul.f32 %v616, %v557
    %v618 = vadd.f32 %v615, %v617
    %v619 = vmul.f32 %v551, 1.2500001
    %v620 = vmul.f32 %v619, %v557
    %v621 = vmul.f32 %v561, 1.2500001
    %v622 = vmul.f32 %v621, %v564
    %v623 = vadd.f32 %v620, %v622
    %v624 = vmul.f32 %v558, 1.2500001
    %v625 = vmul.f32 %v624, %v564
    %v626 = vmul.f32 %v568, 1.25
    %v627 = vmul.f32 %v626, %v571
    %v628 = vadd.f32 %v625, %v627
    %v629 = vmul.f32 %v565, 1.25
    %v630 = vmul.f32 %v629, %v571
    %v631 = vmul.f32 %v575, 1.2499999
    %v632 = vmul.f32 %v631, %v578
    %v633 = vadd.f32 %v630, %v632
    %v634 = vmul.f32 %v572, 1.2499999
    %v635 = vmul.f32 %v634, %v578
    %v636 = vmul.f32 %v582, 1.25
    %v637 = vmul.f32 %v636, %v585
    %v638 = vadd.f32 %v635, %v637
    %v639 = vmul.f32 %v579, 1.25
    %v640 = vmul.f32 %v639, %v585
    %v641 = vmul.f32 %v589, 1.2500001
    %v642 = vmul.f32 %v641, %v592
    %v643 = vadd.f32 %v640, %v642
    %v644 = vmul.f32 %v586, 1.2500001
    %v645 = vmul.f32 %v644, %v592
    %v646 = vmul.f32 %v596, 1.2499999
    %v647 = vmul.f32 %v646, %v599
    %v648 = vadd.f32 %v645, %v647
    %v649 = vmul.f32 %v593, 1.2499999
    %v650 = vmul.f32 %v649, %v599
    %v651 = vmul.f32 %v603, 1.2500001
    %v652 = vmul.f32 %v651, %v606
    %v653 = vadd.f32 %v650, %v652
    %v654 = vmul.f32 %v600, 1.2500001
    %v655 = vmul.f32 %v654, %v606
    %v656 = vmul.f32 %v610, 1.2500001
    %v657 = vmul.f32 %v656, %v613
    %v658 = vadd.f32 %v655, %v657
    %v659 = vmul.f32 %v544, 0.8333333
    %v660 = vmul.f32 %v659, %v618
    %v661 = vmul.f32 %v561, 0.8333334
    %v662 = vmul.f32 %v661, %v623
    %v663 = vadd.f32 %v660, %v662
    %v664 = vmul.f32 %v551, 0.8333334
    %v665 = vmul.f32 %v664, %v623
    %v666 = vmul.f32 %v568, 0.8333333
    %v667 = vmul.f32 %v666, %v628
    %v668 = vadd.f32 %v665, %v667
    %v669 = vmul.f32 %v558, 0.8333333
    %v670 = vmul.f32 %v669, %v628
    %v671 = vmul.f32 %v575, 0.8333333
    %v672 = vmul.f32 %v671, %v633
    %v673 = vadd.f32 %v670, %v672
    %v674 = vmul.f32 %v565, 0.8333333
    %v675 = vmul.f32 %v674, %v633
    %v676 = vmul.f32 %v582, 0.8333333
    %v677 = vmul.f32 %v676, %v638
    %v678 = vadd.f32 %v675, %v677
    %v679 = vmul.f32 %v572, 0.8333333
    %v680 = vmul.f32 %v679, %v638
    %v681 = vmul.f32 %v589, 0.8333333
    %v682 = vmul.f32 %v681, %v643
    %v683 = vadd.f32 %v680, %v682
    %v684 = vmul.f32 %v579, 0.8333333
    %v685 = vmul.f32 %v684, %v643
    %v686 = vmul.f32 %v596, 0.8333333
    %v687 = vmul.f32 %v686, %v648
    %v688 = vadd.f32 %v685, %v687
    %v689 = vmul.f32 %v586, 0.8333333
    %v690 = vmul.f32 %v689, %v648
    %v691 = vmul.f32 %v603, 0.8333334
    %v692 = vmul.f32 %v691, %v653
    %v693 = vadd.f32 %v690, %v692
    %v694 = vmul.f32 %v593, 0.8333334
    %v695 = vmul.f32 %v694, %v653
    %v696 = vmul.f32 %v610, 0.8333333
    %v697 = vmul.f32 %v696, %v658
    %v698 = vadd.f32 %v695, %v697
    %700 = vrot.lane.b32.xlu0 %v668, 64
    %v701 = vpop.permute.xlu0 %700
    %704 = vrot.lane.b32.xlu0 %v678, 64
    %v705 = vpop.permute.xlu0 %704
    %708 = vrot.lane.b32.xlu0 %v688, 64
    %v709 = vpop.permute.xlu0 %708
    %712 = vrot.lane.b32.xlu0 %v698, 64
    %v713 = vpop.permute.xlu0 %712
    %v715 = vsel %vm285, %v663, %v701
    %v716 = vsel %vm285, %v673, %v705
    %v717 = vsel %vm285, %v683, %v709
    %v718 = vsel %vm285, %v693, %v713
    %v719 = vld [vmem:[%s6] sm:$0xff]
    %v720 = vld [vmem:[%s6 + $0x8] sm:$0xff]
    %v721 = vld [vmem:[%s6 + $0x10] sm:$0xff]
    %v722 = vld [vmem:[%s6 + $0x18] sm:$0xff]
    %v723 = vld [vmem:[%s6 + $0x20] sm:$0xff]
    %v724 = vld [vmem:[%s6 + $0x28] sm:$0xff]
    %v725 = vld [vmem:[%s6 + $0x30] sm:$0xff]
    %v726 = vld [vmem:[%s6 + $0x38] sm:$0xff]
    %v727 = vld [vmem:[%s6 + $0x40] sm:$0xff]
    %v728 = vld [vmem:[%s6 + $0x48] sm:$0xff]
    %v729 = vld [vmem:[%s6 + $0x50] sm:$0xff]
    %v730 = vld [vmem:[%s6 + $0x58] sm:$0xff]
    %v731 = vld [vmem:[%s6 + $0x60] sm:$0xff]
    %v732 = vld [vmem:[%s6 + $0x68] sm:$0xff]
    %v733 = vld [vmem:[%s6 + $0x70] sm:$0xff]
    %v734 = vld [vmem:[%s6 + $0x78] sm:$0xff]
    %v735 = vld [vmem:[%s6 + $0x80] sm:$0xff]
    %v736 = vld [vmem:[%s6 + $0x88] sm:$0xff]
    %v737 = vld [vmem:[%s6 + $0x90] sm:$0xff]
    %v738 = vld [vmem:[%s6 + $0x98] sm:$0xff]
    %v739 = vld [vmem:[%s6 + $0xa0] sm:$0xff]
    %v740 = vld [vmem:[%s6 + $0xa8] sm:$0xff]
    %v741 = vld [vmem:[%s6 + $0xb0] sm:$0xff]
    %v742 = vld [vmem:[%s6 + $0xb8] sm:$0xff]
    %v743 = vld [vmem:[%s6 + $0xc0] sm:$0xff]
    %v744 = vld [vmem:[%s6 + $0xc8] sm:$0xff]
    %v745 = vld [vmem:[%s6 + $0xd0] sm:$0xff]
    %v746 = vld [vmem:[%s6 + $0xd8] sm:$0xff]
    %v747 = vld [vmem:[%s6 + $0xe0] sm:$0xff]
    %v748 = vld [vmem:[%s6 + $0xe8] sm:$0xff]
    %v749 = vld [vmem:[%s6 + $0xf0] sm:$0xff]
    %v750 = vld [vmem:[%s6 + $0xf8] sm:$0xff]
    %v751 = vld [vmem:[%s6 + $0x100] sm:$0xff]
    %v752 = vld [vmem:[%s6 + $0x108] sm:$0xff]
    %v753 = vld [vmem:[%s6 + $0x110] sm:$0xff]
    %v754 = vld [vmem:[%s6 + $0x118] sm:$0xff]
    %v755 = vld [vmem:[%s6 + $0x120] sm:$0xff]
    %v756 = vld [vmem:[%s6 + $0x128] sm:$0xff]
    %v757 = vld [vmem:[%s6 + $0x130] sm:$0xff]
    %v758 = vld [vmem:[%s6 + $0x138] sm:$0xff]
    %v759 = vld [vmem:[%s6 + $0x140] sm:$0xff]
    %v760 = vld [vmem:[%s6 + $0x148] sm:$0xff]
    %v761 = vld [vmem:[%s6 + $0x150] sm:$0xff]
    %v762 = vld [vmem:[%s6 + $0x158] sm:$0xff]
    %v763 = vld [vmem:[%s6 + $0x160] sm:$0xff]
    %v764 = vld [vmem:[%s6 + $0x168] sm:$0xff]
    %v765 = vld [vmem:[%s6 + $0x170] sm:$0xff]
    %v766 = vld [vmem:[%s6 + $0x178] sm:$0xff]
    %v767 = vld [vmem:[%s6 + $0x180] sm:$0xff]
    %v768 = vld [vmem:[%s6 + $0x188] sm:$0xff]
    %v769 = vld [vmem:[%s6 + $0x190] sm:$0xff]
    %v770 = vld [vmem:[%s6 + $0x198] sm:$0xff]
    %v771 = vld [vmem:[%s6 + $0x1a0] sm:$0xff]
    %v772 = vld [vmem:[%s6 + $0x1a8] sm:$0xff]
    %v773 = vld [vmem:[%s6 + $0x1b0] sm:$0xff]
    %v774 = vld [vmem:[%s6 + $0x1b8] sm:$0xff]
    %v775 = vld [vmem:[%s6 + $0x1c0] sm:$0xff]
    %v776 = vld [vmem:[%s6 + $0x1c8] sm:$0xff]
    %v777 = vld [vmem:[%s6 + $0x1d0] sm:$0xff]
    %v778 = vld [vmem:[%s6 + $0x1d8] sm:$0xff]
    %v779 = vld [vmem:[%s6 + $0x1e0] sm:$0xff]
    %v780 = vld [vmem:[%s6 + $0x1e8] sm:$0xff]
    %v781 = vld [vmem:[%s6 + $0x1f0] sm:$0xff]
    %v782 = vld [vmem:[%s6 + $0x1f8] sm:$0xff]
    %783 = vmatprep.subr.mxu0 0.0
    %784 = vmatpush1.msra.mxu0 %v719
    %785 = vmatprep.subr.mxu0 0.0
    %786 = vmatpush1.msra.mxu0 %v720
    %787 = vmatprep.subr.mxu0 0.0
    %788 = vmatpush1.msra.mxu0 %v721
    %789 = vmatprep.subr.mxu0 0.0
    %790 = vmatpush1.msra.mxu0 %v722
    %791 = vmatprep.subr.mxu0 0.0
    %792 = vmatpush1.msra.mxu0 %v723
    %793 = vmatprep.subr.mxu0 0.0
    %794 = vmatpush1.msra.mxu0 %v724
    %795 = vmatprep.subr.mxu0 0.0
    %796 = vmatpush1.msra.mxu0 %v725
    %797 = vmatprep.subr.mxu0 0.0
    %798 = vmatpush1.msra.mxu0 %v726
    %799 = vmatprep.subr.mxu0 0.0
    %800 = vmatpush1.msra.mxu0 %v727
    %801 = vmatprep.subr.mxu0 0.0
    %802 = vmatpush1.msra.mxu0 %v728
    %803 = vmatprep.subr.mxu0 0.0
    %804 = vmatpush1.msra.mxu0 %v729
    %805 = vmatprep.subr.mxu0 0.0
    %806 = vmatpush1.msra.mxu0 %v730
    %807 = vmatprep.subr.mxu0 0.0
    %808 = vmatpush1.msra.mxu0 %v731
    %809 = vmatprep.subr.mxu0 0.0
    %810 = vmatpush1.msra.mxu0 %v732
    %811 = vmatprep.subr.mxu0 0.0
    %812 = vmatpush1.msra.mxu0 %v733
    %813 = vmatprep.subr.mxu0 0.0
    %814 = vmatpush1.msra.mxu0 %v734
    %815 = vmatprep.subr.mxu0 0.0
    %816 = vmatpush1.msra.mxu0 %v735
    %817 = vmatprep.subr.mxu0 0.0
    %818 = vmatpush1.msra.mxu0 %v736
    %819 = vmatprep.subr.mxu0 0.0
    %820 = vmatpush1.msra.mxu0 %v737
    %821 = vmatprep.subr.mxu0 0.0
    %822 = vmatpush1.msra.mxu0 %v738
    %823 = vmatprep.subr.mxu0 0.0
    %824 = vmatpush1.msra.mxu0 %v739
    %825 = vmatprep.subr.mxu0 0.0
    %826 = vmatpush1.msra.mxu0 %v740
    %827 = vmatprep.subr.mxu0 0.0
    %828 = vmatpush1.msra.mxu0 %v741
    %829 = vmatprep.subr.mxu0 0.0
    %830 = vmatpush1.msra.mxu0 %v742
    %831 = vmatprep.subr.mxu0 0.0
    %832 = vmatpush1.msra.mxu0 %v743
    %833 = vmatprep.subr.mxu0 0.0
    %834 = vmatpush1.msra.mxu0 %v744
    %835 = vmatprep.subr.mxu0 0.0
    %836 = vmatpush1.msra.mxu0 %v745
    %837 = vmatprep.subr.mxu0 0.0
    %838 = vmatpush1.msra.mxu0 %v746
    %839 = vmatprep.subr.mxu0 0.0
    %840 = vmatpush1.msra.mxu0 %v747
    %841 = vmatprep.subr.mxu0 0.0
    %842 = vmatpush1.msra.mxu0 %v748
    %843 = vmatprep.subr.mxu0 0.0
    %844 = vmatpush1.msra.mxu0 %v749
    %845 = vmatprep.subr.mxu0 0.0
    %846 = vmatpush1.msra.mxu0 %v750
    %847 = vmatprep.mubr.f32.mxu0 %v716
    %848 = vmatmul.mubr.f32.gmra.mrb[0].mxu0 %v715
    %v849 = vpop.f32.mrb[0].mxu0
    %v850 = vadd.f32 0.0, %v849
    %v851 = vpop.f32.mrb[0].mxu0
    %852 = vdwg.mxu0
    %853 = vmatprep.subr.mxu0 0.0
    %854 = vmatpush1.msra.mxu0 %v751
    %855 = vmatprep.subr.mxu0 0.0
    %856 = vmatpush1.msra.mxu0 %v752
    %857 = vmatprep.subr.mxu0 0.0
    %858 = vmatpush1.msra.mxu0 %v753
    %859 = vmatprep.subr.mxu0 0.0
    %860 = vmatpush1.msra.mxu0 %v754
    %861 = vmatprep.subr.mxu0 0.0
    %862 = vmatpush1.msra.mxu0 %v755
    %863 = vmatprep.subr.mxu0 0.0
    %864 = vmatpush1.msra.mxu0 %v756
    %865 = vmatprep.subr.mxu0 0.0
    %866 = vmatpush1.msra.mxu0 %v757
    %867 = vmatprep.subr.mxu0 0.0
    %868 = vmatpush1.msra.mxu0 %v758
    %869 = vmatprep.subr.mxu0 0.0
    %870 = vmatpush1.msra.mxu0 %v759
    %871 = vmatprep.subr.mxu0 0.0
    %872 = vmatpush1.msra.mxu0 %v760
    %873 = vmatprep.subr.mxu0 0.0
    %874 = vmatpush1.msra.mxu0 %v761
    %875 = vmatprep.subr.mxu0 0.0
    %876 = vmatpush1.msra.mxu0 %v762
    %877 = vmatprep.subr.mxu0 0.0
    %878 = vmatpush1.msra.mxu0 %v763
    %879 = vmatprep.subr.mxu0 0.0
    %880 = vmatpush1.msra.mxu0 %v764
    %881 = vmatprep.subr.mxu0 0.0
    %882 = vmatpush1.msra.mxu0 %v765
    %883 = vmatprep.subr.mxu0 0.0
    %884 = vmatpush1.msra.mxu0 %v766
    %885 = vmatprep.subr.mxu0 0.0
    %886 = vmatpush1.msra.mxu0 %v767
    %887 = vmatprep.subr.mxu0 0.0
    %888 = vmatpush1.msra.mxu0 %v768
    %889 = vmatprep.subr.mxu0 0.0
    %890 = vmatpush1.msra.mxu0 %v769
    %891 = vmatprep.subr.mxu0 0.0
    %892 = vmatpush1.msra.mxu0 %v770
    %893 = vmatprep.subr.mxu0 0.0
    %894 = vmatpush1.msra.mxu0 %v771
    %895 = vmatprep.subr.mxu0 0.0
    %896 = vmatpush1.msra.mxu0 %v772
    %897 = vmatprep.subr.mxu0 0.0
    %898 = vmatpush1.msra.mxu0 %v773
    %899 = vmatprep.subr.mxu0 0.0
    %900 = vmatpush1.msra.mxu0 %v774
    %901 = vmatprep.subr.mxu0 0.0
    %902 = vmatpush1.msra.mxu0 %v775
    %903 = vmatprep.subr.mxu0 0.0
    %904 = vmatpush1.msra.mxu0 %v776
    %905 = vmatprep.subr.mxu0 0.0
    %906 = vmatpush1.msra.mxu0 %v777
    %907 = vmatprep.subr.mxu0 0.0
    %908 = vmatpush1.msra.mxu0 %v778
    %909 = vmatprep.subr.mxu0 0.0
    %910 = vmatpush1.msra.mxu0 %v779
    %911 = vmatprep.subr.mxu0 0.0
    %912 = vmatpush1.msra.mxu0 %v780
    %913 = vmatprep.subr.mxu0 0.0
    %914 = vmatpush1.msra.mxu0 %v781
    %915 = vmatprep.subr.mxu0 0.0
    %916 = vmatpush1.msra.mxu0 %v782
    %917 = vmatprep.mubr.f32.mxu0 %v718
    %918 = vmatmul.mubr.f32.gmra.mrb[0].mxu0 %v717
    %v919 = vpop.f32.mrb[0].mxu0
    %v920 = vadd.f32 %v850, %v919
    %v921 = vpop.f32.mrb[0].mxu0
    %922 = vdwg.mxu0
    %v924 = vsel %vm285, %v488, 0
    %926 = vmatprep.subr.mxu0 0.0
    %927 = vmatpush1.msra.mxu0 %v489
    %928 = vmatprep.subr.mxu0 0.0
    %929 = vmatpush1.msra.mxu0 %v490
    %930 = vmatprep.subr.mxu0 0.0
    %931 = vmatpush1.msra.mxu0 %v491
    %932 = vmatprep.subr.mxu0 0.0
    %933 = vmatpush1.msra.mxu0 %v492
    %934 = vmatprep.subr.mxu0 0.0
    %935 = vmatpush1.msra.mxu0 %v493
    %936 = vmatprep.subr.mxu0 0.0
    %937 = vmatpush1.msra.mxu0 %v494
    %938 = vmatprep.subr.mxu0 0.0
    %939 = vmatpush1.msra.mxu0 %v495
    %940 = vmatprep.subr.mxu0 0.0
    %941 = vmatpush1.msra.mxu0 %v496
    %942 = vmatprep.subr.mxu0 0.0
    %943 = vmatpush1.msra.mxu0 0.0
    %944 = vmatprep.subr.mxu0 0.0
    %945 = vmatpush1.msra.mxu0 0.0
    %946 = vmatprep.subr.mxu0 0.0
    %947 = vmatpush1.msra.mxu0 0.0
    %948 = vmatprep.subr.mxu0 0.0
    %949 = vmatpush1.msra.mxu0 0.0
    %950 = vmatprep.subr.mxu0 0.0
    %951 = vmatpush1.msra.mxu0 0.0
    %952 = vmatprep.subr.mxu0 0.0
    %953 = vmatpush1.msra.mxu0 0.0
    %954 = vmatprep.subr.mxu0 0.0
    %955 = vmatpush1.msra.mxu0 0.0
    %956 = vmatprep.subr.mxu0 0.0
    %957 = vmatpush1.msra.mxu0 0.0
    %958 = vmatprep.subr.mxu0 0.0
    %959 = vmatpush1.msra.mxu0 0.0
    %960 = vmatprep.subr.mxu0 0.0
    %961 = vmatpush1.msra.mxu0 0.0
    %962 = vmatprep.subr.mxu0 0.0
    %963 = vmatpush1.msra.mxu0 0.0
    %964 = vmatprep.subr.mxu0 0.0
    %965 = vmatpush1.msra.mxu0 0.0
    %966 = vmatprep.subr.mxu0 0.0
    %967 = vmatpush1.msra.mxu0 0.0
    %968 = vmatprep.subr.mxu0 0.0
    %969 = vmatpush1.msra.mxu0 0.0
    %970 = vmatprep.subr.mxu0 0.0
    %971 = vmatpush1.msra.mxu0 0.0
    %972 = vmatprep.subr.mxu0 0.0
    %973 = vmatpush1.msra.mxu0 0.0
    %974 = vmatprep.subr.mxu0 0.0
    %975 = vmatpush1.msra.mxu0 0.0
    %976 = vmatprep.subr.mxu0 0.0
    %977 = vmatpush1.msra.mxu0 0.0
    %978 = vmatprep.subr.mxu0 0.0
    %979 = vmatpush1.msra.mxu0 0.0
    %980 = vmatprep.subr.mxu0 0.0
    %981 = vmatpush1.msra.mxu0 0.0
    %982 = vmatprep.subr.mxu0 0.0
    %983 = vmatpush1.msra.mxu0 0.0
    %984 = vmatprep.subr.mxu0 0.0
    %985 = vmatpush1.msra.mxu0 0.0
    %986 = vmatprep.subr.mxu0 0.0
    %987 = vmatpush1.msra.mxu0 0.0
    %988 = vmatprep.subr.mxu0 0.0
    %989 = vmatpush1.msra.mxu0 0.0
    %990 = vmatprep.mubr.f32.mxu0 0.0
    %991 = vmatmul.mubr.f32.gmra.mrb[0].mxu0 %v924
    %v992 = vpop.f32.mrb[0].mxu0
    %v993 = vadd.f32 %v920, %v992
    %v994 = vpop.f32.mrb[0].mxu0
    %995 = vdwg.mxu0
    %v996 = vsel %vm281, %v993, 0.0
    %997 = vadd.xlane.f32.xlu0 %v996
    %v998 = vpop.xlane.xlu0 %997
    %v999 = vrcp.pop 32.0
    %v1000 = vmul.f32 %v998, %v999
    %v1001 = vsub.f32 %v993, %v1000
    %v1002 = vmul.f32 %v1001, %v1001
    %v1003 = vsel %vm281, %v1002, 0.0
    %1004 = vadd.xlane.f32.xlu0 %v1003
    %v1005 = vpop.xlane.xlu0 %1004
    %v1006 = vmul.f32 %v1005, %v999
    %v1007 = vadd.f32 %v1006, 1e-05
    %v1008 = vrsqrt.pop %v1007
    %v1009 = vmul.f32 %v1001, %v1008
    %v1010 = vld [vmem:[%s7] sm:$0x1]
    %v1012 = vlaneseq
    %v1013 = vshrl.u32 %v1012, 7
    %v1014 = vsub.s32 0, %v1013
    %v1015 = vrot.slane %v1010, %v1014
    %v1017 = vmul.f32 %v1009, %v1015
    %v1018 = vld [vmem:[%s8] sm:$0x1]
    %v1020 = vlaneseq
    %v1021 = vshrl.u32 %v1020, 7
    %v1022 = vsub.s32 0, %v1021
    %v1023 = vrot.slane %v1018, %v1022
    %v1025 = vadd.f32 %v1017, %v1023
    %v1026 = vxor.u32 %v1025, 2147483648
    %v1027 = vmul.f32 %v1026, 1.442695
    %v1028 = vpow.pop %v1027
    %v1029 = vadd.f32 %v1028, 1.0
    %v1030 = vrcp.pop %v1029
    %v1031 = vmul.f32 1.0, %v1030
    %v1032 = vmul.f32 %v1025, %v1031
    %v1033 = vld [vmem:[%s9] sm:$0xff]
    %v1034 = vld [vmem:[%s9 + $0x8] sm:$0xff]
    %v1035 = vld [vmem:[%s9 + $0x10] sm:$0xff]
    %v1036 = vld [vmem:[%s9 + $0x18] sm:$0xff]
    %vm1037 = vcmp.ge.f32.partialorder %v1025, -2.2
    %v1038 = vsel %vm1037, 1, 0
    %v1039 = vcvt.s32.f32 %v1038
    %vm1040 = vcmp.ge.f32.partialorder %v1025, -1.8
    %v1041 = vsel %vm1040, 1, 0
    %v1042 = vcvt.s32.f32 %v1041
    %vm1043 = vcmp.ge.f32.partialorder %v1025, -1.4
    %v1044 = vsel %vm1043, 1, 0
    %v1045 = vcvt.s32.f32 %v1044
    %vm1046 = vcmp.ge.f32.partialorder %v1025, -1.0
    %v1047 = vsel %vm1046, 1, 0
    %v1048 = vcvt.s32.f32 %v1047
    %vm1049 = vcmp.ge.f32.partialorder %v1025, -0.6
    %v1050 = vsel %vm1049, 1, 0
    %v1051 = vcvt.s32.f32 %v1050
    %vm1052 = vcmp.ge.f32.partialorder %v1025, -0.19999999
    %v1053 = vsel %vm1052, 1, 0
    %v1054 = vcvt.s32.f32 %v1053
    %vm1055 = vcmp.ge.f32.partialorder %v1025, 0.20000005
    %v1056 = vsel %vm1055, 1, 0
    %v1057 = vcvt.s32.f32 %v1056
    %vm1058 = vcmp.ge.f32.partialorder %v1025, 0.6
    %v1059 = vsel %vm1058, 1, 0
    %v1060 = vcvt.s32.f32 %v1059
    %vm1061 = vcmp.ge.f32.partialorder %v1025, 1.0
    %v1062 = vsel %vm1061, 1, 0
    %v1063 = vcvt.s32.f32 %v1062
    %vm1064 = vcmp.ge.f32.partialorder %v1025, 1.4000001
    %v1065 = vsel %vm1064, 1, 0
    %v1066 = vcvt.s32.f32 %v1065
    %vm1067 = vcmp.ge.f32.partialorder %v1025, 1.8
    %v1068 = vsel %vm1067, 1, 0
    %v1069 = vcvt.s32.f32 %v1068
    %vm1070 = vcmp.ge.f32.partialorder %v1025, 2.2
    %v1071 = vsel %vm1070, 1, 0
    %v1072 = vcvt.s32.f32 %v1071
    %v1073 = vsub.f32 %v1039, %v1042
    %v1074 = vsub.f32 %v1042, %v1045
    %v1075 = vsub.f32 %v1045, %v1048
    %v1076 = vsub.f32 %v1048, %v1051
    %v1077 = vsub.f32 %v1051, %v1054
    %v1078 = vsub.f32 %v1054, %v1057
    %v1079 = vsub.f32 %v1057, %v1060
    %v1080 = vsub.f32 %v1060, %v1063
    %v1081 = vsub.f32 %v1063, %v1066
    %v1082 = vsub.f32 %v1066, %v1069
    %v1083 = vsub.f32 %v1069, %v1072
    %v1084 = vsub.f32 %v1025, -2.2
    %v1085 = vmul.f32 %v1084, 2.4999995
    %v1086 = vmul.f32 %v1085, %v1073
    %v1087 = vsub.f32 -1.4, %v1025
    %v1088 = vmul.f32 %v1087, 2.5000002
    %v1089 = vmul.f32 %v1088, %v1074
    %v1090 = vadd.f32 %v1086, %v1089
    %v1091 = vsub.f32 %v1025, -1.8
    %v1092 = vmul.f32 %v1091, 2.5000002
    %v1093 = vmul.f32 %v1092, %v1074
    %v1094 = vsub.f32 -1.0, %v1025
    %v1095 = vmul.f32 %v1094, 2.5000002
    %v1096 = vmul.f32 %v1095, %v1075
    %v1097 = vadd.f32 %v1093, %v1096
    %v1098 = vsub.f32 %v1025, -1.4
    %v1099 = vmul.f32 %v1098, 2.5000002
    %v1100 = vmul.f32 %v1099, %v1075
    %v1101 = vsub.f32 -0.6, %v1025
    %v1102 = vmul.f32 %v1101, 2.5000002
    %v1103 = vmul.f32 %v1102, %v1076
    %v1104 = vadd.f32 %v1100, %v1103
    %v1105 = vsub.f32 %v1025, -1.0
    %v1106 = vmul.f32 %v1105, 2.5000002
    %v1107 = vmul.f32 %v1106, %v1076
    %v1108 = vsub.f32 -0.19999999, %v1025
    %v1109 = vmul.f32 %v1108, 2.4999998
    %v1110 = vmul.f32 %v1109, %v1077
    %v1111 = vadd.f32 %v1107, %v1110
    %v1112 = vsub.f32 %v1025, -0.6
    %v1113 = vmul.f32 %v1112, 2.4999998
    %v1114 = vmul.f32 %v1113, %v1077
    %v1115 = vsub.f32 0.20000005, %v1025
    %v1116 = vmul.f32 %v1115, 2.4999998
    %v1117 = vmul.f32 %v1116, %v1078
    %v1118 = vadd.f32 %v1114, %v1117
    %v1119 = vsub.f32 %v1025, -0.19999999
    %v1120 = vmul.f32 %v1119, 2.4999998
    %v1121 = vmul.f32 %v1120, %v1078
    %v1122 = vsub.f32 0.6, %v1025
    %v1123 = vmul.f32 %v1122, 2.5000002
    %v1124 = vmul.f32 %v1123, %v1079
    %v1125 = vadd.f32 %v1121, %v1124
    %v1126 = vsub.f32 %v1025, 0.20000005
    %v1127 = vmul.f32 %v1126, 2.5000002
    %v1128 = vmul.f32 %v1127, %v1079
    %v1129 = vsub.f32 1.0, %v1025
    %v1130 = vmul.f32 %v1129, 2.5000002
    %v1131 = vmul.f32 %v1130, %v1080
    %v1132 = vadd.f32 %v1128, %v1131
    %v1133 = vsub.f32 %v1025, 0.6
    %v1134 = vmul.f32 %v1133, 2.5000002
    %v1135 = vmul.f32 %v1134, %v1080
    %v1136 = vsub.f32 1.4000001, %v1025
    %v1137 = vmul.f32 %v1136, 2.4999995
    %v1138 = vmul.f32 %v1137, %v1081
    %v1139 = vadd.f32 %v1135, %v1138
    %v1140 = vsub.f32 %v1025, 1.0
    %v1141 = vmul.f32 %v1140, 2.4999995
    %v1142 = vmul.f32 %v1141, %v1081
    %v1143 = vsub.f32 1.8, %v1025
    %v1144 = vmul.f32 %v1143, 2.500001
    %v1145 = vmul.f32 %v1144, %v1082
    %v1146 = vadd.f32 %v1142, %v1145
    %v1147 = vsub.f32 %v1025, 1.4000001
    %v1148 = vmul.f32 %v1147, 2.500001
    %v1149 = vmul.f32 %v1148, %v1082
    %v1150 = vsub.f32 2.2, %v1025
    %v1151 = vmul.f32 %v1150, 2.4999995
    %v1152 = vmul.f32 %v1151, %v1083
    %v1153 = vadd.f32 %v1149, %v1152
    %v1154 = vmul.f32 %v1084, 1.2499999
    %v1155 = vmul.f32 %v1154, %v1090
    %v1156 = vmul.f32 %v1094, 1.2500001
    %v1157 = vmul.f32 %v1156, %v1097
    %v1158 = vadd.f32 %v1155, %v1157
    %v1159 = vmul.f32 %v1091, 1.2500001
    %v1160 = vmul.f32 %v1159, %v1097
    %v1161 = vmul.f32 %v1101, 1.2500001
    %v1162 = vmul.f32 %v1161, %v1104
    %v1163 = vadd.f32 %v1160, %v1162
    %v1164 = vmul.f32 %v1098, 1.2500001
    %v1165 = vmul.f32 %v1164, %v1104
    %v1166 = vmul.f32 %v1108, 1.25
    %v1167 = vmul.f32 %v1166, %v1111
    %v1168 = vadd.f32 %v1165, %v1167
    %v1169 = vmul.f32 %v1105, 1.25
    %v1170 = vmul.f32 %v1169, %v1111
    %v1171 = vmul.f32 %v1115, 1.2499999
    %v1172 = vmul.f32 %v1171, %v1118
    %v1173 = vadd.f32 %v1170, %v1172
    %v1174 = vmul.f32 %v1112, 1.2499999
    %v1175 = vmul.f32 %v1174, %v1118
    %v1176 = vmul.f32 %v1122, 1.25
    %v1177 = vmul.f32 %v1176, %v1125
    %v1178 = vadd.f32 %v1175, %v1177
    %v1179 = vmul.f32 %v1119, 1.25
    %v1180 = vmul.f32 %v1179, %v1125
    %v1181 = vmul.f32 %v1129, 1.2500001
    %v1182 = vmul.f32 %v1181, %v1132
    %v1183 = vadd.f32 %v1180, %v1182
    %v1184 = vmul.f32 %v1126, 1.2500001
    %v1185 = vmul.f32 %v1184, %v1132
    %v1186 = vmul.f32 %v1136, 1.2499999
    %v1187 = vmul.f32 %v1186, %v1139
    %v1188 = vadd.f32 %v1185, %v1187
    %v1189 = vmul.f32 %v1133, 1.2499999
    %v1190 = vmul.f32 %v1189, %v1139
    %v1191 = vmul.f32 %v1143, 1.2500001
    %v1192 = vmul.f32 %v1191, %v1146
    %v1193 = vadd.f32 %v1190, %v1192
    %v1194 = vmul.f32 %v1140, 1.2500001
    %v1195 = vmul.f32 %v1194, %v1146
    %v1196 = vmul.f32 %v1150, 1.2500001
    %v1197 = vmul.f32 %v1196, %v1153
    %v1198 = vadd.f32 %v1195, %v1197
    %v1199 = vmul.f32 %v1084, 0.8333333
    %v1200 = vmul.f32 %v1199, %v1158
    %v1201 = vmul.f32 %v1101, 0.8333334
    %v1202 = vmul.f32 %v1201, %v1163
    %v1203 = vadd.f32 %v1200, %v1202
    %v1204 = vmul.f32 %v1091, 0.8333334
    %v1205 = vmul.f32 %v1204, %v1163
    %v1206 = vmul.f32 %v1108, 0.8333333
    %v1207 = vmul.f32 %v1206, %v1168
    %v1208 = vadd.f32 %v1205, %v1207
    %v1209 = vmul.f32 %v1098, 0.8333333
    %v1210 = vmul.f32 %v1209, %v1168
    %v1211 = vmul.f32 %v1115, 0.8333333
    %v1212 = vmul.f32 %v1211, %v1173
    %v1213 = vadd.f32 %v1210, %v1212
    %v1214 = vmul.f32 %v1105, 0.8333333
    %v1215 = vmul.f32 %v1214, %v1173
    %v1216 = vmul.f32 %v1122, 0.8333333
    %v1217 = vmul.f32 %v1216, %v1178
    %v1218 = vadd.f32 %v1215, %v1217
    %v1219 = vmul.f32 %v1112, 0.8333333
    %v1220 = vmul.f32 %v1219, %v1178
    %v1221 = vmul.f32 %v1129, 0.8333333
    %v1222 = vmul.f32 %v1221, %v1183
    %v1223 = vadd.f32 %v1220, %v1222
    %v1224 = vmul.f32 %v1119, 0.8333333
    %v1225 = vmul.f32 %v1224, %v1183
    %v1226 = vmul.f32 %v1136, 0.8333333
    %v1227 = vmul.f32 %v1226, %v1188
    %v1228 = vadd.f32 %v1225, %v1227
    %v1229 = vmul.f32 %v1126, 0.8333333
    %v1230 = vmul.f32 %v1229, %v1188
    %v1231 = vmul.f32 %v1143, 0.8333334
    %v1232 = vmul.f32 %v1231, %v1193
    %v1233 = vadd.f32 %v1230, %v1232
    %v1234 = vmul.f32 %v1133, 0.8333334
    %v1235 = vmul.f32 %v1234, %v1193
    %v1236 = vmul.f32 %v1150, 0.8333333
    %v1237 = vmul.f32 %v1236, %v1198
    %v1238 = vadd.f32 %v1235, %v1237
    %1240 = vrot.lane.b32.xlu0 %v1208, 32
    %v1241 = vpop.permute.xlu0 %1240
    %1244 = vrot.lane.b32.xlu0 %v1213, 64
    %v1245 = vpop.permute.xlu0 %1244
    %1248 = vrot.lane.b32.xlu0 %v1218, 96
    %v1249 = vpop.permute.xlu0 %1248
    %1252 = vrot.lane.b32.xlu0 %v1228, 32
    %v1253 = vpop.permute.xlu0 %1252
    %1256 = vrot.lane.b32.xlu0 %v1233, 64
    %v1257 = vpop.permute.xlu0 %1256
    %1260 = vrot.lane.b32.xlu0 %v1238, 96
    %v1261 = vpop.permute.xlu0 %1260
    %v1263 = vsel %vm281, %v1203, %v1241
    %v1264 = vsel %vm285, %v1263, %v1245
    %v1265 = vsel %vm289, %v1264, %v1249
    %v1266 = vsel %vm281, %v1223, %v1253
    %v1267 = vsel %vm285, %v1266, %v1257
    %v1268 = vsel %vm289, %v1267, %v1261
    %v1269 = vld [vmem:[%s10] sm:$0xff]
    %v1270 = vld [vmem:[%s10 + $0x8] sm:$0xff]
    %v1271 = vld [vmem:[%s10 + $0x10] sm:$0xff]
    %v1272 = vld [vmem:[%s10 + $0x18] sm:$0xff]
    %v1273 = vld [vmem:[%s10 + $0x20] sm:$0xff]
    %v1274 = vld [vmem:[%s10 + $0x28] sm:$0xff]
    %v1275 = vld [vmem:[%s10 + $0x30] sm:$0xff]
    %v1276 = vld [vmem:[%s10 + $0x38] sm:$0xff]
    %v1277 = vld [vmem:[%s10 + $0x40] sm:$0xff]
    %v1278 = vld [vmem:[%s10 + $0x48] sm:$0xff]
    %v1279 = vld [vmem:[%s10 + $0x50] sm:$0xff]
    %v1280 = vld [vmem:[%s10 + $0x58] sm:$0xff]
    %v1281 = vld [vmem:[%s10 + $0x60] sm:$0xff]
    %v1282 = vld [vmem:[%s10 + $0x68] sm:$0xff]
    %v1283 = vld [vmem:[%s10 + $0x70] sm:$0xff]
    %v1284 = vld [vmem:[%s10 + $0x78] sm:$0xff]
    %v1285 = vld [vmem:[%s10 + $0x80] sm:$0xff]
    %v1286 = vld [vmem:[%s10 + $0x88] sm:$0xff]
    %v1287 = vld [vmem:[%s10 + $0x90] sm:$0xff]
    %v1288 = vld [vmem:[%s10 + $0x98] sm:$0xff]
    %v1289 = vld [vmem:[%s10 + $0xa0] sm:$0xff]
    %v1290 = vld [vmem:[%s10 + $0xa8] sm:$0xff]
    %v1291 = vld [vmem:[%s10 + $0xb0] sm:$0xff]
    %v1292 = vld [vmem:[%s10 + $0xb8] sm:$0xff]
    %v1293 = vld [vmem:[%s10 + $0xc0] sm:$0xff]
    %v1294 = vld [vmem:[%s10 + $0xc8] sm:$0xff]
    %v1295 = vld [vmem:[%s10 + $0xd0] sm:$0xff]
    %v1296 = vld [vmem:[%s10 + $0xd8] sm:$0xff]
    %v1297 = vld [vmem:[%s10 + $0xe0] sm:$0xff]
    %v1298 = vld [vmem:[%s10 + $0xe8] sm:$0xff]
    %v1299 = vld [vmem:[%s10 + $0xf0] sm:$0xff]
    %v1300 = vld [vmem:[%s10 + $0xf8] sm:$0xff]
    %1301 = vmatprep.subr.mxu0 0.0
    %1302 = vmatpush1.msra.mxu0 %v1269
    %1303 = vmatprep.subr.mxu0 0.0
    %1304 = vmatpush1.msra.mxu0 %v1270
    %1305 = vmatprep.subr.mxu0 0.0
    %1306 = vmatpush1.msra.mxu0 %v1271
    %1307 = vmatprep.subr.mxu0 0.0
    %1308 = vmatpush1.msra.mxu0 %v1272
    %1309 = vmatprep.subr.mxu0 0.0
    %1310 = vmatpush1.msra.mxu0 %v1273
    %1311 = vmatprep.subr.mxu0 0.0
    %1312 = vmatpush1.msra.mxu0 %v1274
    %1313 = vmatprep.subr.mxu0 0.0
    %1314 = vmatpush1.msra.mxu0 %v1275
    %1315 = vmatprep.subr.mxu0 0.0
    %1316 = vmatpush1.msra.mxu0 %v1276
    %1317 = vmatprep.subr.mxu0 0.0
    %1318 = vmatpush1.msra.mxu0 %v1277
    %1319 = vmatprep.subr.mxu0 0.0
    %1320 = vmatpush1.msra.mxu0 %v1278
    %1321 = vmatprep.subr.mxu0 0.0
    %1322 = vmatpush1.msra.mxu0 %v1279
    %1323 = vmatprep.subr.mxu0 0.0
    %1324 = vmatpush1.msra.mxu0 %v1280
    %1325 = vmatprep.subr.mxu0 0.0
    %1326 = vmatpush1.msra.mxu0 %v1281
    %1327 = vmatprep.subr.mxu0 0.0
    %1328 = vmatpush1.msra.mxu0 %v1282
    %1329 = vmatprep.subr.mxu0 0.0
    %1330 = vmatpush1.msra.mxu0 %v1283
    %1331 = vmatprep.subr.mxu0 0.0
    %1332 = vmatpush1.msra.mxu0 %v1284
    %1333 = vmatprep.subr.mxu0 0.0
    %1334 = vmatpush1.msra.mxu0 %v1285
    %1335 = vmatprep.subr.mxu0 0.0
    %1336 = vmatpush1.msra.mxu0 %v1286
    %1337 = vmatprep.subr.mxu0 0.0
    %1338 = vmatpush1.msra.mxu0 %v1287
    %1339 = vmatprep.subr.mxu0 0.0
    %1340 = vmatpush1.msra.mxu0 %v1288
    %1341 = vmatprep.subr.mxu0 0.0
    %1342 = vmatpush1.msra.mxu0 %v1289
    %1343 = vmatprep.subr.mxu0 0.0
    %1344 = vmatpush1.msra.mxu0 %v1290
    %1345 = vmatprep.subr.mxu0 0.0
    %1346 = vmatpush1.msra.mxu0 %v1291
    %1347 = vmatprep.subr.mxu0 0.0
    %1348 = vmatpush1.msra.mxu0 %v1292
    %1349 = vmatprep.subr.mxu0 0.0
    %1350 = vmatpush1.msra.mxu0 %v1293
    %1351 = vmatprep.subr.mxu0 0.0
    %1352 = vmatpush1.msra.mxu0 %v1294
    %1353 = vmatprep.subr.mxu0 0.0
    %1354 = vmatpush1.msra.mxu0 %v1295
    %1355 = vmatprep.subr.mxu0 0.0
    %1356 = vmatpush1.msra.mxu0 %v1296
    %1357 = vmatprep.subr.mxu0 0.0
    %1358 = vmatpush1.msra.mxu0 %v1297
    %1359 = vmatprep.subr.mxu0 0.0
    %1360 = vmatpush1.msra.mxu0 %v1298
    %1361 = vmatprep.subr.mxu0 0.0
    %1362 = vmatpush1.msra.mxu0 %v1299
    %1363 = vmatprep.subr.mxu0 0.0
    %1364 = vmatpush1.msra.mxu0 %v1300
    %1365 = vmatprep.mubr.f32.mxu0 %v1268
    %1366 = vmatmul.mubr.f32.gmra.mrb[0].mxu0 %v1265
    %v1367 = vpop.f32.mrb[0].mxu0
    %v1368 = vadd.f32 0.0, %v1367
    %v1369 = vpop.f32.mrb[0].mxu0
    %1370 = vdwg.mxu0
    %v1372 = vsel %vm281, %v1032, 0
    %1374 = vmatprep.subr.mxu0 0.0
    %1375 = vmatpush1.msra.mxu0 %v1033
    %1376 = vmatprep.subr.mxu0 0.0
    %1377 = vmatpush1.msra.mxu0 %v1034
    %1378 = vmatprep.subr.mxu0 0.0
    %1379 = vmatpush1.msra.mxu0 %v1035
    %1380 = vmatprep.subr.mxu0 0.0
    %1381 = vmatpush1.msra.mxu0 %v1036
    %1382 = vmatprep.subr.mxu0 0.0
    %1383 = vmatpush1.msra.mxu0 0.0
    %1384 = vmatprep.subr.mxu0 0.0
    %1385 = vmatpush1.msra.mxu0 0.0
    %1386 = vmatprep.subr.mxu0 0.0
    %1387 = vmatpush1.msra.mxu0 0.0
    %1388 = vmatprep.subr.mxu0 0.0
    %1389 = vmatpush1.msra.mxu0 0.0
    %1390 = vmatprep.subr.mxu0 0.0
    %1391 = vmatpush1.msra.mxu0 0.0
    %1392 = vmatprep.subr.mxu0 0.0
    %1393 = vmatpush1.msra.mxu0 0.0
    %1394 = vmatprep.subr.mxu0 0.0
    %1395 = vmatpush1.msra.mxu0 0.0
    %1396 = vmatprep.subr.mxu0 0.0
    %1397 = vmatpush1.msra.mxu0 0.0
    %1398 = vmatprep.subr.mxu0 0.0
    %1399 = vmatpush1.msra.mxu0 0.0
    %1400 = vmatprep.subr.mxu0 0.0
    %1401 = vmatpush1.msra.mxu0 0.0
    %1402 = vmatprep.subr.mxu0 0.0
    %1403 = vmatpush1.msra.mxu0 0.0
    %1404 = vmatprep.subr.mxu0 0.0
    %1405 = vmatpush1.msra.mxu0 0.0
    %1406 = vmatprep.subr.mxu0 0.0
    %1407 = vmatpush1.msra.mxu0 0.0
    %1408 = vmatprep.subr.mxu0 0.0
    %1409 = vmatpush1.msra.mxu0 0.0
    %1410 = vmatprep.subr.mxu0 0.0
    %1411 = vmatpush1.msra.mxu0 0.0
    %1412 = vmatprep.subr.mxu0 0.0
    %1413 = vmatpush1.msra.mxu0 0.0
    %1414 = vmatprep.subr.mxu0 0.0
    %1415 = vmatpush1.msra.mxu0 0.0
    %1416 = vmatprep.subr.mxu0 0.0
    %1417 = vmatpush1.msra.mxu0 0.0
    %1418 = vmatprep.subr.mxu0 0.0
    %1419 = vmatpush1.msra.mxu0 0.0
    %1420 = vmatprep.subr.mxu0 0.0
    %1421 = vmatpush1.msra.mxu0 0.0
    %1422 = vmatprep.subr.mxu0 0.0
    %1423 = vmatpush1.msra.mxu0 0.0
    %1424 = vmatprep.subr.mxu0 0.0
    %1425 = vmatpush1.msra.mxu0 0.0
    %1426 = vmatprep.subr.mxu0 0.0
    %1427 = vmatpush1.msra.mxu0 0.0
    %1428 = vmatprep.subr.mxu0 0.0
    %1429 = vmatpush1.msra.mxu0 0.0
    %1430 = vmatprep.subr.mxu0 0.0
    %1431 = vmatpush1.msra.mxu0 0.0
    %1432 = vmatprep.subr.mxu0 0.0
    %1433 = vmatpush1.msra.mxu0 0.0
    %1434 = vmatprep.subr.mxu0 0.0
    %1435 = vmatpush1.msra.mxu0 0.0
    %1436 = vmatprep.subr.mxu0 0.0
    %1437 = vmatpush1.msra.mxu0 0.0
    %1438 = vmatprep.mubr.f32.mxu0 0.0
    %1439 = vmatmul.mubr.f32.gmra.mrb[0].mxu0 %v1372
    %v1440 = vpop.f32.mrb[0].mxu0
    %v1441 = vadd.f32 %v1368, %v1440
    %v1442 = vpop.f32.mrb[0].mxu0
    %1443 = vdwg.mxu0
    %1444 = vst [vmem:[#allocation2] sm:$0xff] %v1441
    // Predicated region
    $region46: #{tpu_custom_call.1} parent=1 // pred_check
      _
    $region47: #{tpu_custom_call.1} parent=1 // pred_check_branch
      %1446 = sbr.rel (0) target = $region49
    $region48: #{tpu_custom_call.1} parent=1 // pred_region
      %s1448 = ssub.s32 128, 128
      %1449 = vsyncadd [#allocation3], %s1448
      %s1451 = sshll.u32 [#allocation2], 4
      %s1452 = int_to_ptr.vmem [resolvable:$true] %s1451
      %1454 = dma.vmem_to_hbm [thread:$0]  %s1452, 128, %s11, [#allocation3]
    $region49: #{tpu_custom_call.1} parent=1 // pred_fallthru
      _
    // Predicated region
    $region50: #{tpu_custom_call.1} parent=1 // pred_check
      _
    $region51: #{tpu_custom_call.1} parent=1 // pred_check_branch
      %1456 = sbr.rel (0) target = $region53
    $region52: #{tpu_custom_call.1} parent=1 // pred_region
      %1457 = dma.done [#allocation3], 128
    $region53: #{tpu_custom_call.1} parent=1 // pred_fallthru
      _
    %1458 = vsyncpa [#allocation3], 1

</llo_original>
